<compile_context>
chip_gen: v7x
topology: tpu7x:2x2x1
jax: 0.10.0
libtpu: 0.0.40
codegen_flags: <defaults>
</compile_context>

<pallas_src>
import functools

import jax
import jax.numpy as jnp
from jax import lax
from jax.experimental import pallas as pl
from jax.experimental.pallas import tpu as pltpu


def _elu(x):
    # ELU(alpha=1): x if x > 0 else exp(x) - 1  (clamp exp arg for safety)
    return jnp.where(x > 0, x, jnp.exp(jnp.minimum(x, 0.0)) - 1.0)


def _sigmoid(x):
    # Stable, branch-free logistic via EUP tanh.
    return 0.5 * (jnp.tanh(0.5 * x) + 1.0)


def _conv3_same(x, w_ref, b_ref, ml, mr):
    # x:  (C, N) lane-folded batch (segments of length `seg` per batch elem)
    # w:  (Cout, 3*C) fused taps ordered [l-1 | l | l+1];  b: (Cout, 1)
    # ml/mr: (1, N) 0/1 masks zeroing per-segment edges ('same' zero padding;
    #        also kills the circular wrap of the roll).
    n = x.shape[1]
    xl = pltpu.roll(x, 1, axis=1) * ml          # x[:, l-1]
    xr = pltpu.roll(x, n - 1, axis=1) * mr      # x[:, l+1]
    xs = jnp.concatenate([xl, x, xr], axis=0)   # (3*C, N), tile-aligned pieces
    return jnp.dot(w_ref[...], xs, preferred_element_type=jnp.float32) + b_ref[...]


def _maxpool2(y, sel):
    # MaxPool1d(2, 2): pairwise max via roll(N-1), then compact even columns
    # with one 0/1 selection matmul.  Segments have even length so no pair
    # straddles a per-batch segment boundary; odd lanes are never selected so
    # the circular wrap of the roll is harmless.
    n = y.shape[1]
    m = jnp.maximum(y, pltpu.roll(y, n - 1, axis=1))
    return jnp.dot(m, sel, preferred_element_type=jnp.float32)


def resblock_kernel(x_ref,
                    w1_ref, b1_ref, w2_ref, b2_ref,
                    ml1_ref, mr1_ref, ml2_ref, mr2_ref,
                    sel1_ref, sel2_ref,
                    seg_sum_ref, seg_exp_ref, att_mask_ref, eye_ref,
                    memgn_ref, memc_ref,
                    gamma_ref, beta_ref,
                    fw1_ref, fb1_ref, fw2_ref, fb2_ref,
                    out_ref, *, bt, eps):
    x = x_ref[0].astype(jnp.float32)                          # (Cin_p, bt*L)

    # conv1 -> ELU -> pool1
    y1 = _elu(_conv3_same(x, w1_ref, b1_ref, ml1_ref[...], mr1_ref[...]))
    x0 = _maxpool2(y1, sel1_ref[...])                         # (Cout, bt*L/2)
    # conv2 -> ELU, residual add, pool2
    x1 = _elu(_conv3_same(x0, w2_ref, b2_ref, ml2_ref[...], mr2_ref[...]))
    y = _maxpool2(x1 + x0, sel2_ref[...])                     # (Cout, bt*L/4)

    # ---- GroupNorm: two-pass per-(batch, group) stats, affine folded -------
    seg_sum = seg_sum_ref[...]         # (N4, bt): sum lanes of each segment
    seg_exp = seg_exp_ref[...]         # (bt, N4): broadcast back to lanes
    memgn = memgn_ref[...]             # (G, Cout): group membership / n
    memc = memc_ref[...]               # (Cout, G): broadcast back to channels
    row_sum = jnp.dot(y, seg_sum, preferred_element_type=jnp.float32)
    g_mean = jnp.dot(memgn, row_sum, preferred_element_type=jnp.float32)
    mean_c = jnp.dot(memc, g_mean, preferred_element_type=jnp.float32)
    mean_full = jnp.dot(mean_c, seg_exp, preferred_element_type=jnp.float32)
    d = y - mean_full                                          # centered
    row_var = jnp.dot(d * d, seg_sum, preferred_element_type=jnp.float32)
    g_var = jnp.dot(memgn, row_var, preferred_element_type=jnp.float32)
    g_inv = lax.rsqrt(g_var + eps)
    a_c = jnp.dot(memc, g_inv, preferred_element_type=jnp.float32) * gamma_ref[...]
    a_full = jnp.dot(a_c, seg_exp, preferred_element_type=jnp.float32)
    yn = d * a_full + beta_ref[...]                            # (Cout, N4)

    # ---- AttentionBlock (batched): per-batch max -> fc1 -> ELU -> fc2 -> sigmoid
    att_mask = att_mask_ref[...]       # (bt, N4): 0 inside segment b, -1e30 else
    eye = eye_ref[...]                 # (bt, bt) one-hot columns
    z = jnp.zeros((yn.shape[0], bt), jnp.float32)
    for b in range(bt):                # bt is a small compile-time constant
        zb = jnp.max(yn + att_mask[b:b + 1, :], axis=1, keepdims=True)  # (Cout,1)
        z = z + zb * eye[b:b + 1, :]   # place into column b
    h = _elu(jnp.dot(fw1_ref[...], z, preferred_element_type=jnp.float32)
             + fb1_ref[...])
    s = _sigmoid(jnp.dot(fw2_ref[...], h, preferred_element_type=jnp.float32)
                 + fb2_ref[...])
    scale = jnp.dot(s, seg_exp, preferred_element_type=jnp.float32)     # (Cout, N4)
    out_ref[0] = (yn * (1.0 + scale)).astype(out_ref.dtype)   # x*z + x


# ---------------------------------------------------------------------------
# Host-side constant builders (all grid-invariant, hoisted out of the kernel)
# ---------------------------------------------------------------------------
def _edge_masks(n, seg):
    idx = jnp.arange(n)
    ml = (idx % seg != 0).astype(jnp.float32)[None, :]          # zero x[l-1] at l=0
    mr = (idx % seg != seg - 1).astype(jnp.float32)[None, :]    # zero x[l+1] at l=L-1
    return ml, mr


def _even_select(n):
    # (n, n//2) 0/1 matrix: out[:, c] = in[:, 2c]
    r = jnp.arange(n)[:, None]
    c = jnp.arange(n // 2)[None, :]
    return (r == 2 * c).astype(jnp.float32)


def _fuse_taps(w):
    # (Cout, Cin, 3) -> (Cout, 3*Cin) ordered [k=0 (l-1) | k=1 (l) | k=2 (l+1)]
    return jnp.concatenate([w[:, :, 0], w[:, :, 1], w[:, :, 2]], axis=1)


def resblock_forward(x, params, *, groups, eps=1e-5, batch_tile=None):
    B, cin, L = x.shape
    assert L % 4 == 0, "L must be divisible by 4 (two MaxPool1d(2) stages)"
    if batch_tile is None:
        # Keep >= 2 grid steps so v7x's two TensorCores both get work.
        batch_tile = B // 2 if (B % 2 == 0 and B >= 2) else B
    bt = batch_tile
    assert B % bt == 0, "batch must be divisible by the batch tile"
    cout = params["conv1_w"].shape[0]
    assert cout % 8 == 0 and cout % groups == 0
    cg = cout // groups
    l2, l4 = L // 2, L // 4
    n1, n2, n4 = bt * L, bt * l2, bt * l4

    # Zero-pad input channels to a multiple of 8 -> tile-aligned sublane concat
    # of the conv taps inside the kernel (padded channels have zero weights).
    cin_p = ((cin + 7) // 8) * 8
    w1 = params["conv1_w"]
    if cin_p != cin:
        x = jnp.pad(x, ((0, 0), (0, cin_p - cin), (0, 0)))
        w1 = jnp.pad(w1, ((0, 0), (0, cin_p - cin), (0, 0)))
    w1f = _fuse_taps(w1)                                        # (Cout, 3*Cin_p)
    w2f = _fuse_taps(params["conv2_w"])                         # (Cout, 3*Cout)

    # ---- grid-invariant constants ----------------------------------------
    ml1, mr1 = _edge_masks(n1, L)
    ml2, mr2 = _edge_masks(n2, l2)
    sel1, sel2 = _even_select(n1), _even_select(n2)
    seg_sum = (jnp.arange(n4)[:, None] // l4
               == jnp.arange(bt)[None, :]).astype(jnp.float32)      # (N4, bt)
    seg_exp = seg_sum.T                                             # (bt, N4)
    att_mask = (seg_sum.T - 1.0) * 1e30                             # 0 / -1e30
    eye_bt = jnp.eye(bt, dtype=jnp.float32)
    memg = (jnp.arange(cout)[None, :] // cg
            == jnp.arange(groups)[:, None]).astype(jnp.float32)     # (G, Cout)
    memgn = memg / float(cg * l4)
    memc = memg.T

    # Batch folding: (B, Cin, L) -> (B//bt, Cin, bt*L); lanes = [b0 | b1 | ...]
    # TODO(synk): fold this relayout into the BlockSpec for very large B*L.
    xf = x.reshape(B // bt, bt, cin_p, L).transpose(0, 2, 1, 3).reshape(
        B // bt, cin_p, n1)

    args = (
        xf,
        w1f, params["conv1_b"].reshape(cout, 1),
        w2f, params["conv2_b"].reshape(cout, 1),
        ml1, mr1, ml2, mr2,
        sel1, sel2,
        seg_sum, seg_exp, att_mask, eye_bt,
        memgn, memc,
        params["gamma"].reshape(cout, 1), params["beta"].reshape(cout, 1),
        params["fc1_w"], params["fc1_b"].reshape(-1, 1),
        params["fc2_w"], params["fc2_b"].reshape(cout, 1),
    )

    def const_spec(a):
        # Full-array block, constant index map -> stays VMEM resident (no
        # re-DMA across grid steps).
        return pl.BlockSpec(a.shape, lambda i, _nd=a.ndim: (0,) * _nd)

    in_specs = [pl.BlockSpec((1, cin_p, n1), lambda i: (i, 0, 0))]
    in_specs += [const_spec(a) for a in args[1:]]
    out_spec = pl.BlockSpec((1, cout, n4), lambda i: (i, 0, 0))

    kernel = functools.partial(resblock_kernel, bt=bt, eps=eps)
    out = pl.pallas_call(
        kernel,
        out_shape=jax.ShapeDtypeStruct((B // bt, cout, n4), x.dtype),
        grid=(B // bt,),
        in_specs=in_specs,
        out_specs=out_spec,
        compiler_params=pltpu.CompilerParams(
            dimension_semantics=("parallel",)),
        # NOTE: raise vmem_limit_bytes here if bt*L is scaled up (defaults:
        # ~16 MiB on v5e, ~32 MiB on v6e/v7x scoped VMEM).
    )(*args)
    # unfold lanes back to (B, Cout, L//4)
    return out.reshape(B // bt, cout, bt, l4).transpose(0, 2, 1, 3).reshape(
        B, cout, l4)


def resblock_reference(x, params, *, groups, eps=1e-5):
    # Pure-JAX reference mirroring the PyTorch module (HIGHEST precision).
    prec = jax.lax.Precision.HIGHEST

    def conv1d(a, w, b):
        y = lax.conv_general_dilated(a, w, (1,), "SAME",
                                     dimension_numbers=("NCH", "OIH", "NCH"),
                                     precision=prec)
        return y + b[None, :, None]

    def pool(y):
        Bq, C, Lq = y.shape
        return jnp.max(y.reshape(Bq, C, Lq // 2, 2), axis=-1)

    x0 = pool(jax.nn.elu(conv1d(x, params["conv1_w"], params["conv1_b"])))
    x1 = jax.nn.elu(conv1d(x0, params["conv2_w"], params["conv2_b"]))
    y = pool(x1 + x0)
    Bq, C, Lq = y.shape
    yg = y.reshape(Bq, groups, -1)
    mean = yg.mean(-1, keepdims=True)
    var = ((yg - mean) ** 2).mean(-1, keepdims=True)
    yn = ((yg - mean) / jnp.sqrt(var + eps)).reshape(Bq, C, Lq)
    yn = yn * params["gamma"][None, :, None] + params["beta"][None, :, None]
    z = yn.max(-1)
    h = jax.nn.elu(jnp.dot(z, params["fc1_w"].T, precision=prec)
                   + params["fc1_b"])
    s = jax.nn.sigmoid(jnp.dot(h, params["fc2_w"].T, precision=prec)
                       + params["fc2_b"])
    return yn * s[:, :, None] + yn


if __name__ == "__main__":
    # bt=8, L=64 -> bt*L = 512 and bt*L/4 = 128 lanes (lane-dense output
    # stores), grid = B/bt = 2 (both v7x TensorCores busy).
    B, Cin, Cout, L, K = 16, 4, 16, 64, 3
    groups = Cout // 8                                   # GroupNorm(out//8, out)

    key = jax.random.PRNGKey(0)
    ks = jax.random.split(key, 11)
    params = {
        "conv1_w": jax.random.normal(ks[0], (Cout, Cin, K), jnp.float32) * 0.2,
        "conv1_b": jax.random.normal(ks[1], (Cout,), jnp.float32) * 0.1,
        "conv2_w": jax.random.normal(ks[2], (Cout, Cout, K), jnp.float32) * 0.2,
        "conv2_b": jax.random.normal(ks[3], (Cout,), jnp.float32) * 0.1,
        "gamma": 1.0 + 0.1 * jax.random.normal(ks[4], (Cout,), jnp.float32),
        "beta": 0.1 * jax.random.normal(ks[5], (Cout,), jnp.float32),
        "fc1_w": jax.random.normal(ks[6], (Cout // 4, Cout), jnp.float32) * 0.3,
        "fc1_b": jax.random.normal(ks[7], (Cout // 4,), jnp.float32) * 0.1,
        "fc2_w": jax.random.normal(ks[8], (Cout, Cout // 4), jnp.float32) * 0.3,
        "fc2_b": jax.random.normal(ks[9], (Cout,), jnp.float32) * 0.1,
    }
    x = jax.random.normal(ks[10], (B, Cin, L), jnp.float32)

    out = jax.block_until_ready(
        resblock_forward(x, params, groups=groups, batch_tile=8))
    ref = resblock_reference(x, params, groups=groups)

    assert out.shape == (B, Cout, L // 4), out.shape
    # Tolerance sized to absorb MXU f32 multi-pass differences across TPU
    # generations; any structural error (padding/pool/norm/attention) is O(0.1+).
    err = float(jnp.max(jnp.abs(out - ref)))
    assert jnp.allclose(out, ref, atol=1e-2, rtol=1e-2), err
    print("KERNEL_OK")
</pallas_src>

<mosaic_0001>
module attributes {stable_mosaic.version = 11 : i64} {
  func.func @resblock_kernel(%arg0: i32, %arg1: memref<1x8x512xf32, #tpu.memory_space<vmem>>, %arg2: memref<16x24xf32, #tpu.memory_space<vmem>>, %arg3: memref<16x1xf32, #tpu.memory_space<vmem>>, %arg4: memref<16x48xf32, #tpu.memory_space<vmem>>, %arg5: memref<16x1xf32, #tpu.memory_space<vmem>>, %arg6: memref<1x512xf32, #tpu.memory_space<vmem>>, %arg7: memref<1x512xf32, #tpu.memory_space<vmem>>, %arg8: memref<1x256xf32, #tpu.memory_space<vmem>>, %arg9: memref<1x256xf32, #tpu.memory_space<vmem>>, %arg10: memref<512x256xf32, #tpu.memory_space<vmem>>, %arg11: memref<256x128xf32, #tpu.memory_space<vmem>>, %arg12: memref<128x8xf32, #tpu.memory_space<vmem>>, %arg13: memref<8x128xf32, #tpu.memory_space<vmem>>, %arg14: memref<8x128xf32, #tpu.memory_space<vmem>>, %arg15: memref<8x8xf32, #tpu.memory_space<vmem>>, %arg16: memref<2x16xf32, #tpu.memory_space<vmem>>, %arg17: memref<16x2xf32, #tpu.memory_space<vmem>>, %arg18: memref<16x1xf32, #tpu.memory_space<vmem>>, %arg19: memref<16x1xf32, #tpu.memory_space<vmem>>, %arg20: memref<4x16xf32, #tpu.memory_space<vmem>>, %arg21: memref<4x1xf32, #tpu.memory_space<vmem>>, %arg22: memref<16x4xf32, #tpu.memory_space<vmem>>, %arg23: memref<16x1xf32, #tpu.memory_space<vmem>>, %arg24: memref<1x16x128xf32, #tpu.memory_space<vmem>>) attributes {dimension_semantics = [#tpu.dimension_semantics<parallel>], iteration_bounds = array<i64: 2>, scalar_prefetch = 0 : i64, scratch_operands = 0 : i64, tpu.core_type = #tpu.core_type<tc>, window_params = [{transform_indices = @transform_0, window_bounds = array<i64: 1, 8, 512>}, {pipeline_mode = #tpu.pipeline_mode<synchronous>, transform_indices = @transform_1, window_bounds = array<i64: 16, 24>}, {pipeline_mode = #tpu.pipeline_mode<synchronous>, transform_indices = @transform_2, window_bounds = array<i64: 16, 1>}, {pipeline_mode = #tpu.pipeline_mode<synchronous>, transform_indices = @transform_3, window_bounds = array<i64: 16, 48>}, {pipeline_mode = #tpu.pipeline_mode<synchronous>, transform_indices = @transform_4, window_bounds = array<i64: 16, 1>}, {pipeline_mode = #tpu.pipeline_mode<synchronous>, transform_indices = @transform_5, window_bounds = array<i64: 1, 512>}, {pipeline_mode = #tpu.pipeline_mode<synchronous>, transform_indices = @transform_6, window_bounds = array<i64: 1, 512>}, {pipeline_mode = #tpu.pipeline_mode<synchronous>, transform_indices = @transform_7, window_bounds = array<i64: 1, 256>}, {pipeline_mode = #tpu.pipeline_mode<synchronous>, transform_indices = @transform_8, window_bounds = array<i64: 1, 256>}, {pipeline_mode = #tpu.pipeline_mode<synchronous>, transform_indices = @transform_9, window_bounds = array<i64: 512, 256>}, {pipeline_mode = #tpu.pipeline_mode<synchronous>, transform_indices = @transform_10, window_bounds = array<i64: 256, 128>}, {pipeline_mode = #tpu.pipeline_mode<synchronous>, transform_indices = @transform_11, window_bounds = array<i64: 128, 8>}, {pipeline_mode = #tpu.pipeline_mode<synchronous>, transform_indices = @transform_12, window_bounds = array<i64: 8, 128>}, {pipeline_mode = #tpu.pipeline_mode<synchronous>, transform_indices = @transform_13, window_bounds = array<i64: 8, 128>}, {pipeline_mode = #tpu.pipeline_mode<synchronous>, transform_indices = @transform_14, window_bounds = array<i64: 8, 8>}, {pipeline_mode = #tpu.pipeline_mode<synchronous>, transform_indices = @transform_15, window_bounds = array<i64: 2, 16>}, {pipeline_mode = #tpu.pipeline_mode<synchronous>, transform_indices = @transform_16, window_bounds = array<i64: 16, 2>}, {pipeline_mode = #tpu.pipeline_mode<synchronous>, transform_indices = @transform_17, window_bounds = array<i64: 16, 1>}, {pipeline_mode = #tpu.pipeline_mode<synchronous>, transform_indices = @transform_18, window_bounds = array<i64: 16, 1>}, {pipeline_mode = #tpu.pipeline_mode<synchronous>, transform_indices = @transform_19, window_bounds = array<i64: 4, 16>}, {pipeline_mode = #tpu.pipeline_mode<synchronous>, transform_indices = @transform_20, window_bounds = array<i64: 4, 1>}, {pipeline_mode = #tpu.pipeline_mode<synchronous>, transform_indices = @transform_21, window_bounds = array<i64: 16, 4>}, {pipeline_mode = #tpu.pipeline_mode<synchronous>, transform_indices = @transform_22, window_bounds = array<i64: 16, 1>}, {transform_indices = @transform_23, window_bounds = array<i64: 1, 16, 128>}]} {
    %c0 = arith.constant 0 : index
    %c0_0 = arith.constant 0 : index
    %c0_1 = arith.constant 0 : index
    %0 = vector.load %arg1[%c0, %c0_0, %c0_1] : memref<1x8x512xf32, #tpu.memory_space<vmem>>, vector<1x8x512xf32>
    %1 = vector.shape_cast %0 : vector<1x8x512xf32> to vector<8x512xf32>
    %c0_2 = arith.constant 0 : index
    %c0_3 = arith.constant 0 : index
    %2 = vector.load %arg6[%c0_2, %c0_3] : memref<1x512xf32, #tpu.memory_space<vmem>>, vector<1x512xf32>
    %c0_4 = arith.constant 0 : index
    %c0_5 = arith.constant 0 : index
    %3 = vector.load %arg7[%c0_4, %c0_5] : memref<1x512xf32, #tpu.memory_space<vmem>>, vector<1x512xf32>
    %c1_i32 = arith.constant 1 : i32
    %4 = tpu.dynamic_rotate %1 by %c1_i32 dim 1 : vector<8x512xf32>, i32 -> vector<8x512xf32>
    %5 = vector.broadcast %2 : vector<1x512xf32> to vector<8x512xf32>
    %6 = arith.mulf %4, %5 : vector<8x512xf32>
    %c511_i32 = arith.constant 511 : i32
    %7 = tpu.dynamic_rotate %1 by %c511_i32 dim 1 : vector<8x512xf32>, i32 -> vector<8x512xf32>
    %8 = vector.broadcast %3 : vector<1x512xf32> to vector<8x512xf32>
    %9 = arith.mulf %7, %8 : vector<8x512xf32>
    %10 = tpu.concatenate %6, %1, %9 in 0 : vector<8x512xf32>, vector<8x512xf32>, vector<8x512xf32> -> vector<24x512xf32>
    %c0_6 = arith.constant 0 : index
    %c0_7 = arith.constant 0 : index
    %11 = vector.load %arg2[%c0_6, %c0_7] : memref<16x24xf32, #tpu.memory_space<vmem>>, vector<16x24xf32>
    %cst = arith.constant dense<0.000000e+00> : vector<16x512xf32>
    %12 = tpu.matmul %11, %10, %cst {dimension_numbers = #tpu.dot_dimension_numbers<[1], [0], [0], [1], [0, 0, 1, 1], [], []>} : vector<16x24xf32>, vector<24x512xf32>, vector<16x512xf32> -> vector<16x512xf32>
    %c0_8 = arith.constant 0 : index
    %c0_9 = arith.constant 0 : index
    %13 = vector.load %arg3[%c0_8, %c0_9] : memref<16x1xf32, #tpu.memory_space<vmem>>, vector<16x1xf32>
    %14 = vector.broadcast %13 : vector<16x1xf32> to vector<16x512xf32>
    %15 = arith.addf %12, %14 : vector<16x512xf32>
    %cst_10 = arith.constant 0.000000e+00 : f32
    %16 = vector.broadcast %cst_10 : f32 to vector<16x512xf32>
    %17 = arith.cmpf ogt, %15, %16 : vector<16x512xf32>
    %cst_11 = arith.constant 0.000000e+00 : f32
    %18 = vector.broadcast %cst_11 : f32 to vector<16x512xf32>
    %19 = arith.minimumf %15, %18 : vector<16x512xf32>
    %20 = math.exp %19 : vector<16x512xf32>
    %cst_12 = arith.constant 1.000000e+00 : f32
    %21 = vector.broadcast %cst_12 : f32 to vector<16x512xf32>
    %22 = arith.subf %20, %21 : vector<16x512xf32>
    %23 = arith.select %17, %15, %22 : vector<16x512xi1>, vector<16x512xf32>
    %c0_13 = arith.constant 0 : index
    %c0_14 = arith.constant 0 : index
    %24 = vector.load %arg10[%c0_13, %c0_14] : memref<512x256xf32, #tpu.memory_space<vmem>>, vector<512x256xf32>
    %c511_i32_15 = arith.constant 511 : i32
    %25 = tpu.dynamic_rotate %23 by %c511_i32_15 dim 1 : vector<16x512xf32>, i32 -> vector<16x512xf32>
    %26 = arith.maximumf %23, %25 : vector<16x512xf32>
    %cst_16 = arith.constant dense<0.000000e+00> : vector<16x256xf32>
    %27 = tpu.matmul %26, %24, %cst_16 {dimension_numbers = #tpu.dot_dimension_numbers<[1], [0], [0], [1], [0, 0, 1, 1], [], []>} : vector<16x512xf32>, vector<512x256xf32>, vector<16x256xf32> -> vector<16x256xf32>
    %c0_17 = arith.constant 0 : index
    %c0_18 = arith.constant 0 : index
    %28 = vector.load %arg8[%c0_17, %c0_18] : memref<1x256xf32, #tpu.memory_space<vmem>>, vector<1x256xf32>
    %c0_19 = arith.constant 0 : index
    %c0_20 = arith.constant 0 : index
    %29 = vector.load %arg9[%c0_19, %c0_20] : memref<1x256xf32, #tpu.memory_space<vmem>>, vector<1x256xf32>
    %c1_i32_21 = arith.constant 1 : i32
    %30 = tpu.dynamic_rotate %27 by %c1_i32_21 dim 1 : vector<16x256xf32>, i32 -> vector<16x256xf32>
    %31 = vector.broadcast %28 : vector<1x256xf32> to vector<16x256xf32>
    %32 = arith.mulf %30, %31 : vector<16x256xf32>
    %c255_i32 = arith.constant 255 : i32
    %33 = tpu.dynamic_rotate %27 by %c255_i32 dim 1 : vector<16x256xf32>, i32 -> vector<16x256xf32>
    %34 = vector.broadcast %29 : vector<1x256xf32> to vector<16x256xf32>
    %35 = arith.mulf %33, %34 : vector<16x256xf32>
    %36 = tpu.concatenate %32, %27, %35 in 0 : vector<16x256xf32>, vector<16x256xf32>, vector<16x256xf32> -> vector<48x256xf32>
    %c0_22 = arith.constant 0 : index
    %c0_23 = arith.constant 0 : index
    %37 = vector.load %arg4[%c0_22, %c0_23] : memref<16x48xf32, #tpu.memory_space<vmem>>, vector<16x48xf32>
    %cst_24 = arith.constant dense<0.000000e+00> : vector<16x256xf32>
    %38 = tpu.matmul %37, %36, %cst_24 {dimension_numbers = #tpu.dot_dimension_numbers<[1], [0], [0], [1], [0, 0, 1, 1], [], []>} : vector<16x48xf32>, vector<48x256xf32>, vector<16x256xf32> -> vector<16x256xf32>
    %c0_25 = arith.constant 0 : index
    %c0_26 = arith.constant 0 : index
    %39 = vector.load %arg5[%c0_25, %c0_26] : memref<16x1xf32, #tpu.memory_space<vmem>>, vector<16x1xf32>
    %40 = vector.broadcast %39 : vector<16x1xf32> to vector<16x256xf32>
    %41 = arith.addf %38, %40 : vector<16x256xf32>
    %cst_27 = arith.constant 0.000000e+00 : f32
    %42 = vector.broadcast %cst_27 : f32 to vector<16x256xf32>
    %43 = arith.cmpf ogt, %41, %42 : vector<16x256xf32>
    %cst_28 = arith.constant 0.000000e+00 : f32
    %44 = vector.broadcast %cst_28 : f32 to vector<16x256xf32>
    %45 = arith.minimumf %41, %44 : vector<16x256xf32>
    %46 = math.exp %45 : vector<16x256xf32>
    %cst_29 = arith.constant 1.000000e+00 : f32
    %47 = vector.broadcast %cst_29 : f32 to vector<16x256xf32>
    %48 = arith.subf %46, %47 : vector<16x256xf32>
    %49 = arith.select %43, %41, %48 : vector<16x256xi1>, vector<16x256xf32>
    %50 = arith.addf %49, %27 : vector<16x256xf32>
    %c0_30 = arith.constant 0 : index
    %c0_31 = arith.constant 0 : index
    %51 = vector.load %arg11[%c0_30, %c0_31] : memref<256x128xf32, #tpu.memory_space<vmem>>, vector<256x128xf32>
    %c255_i32_32 = arith.constant 255 : i32
    %52 = tpu.dynamic_rotate %50 by %c255_i32_32 dim 1 : vector<16x256xf32>, i32 -> vector<16x256xf32>
    %53 = arith.maximumf %50, %52 : vector<16x256xf32>
    %cst_33 = arith.constant dense<0.000000e+00> : vector<16x128xf32>
    %54 = tpu.matmul %53, %51, %cst_33 {dimension_numbers = #tpu.dot_dimension_numbers<[1], [0], [0], [1], [0, 0, 1, 1], [], []>} : vector<16x256xf32>, vector<256x128xf32>, vector<16x128xf32> -> vector<16x128xf32>
    %c0_34 = arith.constant 0 : index
    %c0_35 = arith.constant 0 : index
    %55 = vector.load %arg12[%c0_34, %c0_35] : memref<128x8xf32, #tpu.memory_space<vmem>>, vector<128x8xf32>
    %c0_36 = arith.constant 0 : index
    %c0_37 = arith.constant 0 : index
    %56 = vector.load %arg13[%c0_36, %c0_37] : memref<8x128xf32, #tpu.memory_space<vmem>>, vector<8x128xf32>
    %c0_38 = arith.constant 0 : index
    %c0_39 = arith.constant 0 : index
    %57 = vector.load %arg16[%c0_38, %c0_39] : memref<2x16xf32, #tpu.memory_space<vmem>>, vector<2x16xf32>
    %c0_40 = arith.constant 0 : index
    %c0_41 = arith.constant 0 : index
    %58 = vector.load %arg17[%c0_40, %c0_41] : memref<16x2xf32, #tpu.memory_space<vmem>>, vector<16x2xf32>
    %cst_42 = arith.constant dense<0.000000e+00> : vector<16x8xf32>
    %59 = tpu.matmul %54, %55, %cst_42 {dimension_numbers = #tpu.dot_dimension_numbers<[1], [0], [0], [1], [0, 0, 1, 1], [], []>} : vector<16x128xf32>, vector<128x8xf32>, vector<16x8xf32> -> vector<16x8xf32>
    %cst_43 = arith.constant dense<0.000000e+00> : vector<2x8xf32>
    %60 = tpu.matmul %57, %59, %cst_43 {dimension_numbers = #tpu.dot_dimension_numbers<[1], [0], [0], [1], [0, 0, 1, 1], [], []>} : vector<2x16xf32>, vector<16x8xf32>, vector<2x8xf32> -> vector<2x8xf32>
    %cst_44 = arith.constant dense<0.000000e+00> : vector<16x8xf32>
    %61 = tpu.matmul %58, %60, %cst_44 {dimension_numbers = #tpu.dot_dimension_numbers<[1], [0], [0], [1], [0, 0, 1, 1], [], []>} : vector<16x2xf32>, vector<2x8xf32>, vector<16x8xf32> -> vector<16x8xf32>
    %cst_45 = arith.constant dense<0.000000e+00> : vector<16x128xf32>
    %62 = tpu.matmul %61, %56, %cst_45 {dimension_numbers = #tpu.dot_dimension_numbers<[1], [0], [0], [1], [0, 0, 1, 1], [], []>} : vector<16x8xf32>, vector<8x128xf32>, vector<16x128xf32> -> vector<16x128xf32>
    %63 = arith.subf %54, %62 : vector<16x128xf32>
    %64 = arith.mulf %63, %63 : vector<16x128xf32>
    %cst_46 = arith.constant dense<0.000000e+00> : vector<16x8xf32>
    %65 = tpu.matmul %64, %55, %cst_46 {dimension_numbers = #tpu.dot_dimension_numbers<[1], [0], [0], [1], [0, 0, 1, 1], [], []>} : vector<16x128xf32>, vector<128x8xf32>, vector<16x8xf32> -> vector<16x8xf32>
    %cst_47 = arith.constant dense<0.000000e+00> : vector<2x8xf32>
    %66 = tpu.matmul %57, %65, %cst_47 {dimension_numbers = #tpu.dot_dimension_numbers<[1], [0], [0], [1], [0, 0, 1, 1], [], []>} : vector<2x16xf32>, vector<16x8xf32>, vector<2x8xf32> -> vector<2x8xf32>
    %cst_48 = arith.constant 9.99999974E-6 : f32
    %67 = vector.broadcast %cst_48 : f32 to vector<2x8xf32>
    %68 = arith.addf %66, %67 : vector<2x8xf32>
    %69 = math.rsqrt %68 : vector<2x8xf32>
    %cst_49 = arith.constant dense<0.000000e+00> : vector<16x8xf32>
    %70 = tpu.matmul %58, %69, %cst_49 {dimension_numbers = #tpu.dot_dimension_numbers<[1], [0], [0], [1], [0, 0, 1, 1], [], []>} : vector<16x2xf32>, vector<2x8xf32>, vector<16x8xf32> -> vector<16x8xf32>
    %c0_50 = arith.constant 0 : index
    %c0_51 = arith.constant 0 : index
    %71 = vector.load %arg18[%c0_50, %c0_51] : memref<16x1xf32, #tpu.memory_space<vmem>>, vector<16x1xf32>
    %72 = vector.broadcast %71 : vector<16x1xf32> to vector<16x8xf32>
    %73 = arith.mulf %70, %72 : vector<16x8xf32>
    %cst_52 = arith.constant dense<0.000000e+00> : vector<16x128xf32>
    %74 = tpu.matmul %73, %56, %cst_52 {dimension_numbers = #tpu.dot_dimension_numbers<[1], [0], [0], [1], [0, 0, 1, 1], [], []>} : vector<16x8xf32>, vector<8x128xf32>, vector<16x128xf32> -> vector<16x128xf32>
    %75 = arith.mulf %63, %74 : vector<16x128xf32>
    %c0_53 = arith.constant 0 : index
    %c0_54 = arith.constant 0 : index
    %76 = vector.load %arg19[%c0_53, %c0_54] : memref<16x1xf32, #tpu.memory_space<vmem>>, vector<16x1xf32>
    %77 = vector.broadcast %76 : vector<16x1xf32> to vector<16x128xf32>
    %78 = arith.addf %75, %77 : vector<16x128xf32>
    %c0_55 = arith.constant 0 : index
    %c0_56 = arith.constant 0 : index
    %79 = vector.load %arg14[%c0_55, %c0_56] : memref<8x128xf32, #tpu.memory_space<vmem>>, vector<8x128xf32>
    %c0_57 = arith.constant 0 : index
    %c0_58 = arith.constant 0 : index
    %80 = vector.load %arg15[%c0_57, %c0_58] : memref<8x8xf32, #tpu.memory_space<vmem>>, vector<8x8xf32>
    %cst_59 = arith.constant 0.000000e+00 : f32
    %81 = vector.broadcast %cst_59 : f32 to vector<16x8xf32>
    %82 = vector.extract_strided_slice %79 {offsets = [0, 0], sizes = [1, 128], strides = [1, 1]} : vector<8x128xf32> to vector<1x128xf32>
    %83 = vector.broadcast %82 : vector<1x128xf32> to vector<16x128xf32>
    %84 = arith.addf %78, %83 : vector<16x128xf32>
    %cst_60 = arith.constant dense<0xFF800000> : vector<16xf32>
    %85 = vector.multi_reduction <maximumf>, %84, %cst_60 [1] : vector<16x128xf32> to vector<16xf32>
    %86 = vector.shape_cast %85 : vector<16xf32> to vector<16x1xf32>
    %87 = vector.extract_strided_slice %80 {offsets = [0, 0], sizes = [1, 8], strides = [1, 1]} : vector<8x8xf32> to vector<1x8xf32>
    %88 = vector.broadcast %86 : vector<16x1xf32> to vector<16x8xf32>
    %89 = vector.broadcast %87 : vector<1x8xf32> to vector<16x8xf32>
    %90 = arith.mulf %88, %89 : vector<16x8xf32>
    %91 = arith.addf %81, %90 : vector<16x8xf32>
    %92 = vector.extract_strided_slice %79 {offsets = [1, 0], sizes = [1, 128], strides = [1, 1]} : vector<8x128xf32> to vector<1x128xf32>
    %93 = vector.broadcast %92 : vector<1x128xf32> to vector<16x128xf32>
    %94 = arith.addf %78, %93 : vector<16x128xf32>
    %cst_61 = arith.constant dense<0xFF800000> : vector<16xf32>
    %95 = vector.multi_reduction <maximumf>, %94, %cst_61 [1] : vector<16x128xf32> to vector<16xf32>
    %96 = vector.shape_cast %95 : vector<16xf32> to vector<16x1xf32>
    %97 = vector.extract_strided_slice %80 {offsets = [1, 0], sizes = [1, 8], strides = [1, 1]} : vector<8x8xf32> to vector<1x8xf32>
    %98 = vector.broadcast %96 : vector<16x1xf32> to vector<16x8xf32>
    %99 = vector.broadcast %97 : vector<1x8xf32> to vector<16x8xf32>
    %100 = arith.mulf %98, %99 : vector<16x8xf32>
    %101 = arith.addf %91, %100 : vector<16x8xf32>
    %102 = vector.extract_strided_slice %79 {offsets = [2, 0], sizes = [1, 128], strides = [1, 1]} : vector<8x128xf32> to vector<1x128xf32>
    %103 = vector.broadcast %102 : vector<1x128xf32> to vector<16x128xf32>
    %104 = arith.addf %78, %103 : vector<16x128xf32>
    %cst_62 = arith.constant dense<0xFF800000> : vector<16xf32>
    %105 = vector.multi_reduction <maximumf>, %104, %cst_62 [1] : vector<16x128xf32> to vector<16xf32>
    %106 = vector.shape_cast %105 : vector<16xf32> to vector<16x1xf32>
    %107 = vector.extract_strided_slice %80 {offsets = [2, 0], sizes = [1, 8], strides = [1, 1]} : vector<8x8xf32> to vector<1x8xf32>
    %108 = vector.broadcast %106 : vector<16x1xf32> to vector<16x8xf32>
    %109 = vector.broadcast %107 : vector<1x8xf32> to vector<16x8xf32>
    %110 = arith.mulf %108, %109 : vector<16x8xf32>
    %111 = arith.addf %101, %110 : vector<16x8xf32>
    %112 = vector.extract_strided_slice %79 {offsets = [3, 0], sizes = [1, 128], strides = [1, 1]} : vector<8x128xf32> to vector<1x128xf32>
    %113 = vector.broadcast %112 : vector<1x128xf32> to vector<16x128xf32>
    %114 = arith.addf %78, %113 : vector<16x128xf32>
    %cst_63 = arith.constant dense<0xFF800000> : vector<16xf32>
    %115 = vector.multi_reduction <maximumf>, %114, %cst_63 [1] : vector<16x128xf32> to vector<16xf32>
    %116 = vector.shape_cast %115 : vector<16xf32> to vector<16x1xf32>
    %117 = vector.extract_strided_slice %80 {offsets = [3, 0], sizes = [1, 8], strides = [1, 1]} : vector<8x8xf32> to vector<1x8xf32>
    %118 = vector.broadcast %116 : vector<16x1xf32> to vector<16x8xf32>
    %119 = vector.broadcast %117 : vector<1x8xf32> to vector<16x8xf32>
    %120 = arith.mulf %118, %119 : vector<16x8xf32>
    %121 = arith.addf %111, %120 : vector<16x8xf32>
    %122 = vector.extract_strided_slice %79 {offsets = [4, 0], sizes = [1, 128], strides = [1, 1]} : vector<8x128xf32> to vector<1x128xf32>
    %123 = vector.broadcast %122 : vector<1x128xf32> to vector<16x128xf32>
    %124 = arith.addf %78, %123 : vector<16x128xf32>
    %cst_64 = arith.constant dense<0xFF800000> : vector<16xf32>
    %125 = vector.multi_reduction <maximumf>, %124, %cst_64 [1] : vector<16x128xf32> to vector<16xf32>
    %126 = vector.shape_cast %125 : vector<16xf32> to vector<16x1xf32>
    %127 = vector.extract_strided_slice %80 {offsets = [4, 0], sizes = [1, 8], strides = [1, 1]} : vector<8x8xf32> to vector<1x8xf32>
    %128 = vector.broadcast %126 : vector<16x1xf32> to vector<16x8xf32>
    %129 = vector.broadcast %127 : vector<1x8xf32> to vector<16x8xf32>
    %130 = arith.mulf %128, %129 : vector<16x8xf32>
    %131 = arith.addf %121, %130 : vector<16x8xf32>
    %132 = vector.extract_strided_slice %79 {offsets = [5, 0], sizes = [1, 128], strides = [1, 1]} : vector<8x128xf32> to vector<1x128xf32>
    %133 = vector.broadcast %132 : vector<1x128xf32> to vector<16x128xf32>
    %134 = arith.addf %78, %133 : vector<16x128xf32>
    %cst_65 = arith.constant dense<0xFF800000> : vector<16xf32>
    %135 = vector.multi_reduction <maximumf>, %134, %cst_65 [1] : vector<16x128xf32> to vector<16xf32>
    %136 = vector.shape_cast %135 : vector<16xf32> to vector<16x1xf32>
    %137 = vector.extract_strided_slice %80 {offsets = [5, 0], sizes = [1, 8], strides = [1, 1]} : vector<8x8xf32> to vector<1x8xf32>
    %138 = vector.broadcast %136 : vector<16x1xf32> to vector<16x8xf32>
    %139 = vector.broadcast %137 : vector<1x8xf32> to vector<16x8xf32>
    %140 = arith.mulf %138, %139 : vector<16x8xf32>
    %141 = arith.addf %131, %140 : vector<16x8xf32>
    %142 = vector.extract_strided_slice %79 {offsets = [6, 0], sizes = [1, 128], strides = [1, 1]} : vector<8x128xf32> to vector<1x128xf32>
    %143 = vector.broadcast %142 : vector<1x128xf32> to vector<16x128xf32>
    %144 = arith.addf %78, %143 : vector<16x128xf32>
    %cst_66 = arith.constant dense<0xFF800000> : vector<16xf32>
    %145 = vector.multi_reduction <maximumf>, %144, %cst_66 [1] : vector<16x128xf32> to vector<16xf32>
    %146 = vector.shape_cast %145 : vector<16xf32> to vector<16x1xf32>
    %147 = vector.extract_strided_slice %80 {offsets = [6, 0], sizes = [1, 8], strides = [1, 1]} : vector<8x8xf32> to vector<1x8xf32>
    %148 = vector.broadcast %146 : vector<16x1xf32> to vector<16x8xf32>
    %149 = vector.broadcast %147 : vector<1x8xf32> to vector<16x8xf32>
    %150 = arith.mulf %148, %149 : vector<16x8xf32>
    %151 = arith.addf %141, %150 : vector<16x8xf32>
    %152 = vector.extract_strided_slice %79 {offsets = [7, 0], sizes = [1, 128], strides = [1, 1]} : vector<8x128xf32> to vector<1x128xf32>
    %153 = vector.broadcast %152 : vector<1x128xf32> to vector<16x128xf32>
    %154 = arith.addf %78, %153 : vector<16x128xf32>
    %cst_67 = arith.constant dense<0xFF800000> : vector<16xf32>
    %155 = vector.multi_reduction <maximumf>, %154, %cst_67 [1] : vector<16x128xf32> to vector<16xf32>
    %156 = vector.shape_cast %155 : vector<16xf32> to vector<16x1xf32>
    %157 = vector.extract_strided_slice %80 {offsets = [7, 0], sizes = [1, 8], strides = [1, 1]} : vector<8x8xf32> to vector<1x8xf32>
    %158 = vector.broadcast %156 : vector<16x1xf32> to vector<16x8xf32>
    %159 = vector.broadcast %157 : vector<1x8xf32> to vector<16x8xf32>
    %160 = arith.mulf %158, %159 : vector<16x8xf32>
    %161 = arith.addf %151, %160 : vector<16x8xf32>
    %c0_68 = arith.constant 0 : index
    %c0_69 = arith.constant 0 : index
    %162 = vector.load %arg20[%c0_68, %c0_69] : memref<4x16xf32, #tpu.memory_space<vmem>>, vector<4x16xf32>
    %cst_70 = arith.constant dense<0.000000e+00> : vector<4x8xf32>
    %163 = tpu.matmul %162, %161, %cst_70 {dimension_numbers = #tpu.dot_dimension_numbers<[1], [0], [0], [1], [0, 0, 1, 1], [], []>} : vector<4x16xf32>, vector<16x8xf32>, vector<4x8xf32> -> vector<4x8xf32>
    %c0_71 = arith.constant 0 : index
    %c0_72 = arith.constant 0 : index
    %164 = vector.load %arg21[%c0_71, %c0_72] : memref<4x1xf32, #tpu.memory_space<vmem>>, vector<4x1xf32>
    %165 = vector.broadcast %164 : vector<4x1xf32> to vector<4x8xf32>
    %166 = arith.addf %163, %165 : vector<4x8xf32>
    %cst_73 = arith.constant 0.000000e+00 : f32
    %167 = vector.broadcast %cst_73 : f32 to vector<4x8xf32>
    %168 = arith.cmpf ogt, %166, %167 : vector<4x8xf32>
    %cst_74 = arith.constant 0.000000e+00 : f32
    %169 = vector.broadcast %cst_74 : f32 to vector<4x8xf32>
    %170 = arith.minimumf %166, %169 : vector<4x8xf32>
    %171 = math.exp %170 : vector<4x8xf32>
    %cst_75 = arith.constant 1.000000e+00 : f32
    %172 = vector.broadcast %cst_75 : f32 to vector<4x8xf32>
    %173 = arith.subf %171, %172 : vector<4x8xf32>
    %174 = arith.select %168, %166, %173 : vector<4x8xi1>, vector<4x8xf32>
    %c0_76 = arith.constant 0 : index
    %c0_77 = arith.constant 0 : index
    %175 = vector.load %arg22[%c0_76, %c0_77] : memref<16x4xf32, #tpu.memory_space<vmem>>, vector<16x4xf32>
    %cst_78 = arith.constant dense<0.000000e+00> : vector<16x8xf32>
    %176 = tpu.matmul %175, %174, %cst_78 {dimension_numbers = #tpu.dot_dimension_numbers<[1], [0], [0], [1], [0, 0, 1, 1], [], []>} : vector<16x4xf32>, vector<4x8xf32>, vector<16x8xf32> -> vector<16x8xf32>
    %c0_79 = arith.constant 0 : index
    %c0_80 = arith.constant 0 : index
    %177 = vector.load %arg23[%c0_79, %c0_80] : memref<16x1xf32, #tpu.memory_space<vmem>>, vector<16x1xf32>
    %178 = vector.broadcast %177 : vector<16x1xf32> to vector<16x8xf32>
    %179 = arith.addf %176, %178 : vector<16x8xf32>
    %cst_81 = arith.constant 5.000000e-01 : f32
    %180 = vector.broadcast %cst_81 : f32 to vector<16x8xf32>
    %181 = arith.mulf %180, %179 : vector<16x8xf32>
    %182 = math.tanh %181 : vector<16x8xf32>
    %cst_82 = arith.constant 1.000000e+00 : f32
    %183 = vector.broadcast %cst_82 : f32 to vector<16x8xf32>
    %184 = arith.addf %182, %183 : vector<16x8xf32>
    %cst_83 = arith.constant 5.000000e-01 : f32
    %185 = vector.broadcast %cst_83 : f32 to vector<16x8xf32>
    %186 = arith.mulf %185, %184 : vector<16x8xf32>
    %cst_84 = arith.constant dense<0.000000e+00> : vector<16x128xf32>
    %187 = tpu.matmul %186, %56, %cst_84 {dimension_numbers = #tpu.dot_dimension_numbers<[1], [0], [0], [1], [0, 0, 1, 1], [], []>} : vector<16x8xf32>, vector<8x128xf32>, vector<16x128xf32> -> vector<16x128xf32>
    %cst_85 = arith.constant 1.000000e+00 : f32
    %188 = vector.broadcast %cst_85 : f32 to vector<16x128xf32>
    %189 = arith.addf %188, %187 : vector<16x128xf32>
    %190 = arith.mulf %78, %189 : vector<16x128xf32>
    %c0_86 = arith.constant 0 : index
    %c0_87 = arith.constant 0 : index
    %c0_88 = arith.constant 0 : index
    %191 = vector.load %arg24[%c0_86, %c0_87, %c0_88] : memref<1x16x128xf32, #tpu.memory_space<vmem>>, vector<1x16x128xf32>
    %192 = vector.shape_cast %191 : vector<1x16x128xf32> to vector<16x128xf32>
    %193 = vector.shape_cast %190 : vector<16x128xf32> to vector<1x16x128xf32>
    tpu.vector_store %arg24[%c0_86, %c0_87, %c0_88], %193 {strides = array<i32>} : memref<1x16x128xf32, #tpu.memory_space<vmem>>, vector<1x16x128xf32>,
    return
  }
  func.func @transform_0(%arg0: i32) -> (i32, i32, i32) {
    %c0_i32 = arith.constant 0 : i32
    %c0_i32_0 = arith.constant 0 : i32
    %c0_i32_1 = arith.constant 0 : i32
    return %arg0, %c0_i32, %c0_i32_0 : i32, i32, i32
  }
  func.func @transform_1(%arg0: i32) -> (i32, i32) {
    %c0_i32 = arith.constant 0 : i32
    %c0_i32_0 = arith.constant 0 : i32
    %c0_i32_1 = arith.constant 0 : i32
    return %c0_i32, %c0_i32_0 : i32, i32
  }
  func.func @transform_2(%arg0: i32) -> (i32, i32) {
    %c0_i32 = arith.constant 0 : i32
    %c0_i32_0 = arith.constant 0 : i32
    %c0_i32_1 = arith.constant 0 : i32
    return %c0_i32, %c0_i32_0 : i32, i32
  }
  func.func @transform_3(%arg0: i32) -> (i32, i32) {
    %c0_i32 = arith.constant 0 : i32
    %c0_i32_0 = arith.constant 0 : i32
    %c0_i32_1 = arith.constant 0 : i32
    return %c0_i32, %c0_i32_0 : i32, i32
  }
  func.func @transform_4(%arg0: i32) -> (i32, i32) {
    %c0_i32 = arith.constant 0 : i32
    %c0_i32_0 = arith.constant 0 : i32
    %c0_i32_1 = arith.constant 0 : i32
    return %c0_i32, %c0_i32_0 : i32, i32
  }
  func.func @transform_5(%arg0: i32) -> (i32, i32) {
    %c0_i32 = arith.constant 0 : i32
    %c0_i32_0 = arith.constant 0 : i32
    %c0_i32_1 = arith.constant 0 : i32
    return %c0_i32, %c0_i32_0 : i32, i32
  }
  func.func @transform_6(%arg0: i32) -> (i32, i32) {
    %c0_i32 = arith.constant 0 : i32
    %c0_i32_0 = arith.constant 0 : i32
    %c0_i32_1 = arith.constant 0 : i32
    return %c0_i32, %c0_i32_0 : i32, i32
  }
  func.func @transform_7(%arg0: i32) -> (i32, i32) {
    %c0_i32 = arith.constant 0 : i32
    %c0_i32_0 = arith.constant 0 : i32
    %c0_i32_1 = arith.constant 0 : i32
    return %c0_i32, %c0_i32_0 : i32, i32
  }
  func.func @transform_8(%arg0: i32) -> (i32, i32) {
    %c0_i32 = arith.constant 0 : i32
    %c0_i32_0 = arith.constant 0 : i32
    %c0_i32_1 = arith.constant 0 : i32
    return %c0_i32, %c0_i32_0 : i32, i32
  }
  func.func @transform_9(%arg0: i32) -> (i32, i32) {
    %c0_i32 = arith.constant 0 : i32
    %c0_i32_0 = arith.constant 0 : i32
    %c0_i32_1 = arith.constant 0 : i32
    return %c0_i32, %c0_i32_0 : i32, i32
  }
  func.func @transform_10(%arg0: i32) -> (i32, i32) {
    %c0_i32 = arith.constant 0 : i32
    %c0_i32_0 = arith.constant 0 : i32
    %c0_i32_1 = arith.constant 0 : i32
    return %c0_i32, %c0_i32_0 : i32, i32
  }
  func.func @transform_11(%arg0: i32) -> (i32, i32) {
    %c0_i32 = arith.constant 0 : i32
    %c0_i32_0 = arith.constant 0 : i32
    %c0_i32_1 = arith.constant 0 : i32
    return %c0_i32, %c0_i32_0 : i32, i32
  }
  func.func @transform_12(%arg0: i32) -> (i32, i32) {
    %c0_i32 = arith.constant 0 : i32
    %c0_i32_0 = arith.constant 0 : i32
    %c0_i32_1 = arith.constant 0 : i32
    return %c0_i32, %c0_i32_0 : i32, i32
  }
  func.func @transform_13(%arg0: i32) -> (i32, i32) {
    %c0_i32 = arith.constant 0 : i32
    %c0_i32_0 = arith.constant 0 : i32
    %c0_i32_1 = arith.constant 0 : i32
    return %c0_i32, %c0_i32_0 : i32, i32
  }
  func.func @transform_14(%arg0: i32) -> (i32, i32) {
    %c0_i32 = arith.constant 0 : i32
    %c0_i32_0 = arith.constant 0 : i32
    %c0_i32_1 = arith.constant 0 : i32
    return %c0_i32, %c0_i32_0 : i32, i32
  }
  func.func @transform_15(%arg0: i32) -> (i32, i32) {
    %c0_i32 = arith.constant 0 : i32
    %c0_i32_0 = arith.constant 0 : i32
    %c0_i32_1 = arith.constant 0 : i32
    return %c0_i32, %c0_i32_0 : i32, i32
  }
  func.func @transform_16(%arg0: i32) -> (i32, i32) {
    %c0_i32 = arith.constant 0 : i32
    %c0_i32_0 = arith.constant 0 : i32
    %c0_i32_1 = arith.constant 0 : i32
    return %c0_i32, %c0_i32_0 : i32, i32
  }
  func.func @transform_17(%arg0: i32) -> (i32, i32) {
    %c0_i32 = arith.constant 0 : i32
    %c0_i32_0 = arith.constant 0 : i32
    %c0_i32_1 = arith.constant 0 : i32
    return %c0_i32, %c0_i32_0 : i32, i32
  }
  func.func @transform_18(%arg0: i32) -> (i32, i32) {
    %c0_i32 = arith.constant 0 : i32
    %c0_i32_0 = arith.constant 0 : i32
    %c0_i32_1 = arith.constant 0 : i32
    return %c0_i32, %c0_i32_0 : i32, i32
  }
  func.func @transform_19(%arg0: i32) -> (i32, i32) {
    %c0_i32 = arith.constant 0 : i32
    %c0_i32_0 = arith.constant 0 : i32
    %c0_i32_1 = arith.constant 0 : i32
    return %c0_i32, %c0_i32_0 : i32, i32
  }
  func.func @transform_20(%arg0: i32) -> (i32, i32) {
    %c0_i32 = arith.constant 0 : i32
    %c0_i32_0 = arith.constant 0 : i32
    %c0_i32_1 = arith.constant 0 : i32
    return %c0_i32, %c0_i32_0 : i32, i32
  }
  func.func @transform_21(%arg0: i32) -> (i32, i32) {
    %c0_i32 = arith.constant 0 : i32
    %c0_i32_0 = arith.constant 0 : i32
    %c0_i32_1 = arith.constant 0 : i32
    return %c0_i32, %c0_i32_0 : i32, i32
  }
  func.func @transform_22(%arg0: i32) -> (i32, i32) {
    %c0_i32 = arith.constant 0 : i32
    %c0_i32_0 = arith.constant 0 : i32
    %c0_i32_1 = arith.constant 0 : i32
    return %c0_i32, %c0_i32_0 : i32, i32
  }
  func.func @transform_23(%arg0: i32) -> (i32, i32, i32) {
    %c0_i32 = arith.constant 0 : i32
    %c0_i32_0 = arith.constant 0 : i32
    %c0_i32_1 = arith.constant 0 : i32
    return %arg0, %c0_i32, %c0_i32_0 : i32, i32, i32
  }
}

</mosaic_0001>

<llo_original>
// kernel: tpu_custom_call.1
$region0: #{tpu_custom_call.1}
  #allocation0 [shape = 'u32[]', space=smem, size = 0x4, offset = 0x4, fixed_abs, tag = 'smem constant byte address 0x4 - core index']
  #allocation1 [shape = 'u32[144,128]{1,0:T(1,128)}', space=vmem, size = 0x12000, scoped, tag = 'internal scratch']
  %s0 = inlined_call_operand.hbm [shape: f32[2,8,512], index: 0, kind: input, shape index: {}]
  %s1 = inlined_call_operand.vmem [shape: f32[16,24], index: 1, kind: input, shape index: {}]
  %s2 = inlined_call_operand.vmem [shape: f32[16,1], index: 2, kind: input, shape index: {}]
  %s3 = inlined_call_operand.vmem [shape: f32[16,48], index: 3, kind: input, shape index: {}]
  %s4 = inlined_call_operand.vmem [shape: f32[16,1], index: 4, kind: input, shape index: {}]
  %s5 = inlined_call_operand.hbm [shape: f32[1,512], index: 5, kind: input, shape index: {}]
  %s6 = inlined_call_operand.hbm [shape: f32[1,512], index: 6, kind: input, shape index: {}]
  %s7 = inlined_call_operand.hbm [shape: f32[1,256], index: 7, kind: input, shape index: {}]
  %s8 = inlined_call_operand.hbm [shape: f32[1,256], index: 8, kind: input, shape index: {}]
  %s9 = inlined_call_operand.hbm [shape: f32[512,256], index: 9, kind: input, shape index: {}]
  %s10 = inlined_call_operand.vmem [shape: f32[256,128], index: 10, kind: input, shape index: {}]
  %s11 = inlined_call_operand.vmem [shape: f32[128,8], index: 11, kind: input, shape index: {}]
  %s12 = inlined_call_operand.vmem [shape: f32[8,128], index: 12, kind: input, shape index: {}]
  %s13 = inlined_call_operand.vmem [shape: f32[8,128], index: 13, kind: input, shape index: {}]
  %s14 = inlined_call_operand.vmem [shape: f32[8,8], index: 14, kind: input, shape index: {}]
  %s15 = inlined_call_operand.hbm [shape: f32[2,16], index: 15, kind: input, shape index: {}]
  %s16 = inlined_call_operand.vmem [shape: f32[16,2], index: 16, kind: input, shape index: {}]
  %s17 = inlined_call_operand.vmem [shape: f32[16,1], index: 17, kind: input, shape index: {}]
  %s18 = inlined_call_operand.vmem [shape: f32[16,1], index: 18, kind: input, shape index: {}]
  %s19 = inlined_call_operand.vmem [shape: f32[4,16], index: 19, kind: input, shape index: {}]
  %s20 = inlined_call_operand.vmem [shape: f32[4,1], index: 20, kind: input, shape index: {}]
  %s21 = inlined_call_operand.vmem [shape: f32[16,4], index: 21, kind: input, shape index: {}]
  %s22 = inlined_call_operand.vmem [shape: f32[16,1], index: 22, kind: input, shape index: {}]
  %s23 = inlined_call_operand.hbm [shape: f32[2,16,128], index: 23, kind: output, shape index: {}]
  %s24 = sld [smem:[#allocation0]]
  $region153: #{tpu_custom_call.1} parent=0
    _
  %s26 = ssub.s32 1, %s24
  %s27 = scalar_select 0, %s26, %s24
  $region1: #{tpu_custom_call.1} parent=0
    #allocation2 [shape = 'u8[32768]{0}', space=vmem, size = 0x8000, scoped, tag = 'input window, operand 0']
    #allocation3 [shape = 's32[2]{0}', space=sflag, size = 0x8, scoped, tag = 'scoped memory for tpu_custom_call.1']
    #allocation4 [shape = 's32[2]{0}', space=sflag, size = 0x8, scoped, tag = 'scoped memory for tpu_custom_call.1']
    #allocation5 [shape = 'u8[2048]{0}', space=vmem, size = 0x800, scoped, tag = 'input window, operand 5, single buffered']
    #allocation6 [shape = 's32[1]{0}', space=sflag, size = 0x4, scoped, tag = 'scoped memory for tpu_custom_call.1']
    #allocation7 [shape = 'u8[2048]{0}', space=vmem, size = 0x800, scoped, tag = 'input window, operand 6, single buffered']
    #allocation8 [shape = 'u8[1024]{0}', space=vmem, size = 0x400, scoped, tag = 'input window, operand 7, single buffered']
    #allocation9 [shape = 's32[1]{0}', space=sflag, size = 0x4, scoped, tag = 'scoped memory for tpu_custom_call.1']
    #allocation10 [shape = 'u8[1024]{0}', space=vmem, size = 0x400, scoped, tag = 'input window, operand 8, single buffered']
    #allocation11 [shape = 'u8[524288]{0}', space=vmem, size = 0x80000, scoped, tag = 'input window, operand 9, single buffered']
    #allocation12 [shape = 's32[1]{0}', space=sflag, size = 0x4, scoped, tag = 'scoped memory for tpu_custom_call.1']
    #allocation13 [shape = 'u8[1024]{0}', space=vmem, size = 0x400, scoped, tag = 'input window, operand 15, single buffered']
    #allocation14 [shape = 'u8[16384]{0}', space=vmem, size = 0x4000, scoped, tag = 'output window, operand 0']
    %28 = vsyncpa [#allocation3], 0
    %s29 = scalar_lea.sflag [#allocation3], 1
    %30 = vsyncpa %s29, 0
    %31 = vsyncpa [#allocation6], 0
    %32 = vsyncpa [#allocation9], 0
    %33 = vsyncpa [#allocation12], 0
    %34 = vsyncpa [#allocation4], 0
    %s35 = scalar_lea.sflag [#allocation4], 1
    %36 = vsyncpa %s35, 0
    loop: start=0, step=1, limit=4
    $region2: #{tpu_custom_call.1} parent=1 // loop_pre_header
      _
    $region3: #{tpu_custom_call.1} parent=1 // loop_header
      %s38 = sphi 0, %s42
      %p39 = scmp.ge.s32.totalorder %s38, 4
      %s48 = sphi 0, %s50
      %s51 = sphi 0, %s48
      %s52 = sphi 0, %s51
      %s68 = sphi 0, %s52
      %s72 = sphi 0, %s72
      %s74 = sphi 0, %s72
      %s75 = sphi 0, %s74
      %s89 = sphi 0, %s75
      %s93 = sphi 0, %s93
      %s95 = sphi 0, %s93
      %s96 = sphi 0, %s95
      %s110 = sphi 0, %s96
      %s114 = sphi 0, %s114
      %s116 = sphi 0, %s114
      %s117 = sphi 0, %s116
      %s131 = sphi 0, %s117
      %s135 = sphi 0, %s135
      %s137 = sphi 0, %s135
      %s138 = sphi 0, %s137
      %s152 = sphi 0, %s138
      %s156 = sphi 0, %s156
      %s158 = sphi 0, %s156
      %s159 = sphi 0, %s158
      %s173 = sphi 0, %s159
      %s177 = sphi 0, %s177
      %s179 = sphi 0, %s177
      %s180 = sphi 0, %s179
      %s194 = sphi 0, %s180
      %s198 = sphi 0, %s198
      %s200 = sphi 0, %s198
      %s201 = sphi 0, %s200
      %s215 = sphi 0, %s201
      %s219 = sphi 0, %s219
      %s221 = sphi 0, %s219
      %s222 = sphi 0, %s221
      %s236 = sphi 0, %s222
      %s240 = sphi 0, %s240
      %s242 = sphi 0, %s240
      %s243 = sphi 0, %s242
      %s257 = sphi 0, %s243
      %s261 = sphi 0, %s261
      %s263 = sphi 0, %s261
      %s264 = sphi 0, %s263
      %s278 = sphi 0, %s264
      %s282 = sphi 0, %s282
      %s284 = sphi 0, %s282
      %s285 = sphi 0, %s284
      %s299 = sphi 0, %s285
      %s303 = sphi 0, %s303
      %s305 = sphi 0, %s303
      %s306 = sphi 0, %s305
      %s320 = sphi 0, %s306
      %s324 = sphi 0, %s324
      %s326 = sphi 0, %s324
      %s327 = sphi 0, %s326
      %s341 = sphi 0, %s327
      %s345 = sphi 0, %s345
      %s347 = sphi 0, %s345
      %s348 = sphi 0, %s347
      %s362 = sphi 0, %s348
      %s366 = sphi 0, %s366
      %s368 = sphi 0, %s366
      %s369 = sphi 0, %s368
      %s383 = sphi 0, %s369
      %s387 = sphi 0, %s387
      %s389 = sphi 0, %s387
      %s390 = sphi 0, %s389
      %s404 = sphi 0, %s390
      %s408 = sphi 0, %s408
      %s410 = sphi 0, %s408
      %s411 = sphi 0, %s410
      %s425 = sphi 0, %s411
      %s429 = sphi 0, %s429
      %s431 = sphi 0, %s429
      %s432 = sphi 0, %s431
      %s446 = sphi 0, %s432
      %s450 = sphi 0, %s450
      %s452 = sphi 0, %s450
      %s453 = sphi 0, %s452
      %s467 = sphi 0, %s453
      %s471 = sphi 0, %s471
      %s473 = sphi 0, %s471
      %s474 = sphi 0, %s473
      %s488 = sphi 0, %s474
      %s492 = sphi 0, %s492
      %s494 = sphi 0, %s492
      %s495 = sphi 0, %s494
      %s509 = sphi 0, %s495
      %s513 = sphi 0, %s513
      %s515 = sphi 0, %s513
      %s516 = sphi 0, %s515
      %s530 = sphi 0, %s516
      %s536 = sphi 0, %s538
      %s539 = sphi 0, %s536
      %s540 = sphi 0, %s539
      %s556 = sphi 0, %s540
    $region4: #{tpu_custom_call.1} parent=1 // loop_header_branch
      %41 = sbr.rel (%p39) target = $region8
    $region5: #{tpu_custom_call.1} parent=1 // loop_body
      %s43 = ssub.s32 %s38, 1
      %s44 = ssub.s32 %s38, 2
      %s45 = sadd.s32 %s38, 1
      %s46 = ssub.s32 %s38, %s45
      %p47 = scmp.eq.s32.totalorder %s46, 0
      %s49 = sadd.s32 %s48, 1
      %s50 = scalar_select %p47, %s48, %s49
      %p53 = pneg %p47
      %p54 = scmp.eq.s32.totalorder %s38, 1
      %p55 = por %p53, %p54
      %p56 = scmp.ne.s32.totalorder %s48, %s51
      %p57 = scmp.eq.s32.totalorder %s38, 0
      %p58 = por %p56, %p57
      %p59 = scmp.ne.s32.totalorder %s48, %s51
      %p60 = scmp.eq.s32.totalorder %s43, 1
      %p61 = por %p59, %p60
      %p62 = scmp.ne.s32.totalorder %s51, %s52
      %p63 = scmp.eq.s32.totalorder %s43, 0
      %p64 = por %p62, %p63
      %p65 = scmp.ne.s32.totalorder %s51, %s52
      %p66 = scmp.eq.s32.totalorder %s44, 1
      %p67 = por %p65, %p66
      %p69 = scmp.ne.s32.totalorder %s52, %s68
      %p70 = scmp.eq.s32.totalorder %s44, 0
      %p71 = por %p69, %p70
      %s73 = sadd.s32 %s72, 1
      %p76 = scmp.eq.s32.totalorder %s38, 1
      %p77 = scmp.ne.s32.totalorder %s72, %s74
      %p78 = scmp.eq.s32.totalorder %s38, 0
      %p79 = por %p77, %p78
      %p80 = scmp.ne.s32.totalorder %s72, %s74
      %p81 = scmp.eq.s32.totalorder %s43, 1
      %p82 = por %p80, %p81
      %p83 = scmp.ne.s32.totalorder %s74, %s75
      %p84 = scmp.eq.s32.totalorder %s43, 0
      %p85 = por %p83, %p84
      %p86 = scmp.ne.s32.totalorder %s74, %s75
      %p87 = scmp.eq.s32.totalorder %s44, 1
      %p88 = por %p86, %p87
      %p90 = scmp.ne.s32.totalorder %s75, %s89
      %p91 = scmp.eq.s32.totalorder %s44, 0
      %p92 = por %p90, %p91
      %s94 = sadd.s32 %s93, 1
      %p97 = scmp.eq.s32.totalorder %s38, 1
      %p98 = scmp.ne.s32.totalorder %s93, %s95
      %p99 = scmp.eq.s32.totalorder %s38, 0
      %p100 = por %p98, %p99
      %p101 = scmp.ne.s32.totalorder %s93, %s95
      %p102 = scmp.eq.s32.totalorder %s43, 1
      %p103 = por %p101, %p102
      %p104 = scmp.ne.s32.totalorder %s95, %s96
      %p105 = scmp.eq.s32.totalorder %s43, 0
      %p106 = por %p104, %p105
      %p107 = scmp.ne.s32.totalorder %s95, %s96
      %p108 = scmp.eq.s32.totalorder %s44, 1
      %p109 = por %p107, %p108
      %p111 = scmp.ne.s32.totalorder %s96, %s110
      %p112 = scmp.eq.s32.totalorder %s44, 0
      %p113 = por %p111, %p112
      %s115 = sadd.s32 %s114, 1
      %p118 = scmp.eq.s32.totalorder %s38, 1
      %p119 = scmp.ne.s32.totalorder %s114, %s116
      %p120 = scmp.eq.s32.totalorder %s38, 0
      %p121 = por %p119, %p120
      %p122 = scmp.ne.s32.totalorder %s114, %s116
      %p123 = scmp.eq.s32.totalorder %s43, 1
      %p124 = por %p122, %p123
      %p125 = scmp.ne.s32.totalorder %s116, %s117
      %p126 = scmp.eq.s32.totalorder %s43, 0
      %p127 = por %p125, %p126
      %p128 = scmp.ne.s32.totalorder %s116, %s117
      %p129 = scmp.eq.s32.totalorder %s44, 1
      %p130 = por %p128, %p129
      %p132 = scmp.ne.s32.totalorder %s117, %s131
      %p133 = scmp.eq.s32.totalorder %s44, 0
      %p134 = por %p132, %p133
      %s136 = sadd.s32 %s135, 1
      %p139 = scmp.eq.s32.totalorder %s38, 1
      %p140 = scmp.ne.s32.totalorder %s135, %s137
      %p141 = scmp.eq.s32.totalorder %s38, 0
      %p142 = por %p140, %p141
      %p143 = scmp.ne.s32.totalorder %s135, %s137
      %p144 = scmp.eq.s32.totalorder %s43, 1
      %p145 = por %p143, %p144
      %p146 = scmp.ne.s32.totalorder %s137, %s138
      %p147 = scmp.eq.s32.totalorder %s43, 0
      %p148 = por %p146, %p147
      %p149 = scmp.ne.s32.totalorder %s137, %s138
      %p150 = scmp.eq.s32.totalorder %s44, 1
      %p151 = por %p149, %p150
      %p153 = scmp.ne.s32.totalorder %s138, %s152
      %p154 = scmp.eq.s32.totalorder %s44, 0
      %p155 = por %p153, %p154
      %s157 = sadd.s32 %s156, 1
      %p160 = scmp.eq.s32.totalorder %s38, 1
      %p161 = scmp.ne.s32.totalorder %s156, %s158
      %p162 = scmp.eq.s32.totalorder %s38, 0
      %p163 = por %p161, %p162
      %p164 = scmp.ne.s32.totalorder %s156, %s158
      %p165 = scmp.eq.s32.totalorder %s43, 1
      %p166 = por %p164, %p165
      %p167 = scmp.ne.s32.totalorder %s158, %s159
      %p168 = scmp.eq.s32.totalorder %s43, 0
      %p169 = por %p167, %p168
      %p170 = scmp.ne.s32.totalorder %s158, %s159
      %p171 = scmp.eq.s32.totalorder %s44, 1
      %p172 = por %p170, %p171
      %p174 = scmp.ne.s32.totalorder %s159, %s173
      %p175 = scmp.eq.s32.totalorder %s44, 0
      %p176 = por %p174, %p175
      %s178 = sadd.s32 %s177, 1
      %p181 = scmp.eq.s32.totalorder %s38, 1
      %p182 = scmp.ne.s32.totalorder %s177, %s179
      %p183 = scmp.eq.s32.totalorder %s38, 0
      %p184 = por %p182, %p183
      %p185 = scmp.ne.s32.totalorder %s177, %s179
      %p186 = scmp.eq.s32.totalorder %s43, 1
      %p187 = por %p185, %p186
      %p188 = scmp.ne.s32.totalorder %s179, %s180
      %p189 = scmp.eq.s32.totalorder %s43, 0
      %p190 = por %p188, %p189
      %p191 = scmp.ne.s32.totalorder %s179, %s180
      %p192 = scmp.eq.s32.totalorder %s44, 1
      %p193 = por %p191, %p192
      %p195 = scmp.ne.s32.totalorder %s180, %s194
      %p196 = scmp.eq.s32.totalorder %s44, 0
      %p197 = por %p195, %p196
      %s199 = sadd.s32 %s198, 1
      %p202 = scmp.eq.s32.totalorder %s38, 1
      %p203 = scmp.ne.s32.totalorder %s198, %s200
      %p204 = scmp.eq.s32.totalorder %s38, 0
      %p205 = por %p203, %p204
      %p206 = scmp.ne.s32.totalorder %s198, %s200
      %p207 = scmp.eq.s32.totalorder %s43, 1
      %p208 = por %p206, %p207
      %p209 = scmp.ne.s32.totalorder %s200, %s201
      %p210 = scmp.eq.s32.totalorder %s43, 0
      %p211 = por %p209, %p210
      %p212 = scmp.ne.s32.totalorder %s200, %s201
      %p213 = scmp.eq.s32.totalorder %s44, 1
      %p214 = por %p212, %p213
      %p216 = scmp.ne.s32.totalorder %s201, %s215
      %p217 = scmp.eq.s32.totalorder %s44, 0
      %p218 = por %p216, %p217
      %s220 = sadd.s32 %s219, 1
      %p223 = scmp.eq.s32.totalorder %s38, 1
      %p224 = scmp.ne.s32.totalorder %s219, %s221
      %p225 = scmp.eq.s32.totalorder %s38, 0
      %p226 = por %p224, %p225
      %p227 = scmp.ne.s32.totalorder %s219, %s221
      %p228 = scmp.eq.s32.totalorder %s43, 1
      %p229 = por %p227, %p228
      %p230 = scmp.ne.s32.totalorder %s221, %s222
      %p231 = scmp.eq.s32.totalorder %s43, 0
      %p232 = por %p230, %p231
      %p233 = scmp.ne.s32.totalorder %s221, %s222
      %p234 = scmp.eq.s32.totalorder %s44, 1
      %p235 = por %p233, %p234
      %p237 = scmp.ne.s32.totalorder %s222, %s236
      %p238 = scmp.eq.s32.totalorder %s44, 0
      %p239 = por %p237, %p238
      %s241 = sadd.s32 %s240, 1
      %p244 = scmp.eq.s32.totalorder %s38, 1
      %p245 = scmp.ne.s32.totalorder %s240, %s242
      %p246 = scmp.eq.s32.totalorder %s38, 0
      %p247 = por %p245, %p246
      %p248 = scmp.ne.s32.totalorder %s240, %s242
      %p249 = scmp.eq.s32.totalorder %s43, 1
      %p250 = por %p248, %p249
      %p251 = scmp.ne.s32.totalorder %s242, %s243
      %p252 = scmp.eq.s32.totalorder %s43, 0
      %p253 = por %p251, %p252
      %p254 = scmp.ne.s32.totalorder %s242, %s243
      %p255 = scmp.eq.s32.totalorder %s44, 1
      %p256 = por %p254, %p255
      %p258 = scmp.ne.s32.totalorder %s243, %s257
      %p259 = scmp.eq.s32.totalorder %s44, 0
      %p260 = por %p258, %p259
      %s262 = sadd.s32 %s261, 1
      %p265 = scmp.eq.s32.totalorder %s38, 1
      %p266 = scmp.ne.s32.totalorder %s261, %s263
      %p267 = scmp.eq.s32.totalorder %s38, 0
      %p268 = por %p266, %p267
      %p269 = scmp.ne.s32.totalorder %s261, %s263
      %p270 = scmp.eq.s32.totalorder %s43, 1
      %p271 = por %p269, %p270
      %p272 = scmp.ne.s32.totalorder %s263, %s264
      %p273 = scmp.eq.s32.totalorder %s43, 0
      %p274 = por %p272, %p273
      %p275 = scmp.ne.s32.totalorder %s263, %s264
      %p276 = scmp.eq.s32.totalorder %s44, 1
      %p277 = por %p275, %p276
      %p279 = scmp.ne.s32.totalorder %s264, %s278
      %p280 = scmp.eq.s32.totalorder %s44, 0
      %p281 = por %p279, %p280
      %s283 = sadd.s32 %s282, 1
      %p286 = scmp.eq.s32.totalorder %s38, 1
      %p287 = scmp.ne.s32.totalorder %s282, %s284
      %p288 = scmp.eq.s32.totalorder %s38, 0
      %p289 = por %p287, %p288
      %p290 = scmp.ne.s32.totalorder %s282, %s284
      %p291 = scmp.eq.s32.totalorder %s43, 1
      %p292 = por %p290, %p291
      %p293 = scmp.ne.s32.totalorder %s284, %s285
      %p294 = scmp.eq.s32.totalorder %s43, 0
      %p295 = por %p293, %p294
      %p296 = scmp.ne.s32.totalorder %s284, %s285
      %p297 = scmp.eq.s32.totalorder %s44, 1
      %p298 = por %p296, %p297
      %p300 = scmp.ne.s32.totalorder %s285, %s299
      %p301 = scmp.eq.s32.totalorder %s44, 0
      %p302 = por %p300, %p301
      %s304 = sadd.s32 %s303, 1
      %p307 = scmp.eq.s32.totalorder %s38, 1
      %p308 = scmp.ne.s32.totalorder %s303, %s305
      %p309 = scmp.eq.s32.totalorder %s38, 0
      %p310 = por %p308, %p309
      %p311 = scmp.ne.s32.totalorder %s303, %s305
      %p312 = scmp.eq.s32.totalorder %s43, 1
      %p313 = por %p311, %p312
      %p314 = scmp.ne.s32.totalorder %s305, %s306
      %p315 = scmp.eq.s32.totalorder %s43, 0
      %p316 = por %p314, %p315
      %p317 = scmp.ne.s32.totalorder %s305, %s306
      %p318 = scmp.eq.s32.totalorder %s44, 1
      %p319 = por %p317, %p318
      %p321 = scmp.ne.s32.totalorder %s306, %s320
      %p322 = scmp.eq.s32.totalorder %s44, 0
      %p323 = por %p321, %p322
      %s325 = sadd.s32 %s324, 1
      %p328 = scmp.eq.s32.totalorder %s38, 1
      %p329 = scmp.ne.s32.totalorder %s324, %s326
      %p330 = scmp.eq.s32.totalorder %s38, 0
      %p331 = por %p329, %p330
      %p332 = scmp.ne.s32.totalorder %s324, %s326
      %p333 = scmp.eq.s32.totalorder %s43, 1
      %p334 = por %p332, %p333
      %p335 = scmp.ne.s32.totalorder %s326, %s327
      %p336 = scmp.eq.s32.totalorder %s43, 0
      %p337 = por %p335, %p336
      %p338 = scmp.ne.s32.totalorder %s326, %s327
      %p339 = scmp.eq.s32.totalorder %s44, 1
      %p340 = por %p338, %p339
      %p342 = scmp.ne.s32.totalorder %s327, %s341
      %p343 = scmp.eq.s32.totalorder %s44, 0
      %p344 = por %p342, %p343
      %s346 = sadd.s32 %s345, 1
      %p349 = scmp.eq.s32.totalorder %s38, 1
      %p350 = scmp.ne.s32.totalorder %s345, %s347
      %p351 = scmp.eq.s32.totalorder %s38, 0
      %p352 = por %p350, %p351
      %p353 = scmp.ne.s32.totalorder %s345, %s347
      %p354 = scmp.eq.s32.totalorder %s43, 1
      %p355 = por %p353, %p354
      %p356 = scmp.ne.s32.totalorder %s347, %s348
      %p357 = scmp.eq.s32.totalorder %s43, 0
      %p358 = por %p356, %p357
      %p359 = scmp.ne.s32.totalorder %s347, %s348
      %p360 = scmp.eq.s32.totalorder %s44, 1
      %p361 = por %p359, %p360
      %p363 = scmp.ne.s32.totalorder %s348, %s362
      %p364 = scmp.eq.s32.totalorder %s44, 0
      %p365 = por %p363, %p364
      %s367 = sadd.s32 %s366, 1
      %p370 = scmp.eq.s32.totalorder %s38, 1
      %p371 = scmp.ne.s32.totalorder %s366, %s368
      %p372 = scmp.eq.s32.totalorder %s38, 0
      %p373 = por %p371, %p372
      %p374 = scmp.ne.s32.totalorder %s366, %s368
      %p375 = scmp.eq.s32.totalorder %s43, 1
      %p376 = por %p374, %p375
      %p377 = scmp.ne.s32.totalorder %s368, %s369
      %p378 = scmp.eq.s32.totalorder %s43, 0
      %p379 = por %p377, %p378
      %p380 = scmp.ne.s32.totalorder %s368, %s369
      %p381 = scmp.eq.s32.totalorder %s44, 1
      %p382 = por %p380, %p381
      %p384 = scmp.ne.s32.totalorder %s369, %s383
      %p385 = scmp.eq.s32.totalorder %s44, 0
      %p386 = por %p384, %p385
      %s388 = sadd.s32 %s387, 1
      %p391 = scmp.eq.s32.totalorder %s38, 1
      %p392 = scmp.ne.s32.totalorder %s387, %s389
      %p393 = scmp.eq.s32.totalorder %s38, 0
      %p394 = por %p392, %p393
      %p395 = scmp.ne.s32.totalorder %s387, %s389
      %p396 = scmp.eq.s32.totalorder %s43, 1
      %p397 = por %p395, %p396
      %p398 = scmp.ne.s32.totalorder %s389, %s390
      %p399 = scmp.eq.s32.totalorder %s43, 0
      %p400 = por %p398, %p399
      %p401 = scmp.ne.s32.totalorder %s389, %s390
      %p402 = scmp.eq.s32.totalorder %s44, 1
      %p403 = por %p401, %p402
      %p405 = scmp.ne.s32.totalorder %s390, %s404
      %p406 = scmp.eq.s32.totalorder %s44, 0
      %p407 = por %p405, %p406
      %s409 = sadd.s32 %s408, 1
      %p412 = scmp.eq.s32.totalorder %s38, 1
      %p413 = scmp.ne.s32.totalorder %s408, %s410
      %p414 = scmp.eq.s32.totalorder %s38, 0
      %p415 = por %p413, %p414
      %p416 = scmp.ne.s32.totalorder %s408, %s410
      %p417 = scmp.eq.s32.totalorder %s43, 1
      %p418 = por %p416, %p417
      %p419 = scmp.ne.s32.totalorder %s410, %s411
      %p420 = scmp.eq.s32.totalorder %s43, 0
      %p421 = por %p419, %p420
      %p422 = scmp.ne.s32.totalorder %s410, %s411
      %p423 = scmp.eq.s32.totalorder %s44, 1
      %p424 = por %p422, %p423
      %p426 = scmp.ne.s32.totalorder %s411, %s425
      %p427 = scmp.eq.s32.totalorder %s44, 0
      %p428 = por %p426, %p427
      %s430 = sadd.s32 %s429, 1
      %p433 = scmp.eq.s32.totalorder %s38, 1
      %p434 = scmp.ne.s32.totalorder %s429, %s431
      %p435 = scmp.eq.s32.totalorder %s38, 0
      %p436 = por %p434, %p435
      %p437 = scmp.ne.s32.totalorder %s429, %s431
      %p438 = scmp.eq.s32.totalorder %s43, 1
      %p439 = por %p437, %p438
      %p440 = scmp.ne.s32.totalorder %s431, %s432
      %p441 = scmp.eq.s32.totalorder %s43, 0
      %p442 = por %p440, %p441
      %p443 = scmp.ne.s32.totalorder %s431, %s432
      %p444 = scmp.eq.s32.totalorder %s44, 1
      %p445 = por %p443, %p444
      %p447 = scmp.ne.s32.totalorder %s432, %s446
      %p448 = scmp.eq.s32.totalorder %s44, 0
      %p449 = por %p447, %p448
      %s451 = sadd.s32 %s450, 1
      %p454 = scmp.eq.s32.totalorder %s38, 1
      %p455 = scmp.ne.s32.totalorder %s450, %s452
      %p456 = scmp.eq.s32.totalorder %s38, 0
      %p457 = por %p455, %p456
      %p458 = scmp.ne.s32.totalorder %s450, %s452
      %p459 = scmp.eq.s32.totalorder %s43, 1
      %p460 = por %p458, %p459
      %p461 = scmp.ne.s32.totalorder %s452, %s453
      %p462 = scmp.eq.s32.totalorder %s43, 0
      %p463 = por %p461, %p462
      %p464 = scmp.ne.s32.totalorder %s452, %s453
      %p465 = scmp.eq.s32.totalorder %s44, 1
      %p466 = por %p464, %p465
      %p468 = scmp.ne.s32.totalorder %s453, %s467
      %p469 = scmp.eq.s32.totalorder %s44, 0
      %p470 = por %p468, %p469
      %s472 = sadd.s32 %s471, 1
      %p475 = scmp.eq.s32.totalorder %s38, 1
      %p476 = scmp.ne.s32.totalorder %s471, %s473
      %p477 = scmp.eq.s32.totalorder %s38, 0
      %p478 = por %p476, %p477
      %p479 = scmp.ne.s32.totalorder %s471, %s473
      %p480 = scmp.eq.s32.totalorder %s43, 1
      %p481 = por %p479, %p480
      %p482 = scmp.ne.s32.totalorder %s473, %s474
      %p483 = scmp.eq.s32.totalorder %s43, 0
      %p484 = por %p482, %p483
      %p485 = scmp.ne.s32.totalorder %s473, %s474
      %p486 = scmp.eq.s32.totalorder %s44, 1
      %p487 = por %p485, %p486
      %p489 = scmp.ne.s32.totalorder %s474, %s488
      %p490 = scmp.eq.s32.totalorder %s44, 0
      %p491 = por %p489, %p490
      %s493 = sadd.s32 %s492, 1
      %p496 = scmp.eq.s32.totalorder %s38, 1
      %p497 = scmp.ne.s32.totalorder %s492, %s494
      %p498 = scmp.eq.s32.totalorder %s38, 0
      %p499 = por %p497, %p498
      %p500 = scmp.ne.s32.totalorder %s492, %s494
      %p501 = scmp.eq.s32.totalorder %s43, 1
      %p502 = por %p500, %p501
      %p503 = scmp.ne.s32.totalorder %s494, %s495
      %p504 = scmp.eq.s32.totalorder %s43, 0
      %p505 = por %p503, %p504
      %p506 = scmp.ne.s32.totalorder %s494, %s495
      %p507 = scmp.eq.s32.totalorder %s44, 1
      %p508 = por %p506, %p507
      %p510 = scmp.ne.s32.totalorder %s495, %s509
      %p511 = scmp.eq.s32.totalorder %s44, 0
      %p512 = por %p510, %p511
      %s514 = sadd.s32 %s513, 1
      %p517 = scmp.eq.s32.totalorder %s38, 1
      %p518 = scmp.ne.s32.totalorder %s513, %s515
      %p519 = scmp.eq.s32.totalorder %s38, 0
      %p520 = por %p518, %p519
      %p521 = scmp.ne.s32.totalorder %s513, %s515
      %p522 = scmp.eq.s32.totalorder %s43, 1
      %p523 = por %p521, %p522
      %p524 = scmp.ne.s32.totalorder %s515, %s516
      %p525 = scmp.eq.s32.totalorder %s43, 0
      %p526 = por %p524, %p525
      %p527 = scmp.ne.s32.totalorder %s515, %s516
      %p528 = scmp.eq.s32.totalorder %s44, 1
      %p529 = por %p527, %p528
      %p531 = scmp.ne.s32.totalorder %s516, %s530
      %p532 = scmp.eq.s32.totalorder %s44, 0
      %p533 = por %p531, %p532
      %s534 = ssub.s32 %s38, %s45
      %p535 = scmp.eq.s32.totalorder %s534, 0
      %s537 = sadd.s32 %s536, 1
      %s538 = scalar_select %p535, %s536, %s537
      %p541 = pneg %p535
      %p542 = scmp.eq.s32.totalorder %s38, 1
      %p543 = por %p541, %p542
      %p544 = scmp.ne.s32.totalorder %s536, %s539
      %p545 = scmp.eq.s32.totalorder %s38, 0
      %p546 = por %p544, %p545
      %p547 = scmp.ne.s32.totalorder %s536, %s539
      %p548 = scmp.eq.s32.totalorder %s43, 1
      %p549 = por %p547, %p548
      %p550 = scmp.ne.s32.totalorder %s539, %s540
      %p551 = scmp.eq.s32.totalorder %s43, 0
      %p552 = por %p550, %p551
      %p553 = scmp.ne.s32.totalorder %s539, %s540
      %p554 = scmp.eq.s32.totalorder %s44, 1
      %p555 = por %p553, %p554
      %p557 = scmp.ne.s32.totalorder %s540, %s556
      %p558 = scmp.eq.s32.totalorder %s44, 0
      %p559 = por %p557, %p558
      %p560 = scmp.le.s32.totalorder 1, %s38
      %p561 = scmp.lt.s32.totalorder %s38, 3
      %p562 = pnand %p560, %p561
      %p563 = pneg %p562
      // Predicated region
      $region9: #{tpu_custom_call.1} parent=5 // pred_check
        _
      $region10: #{tpu_custom_call.1} parent=5 // pred_check_branch
        %565 = sbr.rel (%p562) target = $region12
      $region11: #{tpu_custom_call.1} parent=5 // pred_region
        %s566 = ssub.s32 %s38, 1
        // Predicated region
        $region13: #{tpu_custom_call.1} parent=11 // pred_check
          %p567 = pneg %p85
        $region14: #{tpu_custom_call.1} parent=11 // pred_check_branch
          %569 = sbr.rel (%p567) target = $region16
        $region15: #{tpu_custom_call.1} parent=11 // pred_region
          _
        $region16: #{tpu_custom_call.1} parent=11 // pred_fallthru
          _
        // Predicated region
        $region17: #{tpu_custom_call.1} parent=11 // pred_check
          %p570 = pneg %p106
        $region18: #{tpu_custom_call.1} parent=11 // pred_check_branch
          %572 = sbr.rel (%p570) target = $region20
        $region19: #{tpu_custom_call.1} parent=11 // pred_region
          _
        $region20: #{tpu_custom_call.1} parent=11 // pred_fallthru
          _
        // Predicated region
        $region21: #{tpu_custom_call.1} parent=11 // pred_check
          %p573 = pneg %p127
        $region22: #{tpu_custom_call.1} parent=11 // pred_check_branch
          %575 = sbr.rel (%p573) target = $region24
        $region23: #{tpu_custom_call.1} parent=11 // pred_region
          _
        $region24: #{tpu_custom_call.1} parent=11 // pred_fallthru
          _
        // Predicated region
        $region25: #{tpu_custom_call.1} parent=11 // pred_check
          %p576 = pneg %p148
        $region26: #{tpu_custom_call.1} parent=11 // pred_check_branch
          %578 = sbr.rel (%p576) target = $region28
        $region27: #{tpu_custom_call.1} parent=11 // pred_region
          _
        $region28: #{tpu_custom_call.1} parent=11 // pred_fallthru
          _
        // Predicated region
        $region29: #{tpu_custom_call.1} parent=11 // pred_check
          %p579 = pneg %p169
        $region30: #{tpu_custom_call.1} parent=11 // pred_check_branch
          %581 = sbr.rel (%p579) target = $region32
        $region31: #{tpu_custom_call.1} parent=11 // pred_region
          %s583 = ssub.s32 64, 64
          %584 = vsyncadd [#allocation6], %s583
          %s586 = sshll.u32 [#allocation5], 4
          %s587 = int_to_ptr.vmem [resolvable:$true] %s586
          %589 = dma.hbm_to_vmem [thread:$0]  %s5, 64, %s587, [#allocation6]
        $region32: #{tpu_custom_call.1} parent=11 // pred_fallthru
          _
        // Predicated region
        $region33: #{tpu_custom_call.1} parent=11 // pred_check
          %p590 = pneg %p190
        $region34: #{tpu_custom_call.1} parent=11 // pred_check_branch
          %592 = sbr.rel (%p590) target = $region36
        $region35: #{tpu_custom_call.1} parent=11 // pred_region
          %s594 = ssub.s32 64, 64
          %595 = vsyncadd [#allocation6], %s594
          %s597 = sshll.u32 [#allocation7], 4
          %s598 = int_to_ptr.vmem [resolvable:$true] %s597
          %600 = dma.hbm_to_vmem [thread:$0]  %s6, 64, %s598, [#allocation6]
        $region36: #{tpu_custom_call.1} parent=11 // pred_fallthru
          _
        // Predicated region
        $region37: #{tpu_custom_call.1} parent=11 // pred_check
          %p601 = pneg %p211
        $region38: #{tpu_custom_call.1} parent=11 // pred_check_branch
          %603 = sbr.rel (%p601) target = $region40
        $region39: #{tpu_custom_call.1} parent=11 // pred_region
          %s605 = ssub.s32 32, 32
          %606 = vsyncadd [#allocation9], %s605
          %s608 = sshll.u32 [#allocation8], 4
          %s609 = int_to_ptr.vmem [resolvable:$true] %s608
          %611 = dma.hbm_to_vmem [thread:$0]  %s7, 32, %s609, [#allocation9]
        $region40: #{tpu_custom_call.1} parent=11 // pred_fallthru
          _
        // Predicated region
        $region41: #{tpu_custom_call.1} parent=11 // pred_check
          %p612 = pneg %p232
        $region42: #{tpu_custom_call.1} parent=11 // pred_check_branch
          %614 = sbr.rel (%p612) target = $region44
        $region43: #{tpu_custom_call.1} parent=11 // pred_region
          %s616 = ssub.s32 32, 32
          %617 = vsyncadd [#allocation9], %s616
          %s619 = sshll.u32 [#allocation10], 4
          %s620 = int_to_ptr.vmem [resolvable:$true] %s619
          %622 = dma.hbm_to_vmem [thread:$0]  %s8, 32, %s620, [#allocation9]
        $region44: #{tpu_custom_call.1} parent=11 // pred_fallthru
          _
        // Predicated region
        $region45: #{tpu_custom_call.1} parent=11 // pred_check
          %p623 = pneg %p253
        $region46: #{tpu_custom_call.1} parent=11 // pred_check_branch
          %625 = sbr.rel (%p623) target = $region48
        $region47: #{tpu_custom_call.1} parent=11 // pred_region
          %s627 = ssub.s32 16384, 16384
          %628 = vsyncadd [#allocation12], %s627
          %s629 = sshll.u32 [#allocation11], 4
          %s630 = int_to_ptr.vmem [resolvable:$true] %s629
          %635 = dma.hbm_to_vmem [thread:$0]  %s9, 16384, %s630, [#allocation12], 256, 256, 16
        $region48: #{tpu_custom_call.1} parent=11 // pred_fallthru
          _
        // Predicated region
        $region49: #{tpu_custom_call.1} parent=11 // pred_check
          %p636 = pneg %p274
        $region50: #{tpu_custom_call.1} parent=11 // pred_check_branch
          %638 = sbr.rel (%p636) target = $region52
        $region51: #{tpu_custom_call.1} parent=11 // pred_region
          _
        $region52: #{tpu_custom_call.1} parent=11 // pred_fallthru
          _
        // Predicated region
        $region53: #{tpu_custom_call.1} parent=11 // pred_check
          %p639 = pneg %p295
        $region54: #{tpu_custom_call.1} parent=11 // pred_check_branch
          %641 = sbr.rel (%p639) target = $region56
        $region55: #{tpu_custom_call.1} parent=11 // pred_region
          _
        $region56: #{tpu_custom_call.1} parent=11 // pred_fallthru
          _
        // Predicated region
        $region57: #{tpu_custom_call.1} parent=11 // pred_check
          %p642 = pneg %p316
        $region58: #{tpu_custom_call.1} parent=11 // pred_check_branch
          %644 = sbr.rel (%p642) target = $region60
        $region59: #{tpu_custom_call.1} parent=11 // pred_region
          _
        $region60: #{tpu_custom_call.1} parent=11 // pred_fallthru
          _
        // Predicated region
        $region61: #{tpu_custom_call.1} parent=11 // pred_check
          %p645 = pneg %p337
        $region62: #{tpu_custom_call.1} parent=11 // pred_check_branch
          %647 = sbr.rel (%p645) target = $region64
        $region63: #{tpu_custom_call.1} parent=11 // pred_region
          _
        $region64: #{tpu_custom_call.1} parent=11 // pred_fallthru
          _
        // Predicated region
        $region65: #{tpu_custom_call.1} parent=11 // pred_check
          %p648 = pneg %p358
        $region66: #{tpu_custom_call.1} parent=11 // pred_check_branch
          %650 = sbr.rel (%p648) target = $region68
        $region67: #{tpu_custom_call.1} parent=11 // pred_region
          _
        $region68: #{tpu_custom_call.1} parent=11 // pred_fallthru
          _
        // Predicated region
        $region69: #{tpu_custom_call.1} parent=11 // pred_check
          %p651 = pneg %p379
        $region70: #{tpu_custom_call.1} parent=11 // pred_check_branch
          %653 = sbr.rel (%p651) target = $region72
        $region71: #{tpu_custom_call.1} parent=11 // pred_region
          %s655 = ssub.s32 32, 32
          %656 = vsyncadd [#allocation12], %s655
          %s658 = sshll.u32 [#allocation13], 4
          %s659 = int_to_ptr.vmem [resolvable:$true] %s658
          %661 = dma.hbm_to_vmem [thread:$0]  %s15, 32, %s659, [#allocation12]
        $region72: #{tpu_custom_call.1} parent=11 // pred_fallthru
          _
        // Predicated region
        $region73: #{tpu_custom_call.1} parent=11 // pred_check
          %p662 = pneg %p400
        $region74: #{tpu_custom_call.1} parent=11 // pred_check_branch
          %664 = sbr.rel (%p662) target = $region76
        $region75: #{tpu_custom_call.1} parent=11 // pred_region
          _
        $region76: #{tpu_custom_call.1} parent=11 // pred_fallthru
          _
        // Predicated region
        $region77: #{tpu_custom_call.1} parent=11 // pred_check
          %p665 = pneg %p421
        $region78: #{tpu_custom_call.1} parent=11 // pred_check_branch
          %667 = sbr.rel (%p665) target = $region80
        $region79: #{tpu_custom_call.1} parent=11 // pred_region
          _
        $region80: #{tpu_custom_call.1} parent=11 // pred_fallthru
          _
        // Predicated region
        $region81: #{tpu_custom_call.1} parent=11 // pred_check
          %p668 = pneg %p442
        $region82: #{tpu_custom_call.1} parent=11 // pred_check_branch
          %670 = sbr.rel (%p668) target = $region84
        $region83: #{tpu_custom_call.1} parent=11 // pred_region
          _
        $region84: #{tpu_custom_call.1} parent=11 // pred_fallthru
          _
        // Predicated region
        $region85: #{tpu_custom_call.1} parent=11 // pred_check
          %p671 = pneg %p463
        $region86: #{tpu_custom_call.1} parent=11 // pred_check_branch
          %673 = sbr.rel (%p671) target = $region88
        $region87: #{tpu_custom_call.1} parent=11 // pred_region
          _
        $region88: #{tpu_custom_call.1} parent=11 // pred_fallthru
          _
        // Predicated region
        $region89: #{tpu_custom_call.1} parent=11 // pred_check
          %p674 = pneg %p484
        $region90: #{tpu_custom_call.1} parent=11 // pred_check_branch
          %676 = sbr.rel (%p674) target = $region92
        $region91: #{tpu_custom_call.1} parent=11 // pred_region
          _
        $region92: #{tpu_custom_call.1} parent=11 // pred_fallthru
          _
        // Predicated region
        $region93: #{tpu_custom_call.1} parent=11 // pred_check
          %p677 = pneg %p505
        $region94: #{tpu_custom_call.1} parent=11 // pred_check_branch
          %679 = sbr.rel (%p677) target = $region96
        $region95: #{tpu_custom_call.1} parent=11 // pred_region
          _
        $region96: #{tpu_custom_call.1} parent=11 // pred_fallthru
          _
        // Predicated region
        $region97: #{tpu_custom_call.1} parent=11 // pred_check
          %p680 = pneg %p526
        $region98: #{tpu_custom_call.1} parent=11 // pred_check_branch
          %682 = sbr.rel (%p680) target = $region100
        $region99: #{tpu_custom_call.1} parent=11 // pred_region
          _
        $region100: #{tpu_custom_call.1} parent=11 // pred_fallthru
          _
      $region12: #{tpu_custom_call.1} parent=5 // pred_fallthru
        _
      %p683 = scmp.lt.s32.totalorder %s38, 2
      // Predicated region
      $region101: #{tpu_custom_call.1} parent=5 // pred_check
        %p684 = pneg %p683
      $region102: #{tpu_custom_call.1} parent=5 // pred_check_branch
        %686 = sbr.rel (%p684) target = $region104
      $region103: #{tpu_custom_call.1} parent=5 // pred_region
        // Predicated region
        $region105: #{tpu_custom_call.1} parent=103 // pred_check
          %p687 = pneg %p58
        $region106: #{tpu_custom_call.1} parent=103 // pred_check_branch
          %689 = sbr.rel (%p687) target = $region108
        $region107: #{tpu_custom_call.1} parent=103 // pred_region
          %s690 = sand.u32 %s48, 1
          %s691 = scalar_lea.sflag [#allocation3], %s690
          %s692 = sand.u32 %s48, 1
          %s693 = smul.addr %s692, 32
          %s694 = scalar_lea.vmem [#allocation2], %s693
          %s696 = ssub.s32 512, 512
          %697 = vsyncadd %s691, %s696
          %s698 = smul.addr %s38, 4
          %s699 = smul.addr %s698, 128
          %s700 = scalar_lea.hbm %s0, %s699
          %s702 = sshll.u32 %s694, 4
          %s703 = int_to_ptr.vmem [resolvable:$true] %s702
          %705 = dma.hbm_to_vmem [thread:$0]  %s700, 512, %s703, %s691
        $region108: #{tpu_custom_call.1} parent=103 // pred_fallthru
          _
      $region104: #{tpu_custom_call.1} parent=5 // pred_fallthru
        _
      %p706 = scmp.le.s32.totalorder 1, %s38
      %p707 = scmp.lt.s32.totalorder %s38, 3
      %p708 = pnand %p706, %p707
      %p709 = pneg %p708
      // Predicated region
      $region109: #{tpu_custom_call.1} parent=5 // pred_check
        _
      $region110: #{tpu_custom_call.1} parent=5 // pred_check_branch
        %711 = sbr.rel (%p708) target = $region112
      $region111: #{tpu_custom_call.1} parent=5 // pred_region
        %s712 = ssub.s32 %s38, 1
        %s713 = sand.u32 %s51, 1
        %s714 = scalar_lea.sflag [#allocation3], %s713
        %s715 = sand.u32 %s51, 1
        %s716 = smul.addr %s715, 32
        %s717 = scalar_lea.vmem [#allocation2], %s716
        // Predicated region
        $region113: #{tpu_custom_call.1} parent=111 // pred_check
          %p718 = pneg %p64
        $region114: #{tpu_custom_call.1} parent=111 // pred_check_branch
          %720 = sbr.rel (%p718) target = $region116
        $region115: #{tpu_custom_call.1} parent=111 // pred_region
          %721 = dma.done %s714, 512
        $region116: #{tpu_custom_call.1} parent=111 // pred_fallthru
          _
        // Predicated region
        $region117: #{tpu_custom_call.1} parent=111 // pred_check
          %p722 = pneg %p169
        $region118: #{tpu_custom_call.1} parent=111 // pred_check_branch
          %724 = sbr.rel (%p722) target = $region120
        $region119: #{tpu_custom_call.1} parent=111 // pred_region
          %725 = dma.done [#allocation6], 64
        $region120: #{tpu_custom_call.1} parent=111 // pred_fallthru
          _
        // Predicated region
        $region121: #{tpu_custom_call.1} parent=111 // pred_check
          %p726 = pneg %p190
        $region122: #{tpu_custom_call.1} parent=111 // pred_check_branch
          %728 = sbr.rel (%p726) target = $region124
        $region123: #{tpu_custom_call.1} parent=111 // pred_region
          %729 = dma.done [#allocation6], 64
        $region124: #{tpu_custom_call.1} parent=111 // pred_fallthru
          _
        // Predicated region
        $region125: #{tpu_custom_call.1} parent=111 // pred_check
          %p730 = pneg %p211
        $region126: #{tpu_custom_call.1} parent=111 // pred_check_branch
          %732 = sbr.rel (%p730) target = $region128
        $region127: #{tpu_custom_call.1} parent=111 // pred_region
          %733 = dma.done [#allocation9], 32
        $region128: #{tpu_custom_call.1} parent=111 // pred_fallthru
          _
        // Predicated region
        $region129: #{tpu_custom_call.1} parent=111 // pred_check
          %p734 = pneg %p232
        $region130: #{tpu_custom_call.1} parent=111 // pred_check_branch
          %736 = sbr.rel (%p734) target = $region132
        $region131: #{tpu_custom_call.1} parent=111 // pred_region
          %737 = dma.done [#allocation9], 32
        $region132: #{tpu_custom_call.1} parent=111 // pred_fallthru
          _
        // Predicated region
        $region133: #{tpu_custom_call.1} parent=111 // pred_check
          %p738 = pneg %p253
        $region134: #{tpu_custom_call.1} parent=111 // pred_check_branch
          %740 = sbr.rel (%p738) target = $region136
        $region135: #{tpu_custom_call.1} parent=111 // pred_region
          %741 = dma.done [#allocation12], 16384
        $region136: #{tpu_custom_call.1} parent=111 // pred_fallthru
          _
        // Predicated region
        $region137: #{tpu_custom_call.1} parent=111 // pred_check
          %p742 = pneg %p379
        $region138: #{tpu_custom_call.1} parent=111 // pred_check_branch
          %744 = sbr.rel (%p742) target = $region140
        $region139: #{tpu_custom_call.1} parent=111 // pred_region
          %745 = dma.done [#allocation12], 32
        $region140: #{tpu_custom_call.1} parent=111 // pred_fallthru
          _
        %s746 = sand.u32 %s51, 1
        %s747 = scalar_lea.sflag [#allocation3], %s746
        %s748 = sand.u32 %s51, 1
        %s749 = smul.addr %s748, 32
        %s750 = scalar_lea.vmem [#allocation2], %s749
        %p751 = pneg %p64
        %p752 = pneg %p61
        %p753 = pneg %p85
        %p754 = pneg %p82
        %p755 = pneg %p106
        %p756 = pneg %p103
        %p757 = pneg %p127
        %p758 = pneg %p124
        %p759 = pneg %p148
        %p760 = pneg %p145
        %p761 = pneg %p169
        %p762 = pneg %p166
        %p763 = pneg %p190
        %p764 = pneg %p187
        %p765 = pneg %p211
        %p766 = pneg %p208
        %p767 = pneg %p232
        %p768 = pneg %p229
        %p769 = pneg %p253
        %p770 = pneg %p250
        %p771 = pneg %p274
        %p772 = pneg %p271
        %p773 = pneg %p295
        %p774 = pneg %p292
        %p775 = pneg %p316
        %p776 = pneg %p313
        %p777 = pneg %p337
        %p778 = pneg %p334
        %p779 = pneg %p358
        %p780 = pneg %p355
        %p781 = pneg %p379
        %p782 = pneg %p376
        %p783 = pneg %p400
        %p784 = pneg %p397
        %p785 = pneg %p421
        %p786 = pneg %p418
        %p787 = pneg %p442
        %p788 = pneg %p439
        %p789 = pneg %p463
        %p790 = pneg %p460
        %p791 = pneg %p484
        %p792 = pneg %p481
        %p793 = pneg %p505
        %p794 = pneg %p502
        %p795 = pneg %p526
        %p796 = pneg %p523
        %p797 = pneg %p552
        %p798 = pneg %p549
        %s799 = sand.u32 %s539, 1
        %s800 = scalar_lea.sflag [#allocation4], %s799
        %s801 = sand.u32 %s539, 1
        %s802 = smul.addr %s801, 16
        %s803 = scalar_lea.vmem [#allocation14], %s802
        %v804 = vld [vmem:[%s717] sm:$0xff]
        %v805 = vld [vmem:[%s717 + $0x8] sm:$0xff]
        %v806 = vld [vmem:[%s717 + $0x10] sm:$0xff]
        %v807 = vld [vmem:[%s717 + $0x18] sm:$0xff]
        %v808 = vld [vmem:[#allocation5] sm:$0xf]
        %v809 = vld [vmem:[#allocation7] sm:$0xf]
        %810 = vrot.lane.b32.xlu0 %v804, 1
        %v811 = vpop.permute.xlu0 %810
        %812 = vrot.lane.b32.xlu0 %v805, 1
        %v813 = vpop.permute.xlu0 %812
        %814 = vrot.lane.b32.xlu0 %v806, 1
        %v815 = vpop.permute.xlu0 %814
        %816 = vrot.lane.b32.xlu0 %v807, 1
        %v817 = vpop.permute.xlu0 %816
        %v818 = vlaneseq
        %v819 = vand.u32 %v818, 127
        %vm820 = vcmp.lt.s32.totalorder %v819, 1
        %v821 = vsel %vm820, %v815, %v817
        %v822 = vsel %vm820, %v813, %v815
        %v823 = vsel %vm820, %v811, %v813
        %v824 = vsel %vm820, %v817, %v811
        %v826 = vlaneseq
        %v827 = vshrl.u32 %v826, 7
        %v828 = vsub.s32 0, %v827
        %v829 = vrot.slane %v808, %v828
        %v830 = vlaneseq
        %v831 = vshrl.u32 %v830, 7
        %v832 = vsub.s32 1, %v831
        %v833 = vrot.slane %v808, %v832
        %v834 = vlaneseq
        %v835 = vshrl.u32 %v834, 7
        %v836 = vsub.s32 2, %v835
        %v837 = vrot.slane %v808, %v836
        %v838 = vlaneseq
        %v839 = vshrl.u32 %v838, 7
        %v840 = vsub.s32 3, %v839
        %v841 = vrot.slane %v808, %v840
        %v846 = vmul.f32 %v824, %v829
        %v847 = vmul.f32 %v823, %v833
        %v848 = vmul.f32 %v822, %v837
        %v849 = vmul.f32 %v821, %v841
        %850 = vrot.lane.b32.xlu0 %v804, 127
        %v851 = vpop.permute.xlu0 %850
        %852 = vrot.lane.b32.xlu0 %v805, 127
        %v853 = vpop.permute.xlu0 %852
        %854 = vrot.lane.b32.xlu0 %v806, 127
        %v855 = vpop.permute.xlu0 %854
        %856 = vrot.lane.b32.xlu0 %v807, 127
        %v857 = vpop.permute.xlu0 %856
        %vm858 = vcmp.lt.s32.totalorder %v819, 127
        %v859 = vsel %vm858, %v855, %v857
        %v860 = vsel %vm858, %v853, %v855
        %v861 = vsel %vm858, %v851, %v853
        %v862 = vsel %vm858, %v857, %v851
        %v864 = vlaneseq
        %v865 = vshrl.u32 %v864, 7
        %v866 = vsub.s32 0, %v865
        %v867 = vrot.slane %v809, %v866
        %v868 = vlaneseq
        %v869 = vshrl.u32 %v868, 7
        %v870 = vsub.s32 1, %v869
        %v871 = vrot.slane %v809, %v870
        %v872 = vlaneseq
        %v873 = vshrl.u32 %v872, 7
        %v874 = vsub.s32 2, %v873
        %v875 = vrot.slane %v809, %v874
        %v876 = vlaneseq
        %v877 = vshrl.u32 %v876, 7
        %v878 = vsub.s32 3, %v877
        %v879 = vrot.slane %v809, %v878
        %v884 = vmul.f32 %v861, %v867
        %v885 = vmul.f32 %v860, %v871
        %v886 = vmul.f32 %v859, %v875
        %v887 = vmul.f32 %v862, %v879
        %v888 = vld [vmem:[%s1] sm:$0xff]
        %v889 = vld [vmem:[%s1 + $0x8] sm:$0xff]
        %v890 = vld [vmem:[%s2] sm:$0xff]
        %v891 = vld [vmem:[%s2 + $0x8] sm:$0xff]
        %893 = vset.pattern.permute.xlu0 0
        %894 = vperm.xlu0 %893, %v890
        %v895 = vpop.permute.xlu0 %894
        %898 = vset.pattern.permute.xlu0 0
        %899 = vperm.xlu0 %898, %v891
        %v900 = vpop.permute.xlu0 %899
        %vm902 = vcmask 195584
        %v904 = vsel %vm902, %v888, 0
        %v907 = vsel %vm902, %v889, 0
        %909 = vmatprep.subr.mxu0 %v847
        %910 = vmatpush1.msra.mxu0 %v846
        %911 = vmatprep.subr.mxu0 %v805
        %912 = vmatpush1.msra.mxu0 %v804
        %913 = vmatprep.subr.mxu0 %v885
        %914 = vmatpush1.msra.mxu0 %v884
        %915 = vmatprep.subr.mxu0 0.0
        %916 = vmatpush1.msra.mxu0 0.0
        %917 = vmatprep.subr.mxu0 0.0
        %918 = vmatpush1.msra.mxu0 0.0
        %919 = vmatprep.subr.mxu0 0.0
        %920 = vmatpush1.msra.mxu0 0.0
        %921 = vmatprep.subr.mxu0 0.0
        %922 = vmatpush1.msra.mxu0 0.0
        %923 = vmatprep.subr.mxu0 0.0
        %924 = vmatpush1.msra.mxu0 0.0
        %925 = vmatprep.subr.mxu0 0.0
        %926 = vmatpush1.msra.mxu0 0.0
        %927 = vmatprep.subr.mxu0 0.0
        %928 = vmatpush1.msra.mxu0 0.0
        %929 = vmatprep.subr.mxu0 0.0
        %930 = vmatpush1.msra.mxu0 0.0
        %931 = vmatprep.subr.mxu0 0.0
        %932 = vmatpush1.msra.mxu0 0.0
        %933 = vmatprep.subr.mxu0 0.0
        %934 = vmatpush1.msra.mxu0 0.0
        %935 = vmatprep.subr.mxu0 0.0
        %936 = vmatpush1.msra.mxu0 0.0
        %937 = vmatprep.subr.mxu0 0.0
        %938 = vmatpush1.msra.mxu0 0.0
        %939 = vmatprep.subr.mxu0 0.0
        %940 = vmatpush1.msra.mxu0 0.0
        %941 = vmatprep.subr.mxu0 0.0
        %942 = vmatpush1.msra.mxu0 0.0
        %943 = vmatprep.subr.mxu0 0.0
        %944 = vmatpush1.msra.mxu0 0.0
        %945 = vmatprep.subr.mxu0 0.0
        %946 = vmatpush1.msra.mxu0 0.0
        %947 = vmatprep.subr.mxu0 0.0
        %948 = vmatpush1.msra.mxu0 0.0
        %949 = vmatprep.subr.mxu0 0.0
        %950 = vmatpush1.msra.mxu0 0.0
        %951 = vmatprep.subr.mxu0 0.0
        %952 = vmatpush1.msra.mxu0 0.0
        %953 = vmatprep.subr.mxu0 0.0
        %954 = vmatpush1.msra.mxu0 0.0
        %955 = vmatprep.subr.mxu0 0.0
        %956 = vmatpush1.msra.mxu0 0.0
        %957 = vmatprep.subr.mxu0 0.0
        %958 = vmatpush1.msra.mxu0 0.0
        %959 = vmatprep.subr.mxu0 0.0
        %960 = vmatpush1.msra.mxu0 0.0
        %961 = vmatprep.subr.mxu0 0.0
        %962 = vmatpush1.msra.mxu0 0.0
        %963 = vmatprep.subr.mxu0 0.0
        %964 = vmatpush1.msra.mxu0 0.0
        %965 = vmatprep.subr.mxu0 0.0
        %966 = vmatpush1.msra.mxu0 0.0
        %967 = vmatprep.subr.mxu0 0.0
        %968 = vmatpush1.msra.mxu0 0.0
        %969 = vmatprep.subr.mxu0 0.0
        %970 = vmatpush1.msra.mxu0 0.0
        %971 = vmatprep.subr.mxu0 0.0
        %972 = vmatpush1.msra.mxu0 0.0
        %973 = vmatprep.mubr.f32.mxu0 0.0
        %974 = vmatmul.mubr.f32.gmra.mrb[0].mxu0 %v904
        %v975 = vpop.f32.mrb[0].mxu0
        %v976 = vadd.f32 %v895, %v975
        %v977 = vpop.f32.mrb[0].mxu0
        %v978 = vadd.f32 %v895, %v977
        %979 = vmatprep.mubr.f32.mxu0 0.0
        %980 = vmatmul.mubr.f32.gmra.mrb[0].mxu0 %v907
        %v981 = vpop.f32.mrb[0].mxu0
        %v982 = vadd.f32 %v900, %v981
        %v983 = vpop.f32.mrb[0].mxu0
        %v984 = vadd.f32 %v900, %v983
        %985 = vdwg.mxu0
        %986 = vmatprep.subr.mxu0 %v849
        %987 = vmatpush1.msra.mxu0 %v848
        %988 = vmatprep.subr.mxu0 %v807
        %989 = vmatpush1.msra.mxu0 %v806
        %990 = vmatprep.subr.mxu0 %v887
        %991 = vmatpush1.msra.mxu0 %v886
        %992 = vmatprep.subr.mxu0 0.0
        %993 = vmatpush1.msra.mxu0 0.0
        %994 = vmatprep.subr.mxu0 0.0
        %995 = vmatpush1.msra.mxu0 0.0
        %996 = vmatprep.subr.mxu0 0.0
        %997 = vmatpush1.msra.mxu0 0.0
        %998 = vmatprep.subr.mxu0 0.0
        %999 = vmatpush1.msra.mxu0 0.0
        %1000 = vmatprep.subr.mxu0 0.0
        %1001 = vmatpush1.msra.mxu0 0.0
        %1002 = vmatprep.subr.mxu0 0.0
        %1003 = vmatpush1.msra.mxu0 0.0
        %1004 = vmatprep.subr.mxu0 0.0
        %1005 = vmatpush1.msra.mxu0 0.0
        %1006 = vmatprep.subr.mxu0 0.0
        %1007 = vmatpush1.msra.mxu0 0.0
        %1008 = vmatprep.subr.mxu0 0.0
        %1009 = vmatpush1.msra.mxu0 0.0
        %1010 = vmatprep.subr.mxu0 0.0
        %1011 = vmatpush1.msra.mxu0 0.0
        %1012 = vmatprep.subr.mxu0 0.0
        %1013 = vmatpush1.msra.mxu0 0.0
        %1014 = vmatprep.subr.mxu0 0.0
        %1015 = vmatpush1.msra.mxu0 0.0
        %1016 = vmatprep.subr.mxu0 0.0
        %1017 = vmatpush1.msra.mxu0 0.0
        %1018 = vmatprep.subr.mxu0 0.0
        %1019 = vmatpush1.msra.mxu0 0.0
        %1020 = vmatprep.subr.mxu0 0.0
        %1021 = vmatpush1.msra.mxu0 0.0
        %1022 = vmatprep.subr.mxu0 0.0
        %1023 = vmatpush1.msra.mxu0 0.0
        %1024 = vmatprep.subr.mxu0 0.0
        %1025 = vmatpush1.msra.mxu0 0.0
        %1026 = vmatprep.subr.mxu0 0.0
        %1027 = vmatpush1.msra.mxu0 0.0
        %1028 = vmatprep.subr.mxu0 0.0
        %1029 = vmatpush1.msra.mxu0 0.0
        %1030 = vmatprep.subr.mxu0 0.0
        %1031 = vmatpush1.msra.mxu0 0.0
        %1032 = vmatprep.subr.mxu0 0.0
        %1033 = vmatpush1.msra.mxu0 0.0
        %1034 = vmatprep.subr.mxu0 0.0
        %1035 = vmatpush1.msra.mxu0 0.0
        %1036 = vmatprep.subr.mxu0 0.0
        %1037 = vmatpush1.msra.mxu0 0.0
        %1038 = vmatprep.subr.mxu0 0.0
        %1039 = vmatpush1.msra.mxu0 0.0
        %1040 = vmatprep.subr.mxu0 0.0
        %1041 = vmatpush1.msra.mxu0 0.0
        %1042 = vmatprep.subr.mxu0 0.0
        %1043 = vmatpush1.msra.mxu0 0.0
        %1044 = vmatprep.subr.mxu0 0.0
        %1045 = vmatpush1.msra.mxu0 0.0
        %1046 = vmatprep.subr.mxu0 0.0
        %1047 = vmatpush1.msra.mxu0 0.0
        %1048 = vmatprep.subr.mxu0 0.0
        %1049 = vmatpush1.msra.mxu0 0.0
        %1050 = vmatprep.mubr.f32.mxu0 0.0
        %1051 = vmatmul.mubr.f32.gmra.mrb[0].mxu0 %v904
        %v1052 = vpop.f32.mrb[0].mxu0
        %v1053 = vadd.f32 %v895, %v1052
        %v1054 = vpop.f32.mrb[0].mxu0
        %v1055 = vadd.f32 %v895, %v1054
        %1056 = vmatprep.mubr.f32.mxu0 0.0
        %1057 = vmatmul.mubr.f32.gmra.mrb[0].mxu0 %v907
        %v1058 = vpop.f32.mrb[0].mxu0
        %v1059 = vadd.f32 %v900, %v1058
        %v1060 = vpop.f32.mrb[0].mxu0
        %v1061 = vadd.f32 %v900, %v1060
        %1062 = vdwg.mxu0
        %vm1063 = vcmp.gt.f32.partialorder %v976, 0.0
        %vm1064 = vcmp.gt.f32.partialorder %v978, 0.0
        %vm1065 = vcmp.gt.f32.partialorder %v1053, 0.0
        %vm1066 = vcmp.gt.f32.partialorder %v1055, 0.0
        %vm1067 = vcmp.gt.f32.partialorder %v982, 0.0
        %vm1068 = vcmp.gt.f32.partialorder %v984, 0.0
        %vm1069 = vcmp.gt.f32.partialorder %v1059, 0.0
        %vm1070 = vcmp.gt.f32.partialorder %v1061, 0.0
        %v1071 = vmin.f32 %v976, 0.0
        %v1072 = vmin.f32 %v978, 0.0
        %v1073 = vmin.f32 %v1053, 0.0
        %v1074 = vmin.f32 %v1055, 0.0
        %v1075 = vmin.f32 %v982, 0.0
        %v1076 = vmin.f32 %v984, 0.0
        %v1077 = vmin.f32 %v1059, 0.0
        %v1078 = vmin.f32 %v1061, 0.0
        %v1079 = vmul.f32 %v1071, 1.442695
        %v1080 = vpow.pop %v1079
        %v1081 = vmul.f32 %v1072, 1.442695
        %v1082 = vpow.pop %v1081
        %v1083 = vmul.f32 %v1073, 1.442695
        %v1084 = vpow.pop %v1083
        %v1085 = vmul.f32 %v1074, 1.442695
        %v1086 = vpow.pop %v1085
        %v1087 = vmul.f32 %v1075, 1.442695
        %v1088 = vpow.pop %v1087
        %v1089 = vmul.f32 %v1076, 1.442695
        %v1090 = vpow.pop %v1089
        %v1091 = vmul.f32 %v1077, 1.442695
        %v1092 = vpow.pop %v1091
        %v1093 = vmul.f32 %v1078, 1.442695
        %v1094 = vpow.pop %v1093
        %v1095 = vsub.f32 %v1080, 1.0
        %v1096 = vsub.f32 %v1082, 1.0
        %v1097 = vsub.f32 %v1084, 1.0
        %v1098 = vsub.f32 %v1086, 1.0
        %v1099 = vsub.f32 %v1088, 1.0
        %v1100 = vsub.f32 %v1090, 1.0
        %v1101 = vsub.f32 %v1092, 1.0
        %v1102 = vsub.f32 %v1094, 1.0
        %v1103 = vsel %vm1063, %v976, %v1095
        %v1104 = vsel %vm1064, %v978, %v1096
        %v1105 = vsel %vm1065, %v1053, %v1097
        %v1106 = vsel %vm1066, %v1055, %v1098
        %v1107 = vsel %vm1067, %v982, %v1099
        %v1108 = vsel %vm1068, %v984, %v1100
        %v1109 = vsel %vm1069, %v1059, %v1101
        %v1110 = vsel %vm1070, %v1061, %v1102
        %v1111 = vld [vmem:[#allocation11] sm:$0xff]
        %v1112 = vld [vmem:[#allocation11 + $0x8] sm:$0xff]
        %v1113 = vld [vmem:[#allocation11 + $0x10] sm:$0xff]
        %v1114 = vld [vmem:[#allocation11 + $0x18] sm:$0xff]
        %v1115 = vld [vmem:[#allocation11 + $0x20] sm:$0xff]
        %v1116 = vld [vmem:[#allocation11 + $0x28] sm:$0xff]
        %v1117 = vld [vmem:[#allocation11 + $0x30] sm:$0xff]
        %v1118 = vld [vmem:[#allocation11 + $0x38] sm:$0xff]
        %v1119 = vld [vmem:[#allocation11 + $0x40] sm:$0xff]
        %v1120 = vld [vmem:[#allocation11 + $0x48] sm:$0xff]
        %v1121 = vld [vmem:[#allocation11 + $0x50] sm:$0xff]
        %v1122 = vld [vmem:[#allocation11 + $0x58] sm:$0xff]
        %v1123 = vld [vmem:[#allocation11 + $0x60] sm:$0xff]
        %v1124 = vld [vmem:[#allocation11 + $0x68] sm:$0xff]
        %v1125 = vld [vmem:[#allocation11 + $0x70] sm:$0xff]
        %v1126 = vld [vmem:[#allocation11 + $0x78] sm:$0xff]
        %v1127 = vld [vmem:[#allocation11 + $0x80] sm:$0xff]
        %v1128 = vld [vmem:[#allocation11 + $0x88] sm:$0xff]
        %v1129 = vld [vmem:[#allocation11 + $0x90] sm:$0xff]
        %v1130 = vld [vmem:[#allocation11 + $0x98] sm:$0xff]
        %v1131 = vld [vmem:[#allocation11 + $0xa0] sm:$0xff]
        %v1132 = vld [vmem:[#allocation11 + $0xa8] sm:$0xff]
        %v1133 = vld [vmem:[#allocation11 + $0xb0] sm:$0xff]
        %v1134 = vld [vmem:[#allocation11 + $0xb8] sm:$0xff]
        %v1135 = vld [vmem:[#allocation11 + $0xc0] sm:$0xff]
        %v1136 = vld [vmem:[#allocation11 + $0xc8] sm:$0xff]
        %v1137 = vld [vmem:[#allocation11 + $0xd0] sm:$0xff]
        %v1138 = vld [vmem:[#allocation11 + $0xd8] sm:$0xff]
        %v1139 = vld [vmem:[#allocation11 + $0xe0] sm:$0xff]
        %v1140 = vld [vmem:[#allocation11 + $0xe8] sm:$0xff]
        %v1141 = vld [vmem:[#allocation11 + $0xf0] sm:$0xff]
        %v1142 = vld [vmem:[#allocation11 + $0xf8] sm:$0xff]
        %v1143 = vld [vmem:[#allocation11 + $0x100] sm:$0xff]
        %v1144 = vld [vmem:[#allocation11 + $0x108] sm:$0xff]
        %v1145 = vld [vmem:[#allocation11 + $0x110] sm:$0xff]
        %v1146 = vld [vmem:[#allocation11 + $0x118] sm:$0xff]
        %v1147 = vld [vmem:[#allocation11 + $0x120] sm:$0xff]
        %v1148 = vld [vmem:[#allocation11 + $0x128] sm:$0xff]
        %v1149 = vld [vmem:[#allocation11 + $0x130] sm:$0xff]
        %v1150 = vld [vmem:[#allocation11 + $0x138] sm:$0xff]
        %v1151 = vld [vmem:[#allocation11 + $0x140] sm:$0xff]
        %v1152 = vld [vmem:[#allocation11 + $0x148] sm:$0xff]
        %v1153 = vld [vmem:[#allocation11 + $0x150] sm:$0xff]
        %v1154 = vld [vmem:[#allocation11 + $0x158] sm:$0xff]
        %v1155 = vld [vmem:[#allocation11 + $0x160] sm:$0xff]
        %v1156 = vld [vmem:[#allocation11 + $0x168] sm:$0xff]
        %v1157 = vld [vmem:[#allocation11 + $0x170] sm:$0xff]
        %v1158 = vld [vmem:[#allocation11 + $0x178] sm:$0xff]
        %v1159 = vld [vmem:[#allocation11 + $0x180] sm:$0xff]
        %v1160 = vld [vmem:[#allocation11 + $0x188] sm:$0xff]
        %v1161 = vld [vmem:[#allocation11 + $0x190] sm:$0xff]
        %v1162 = vld [vmem:[#allocation11 + $0x198] sm:$0xff]
        %v1163 = vld [vmem:[#allocation11 + $0x1a0] sm:$0xff]
        %v1164 = vld [vmem:[#allocation11 + $0x1a8] sm:$0xff]
        %v1165 = vld [vmem:[#allocation11 + $0x1b0] sm:$0xff]
        %v1166 = vld [vmem:[#allocation11 + $0x1b8] sm:$0xff]
        %v1167 = vld [vmem:[#allocation11 + $0x1c0] sm:$0xff]
        %v1168 = vld [vmem:[#allocation11 + $0x1c8] sm:$0xff]
        %v1169 = vld [vmem:[#allocation11 + $0x1d0] sm:$0xff]
        %v1170 = vld [vmem:[#allocation11 + $0x1d8] sm:$0xff]
        %v1171 = vld [vmem:[#allocation11 + $0x1e0] sm:$0xff]
        %v1172 = vld [vmem:[#allocation11 + $0x1e8] sm:$0xff]
        %v1173 = vld [vmem:[#allocation11 + $0x1f0] sm:$0xff]
        %v1174 = vld [vmem:[#allocation11 + $0x1f8] sm:$0xff]
        %v1175 = vld [vmem:[#allocation11 + $0x200] sm:$0xff]
        %v1176 = vld [vmem:[#allocation11 + $0x208] sm:$0xff]
        %v1177 = vld [vmem:[#allocation11 + $0x210] sm:$0xff]
        %v1178 = vld [vmem:[#allocation11 + $0x218] sm:$0xff]
        %v1179 = vld [vmem:[#allocation11 + $0x220] sm:$0xff]
        %v1180 = vld [vmem:[#allocation11 + $0x228] sm:$0xff]
        %v1181 = vld [vmem:[#allocation11 + $0x230] sm:$0xff]
        %v1182 = vld [vmem:[#allocation11 + $0x238] sm:$0xff]
        %v1183 = vld [vmem:[#allocation11 + $0x240] sm:$0xff]
        %v1184 = vld [vmem:[#allocation11 + $0x248] sm:$0xff]
        %v1185 = vld [vmem:[#allocation11 + $0x250] sm:$0xff]
        %v1186 = vld [vmem:[#allocation11 + $0x258] sm:$0xff]
        %v1187 = vld [vmem:[#allocation11 + $0x260] sm:$0xff]
        %v1188 = vld [vmem:[#allocation11 + $0x268] sm:$0xff]
        %v1189 = vld [vmem:[#allocation11 + $0x270] sm:$0xff]
        %v1190 = vld [vmem:[#allocation11 + $0x278] sm:$0xff]
        %v1191 = vld [vmem:[#allocation11 + $0x280] sm:$0xff]
        %v1192 = vld [vmem:[#allocation11 + $0x288] sm:$0xff]
        %v1193 = vld [vmem:[#allocation11 + $0x290] sm:$0xff]
        %v1194 = vld [vmem:[#allocation11 + $0x298] sm:$0xff]
        %v1195 = vld [vmem:[#allocation11 + $0x2a0] sm:$0xff]
        %v1196 = vld [vmem:[#allocation11 + $0x2a8] sm:$0xff]
        %v1197 = vld [vmem:[#allocation11 + $0x2b0] sm:$0xff]
        %v1198 = vld [vmem:[#allocation11 + $0x2b8] sm:$0xff]
        %v1199 = vld [vmem:[#allocation11 + $0x2c0] sm:$0xff]
        %v1200 = vld [vmem:[#allocation11 + $0x2c8] sm:$0xff]
        %v1201 = vld [vmem:[#allocation11 + $0x2d0] sm:$0xff]
        %v1202 = vld [vmem:[#allocation11 + $0x2d8] sm:$0xff]
        %v1203 = vld [vmem:[#allocation11 + $0x2e0] sm:$0xff]
        %v1204 = vld [vmem:[#allocation11 + $0x2e8] sm:$0xff]
        %v1205 = vld [vmem:[#allocation11 + $0x2f0] sm:$0xff]
        %v1206 = vld [vmem:[#allocation11 + $0x2f8] sm:$0xff]
        %v1207 = vld [vmem:[#allocation11 + $0x300] sm:$0xff]
        %v1208 = vld [vmem:[#allocation11 + $0x308] sm:$0xff]
        %v1209 = vld [vmem:[#allocation11 + $0x310] sm:$0xff]
        %v1210 = vld [vmem:[#allocation11 + $0x318] sm:$0xff]
        %v1211 = vld [vmem:[#allocation11 + $0x320] sm:$0xff]
        %v1212 = vld [vmem:[#allocation11 + $0x328] sm:$0xff]
        %v1213 = vld [vmem:[#allocation11 + $0x330] sm:$0xff]
        %v1214 = vld [vmem:[#allocation11 + $0x338] sm:$0xff]
        %v1215 = vld [vmem:[#allocation11 + $0x340] sm:$0xff]
        %v1216 = vld [vmem:[#allocation11 + $0x348] sm:$0xff]
        %v1217 = vld [vmem:[#allocation11 + $0x350] sm:$0xff]
        %v1218 = vld [vmem:[#allocation11 + $0x358] sm:$0xff]
        %v1219 = vld [vmem:[#allocation11 + $0x360] sm:$0xff]
        %v1220 = vld [vmem:[#allocation11 + $0x368] sm:$0xff]
        %v1221 = vld [vmem:[#allocation11 + $0x370] sm:$0xff]
        %v1222 = vld [vmem:[#allocation11 + $0x378] sm:$0xff]
        %v1223 = vld [vmem:[#allocation11 + $0x380] sm:$0xff]
        %v1224 = vld [vmem:[#allocation11 + $0x388] sm:$0xff]
        %v1225 = vld [vmem:[#allocation11 + $0x390] sm:$0xff]
        %v1226 = vld [vmem:[#allocation11 + $0x398] sm:$0xff]
        %v1227 = vld [vmem:[#allocation11 + $0x3a0] sm:$0xff]
        %v1228 = vld [vmem:[#allocation11 + $0x3a8] sm:$0xff]
        %v1229 = vld [vmem:[#allocation11 + $0x3b0] sm:$0xff]
        %v1230 = vld [vmem:[#allocation11 + $0x3b8] sm:$0xff]
        %v1231 = vld [vmem:[#allocation11 + $0x3c0] sm:$0xff]
        %v1232 = vld [vmem:[#allocation11 + $0x3c8] sm:$0xff]
        %v1233 = vld [vmem:[#allocation11 + $0x3d0] sm:$0xff]
        %v1234 = vld [vmem:[#allocation11 + $0x3d8] sm:$0xff]
        %v1235 = vld [vmem:[#allocation11 + $0x3e0] sm:$0xff]
        %v1236 = vld [vmem:[#allocation11 + $0x3e8] sm:$0xff]
        %v1237 = vld [vmem:[#allocation11 + $0x3f0] sm:$0xff]
        %v1238 = vld [vmem:[#allocation11 + $0x3f8] sm:$0xff]
        %1239 = vrot.lane.b32.xlu0 %v1103, 127
        %v1240 = vpop.permute.xlu0 %1239
        %1241 = vrot.lane.b32.xlu0 %v1107, 127
        %v1242 = vpop.permute.xlu0 %1241
        %1243 = vrot.lane.b32.xlu0 %v1104, 127
        %v1244 = vpop.permute.xlu0 %1243
        %1245 = vrot.lane.b32.xlu0 %v1108, 127
        %v1246 = vpop.permute.xlu0 %1245
        %1247 = vrot.lane.b32.xlu0 %v1105, 127
        %v1248 = vpop.permute.xlu0 %1247
        %1249 = vrot.lane.b32.xlu0 %v1109, 127
        %v1250 = vpop.permute.xlu0 %1249
        %1251 = vrot.lane.b32.xlu0 %v1106, 127
        %v1252 = vpop.permute.xlu0 %1251
        %1253 = vrot.lane.b32.xlu0 %v1110, 127
        %v1254 = vpop.permute.xlu0 %1253
        %v1255 = vsel %vm858, %v1248, %v1252
        %v1256 = vsel %vm858, %v1250, %v1254
        %v1257 = vsel %vm858, %v1244, %v1248
        %v1258 = vsel %vm858, %v1246, %v1250
        %v1259 = vsel %vm858, %v1240, %v1244
        %v1260 = vsel %vm858, %v1242, %v1246
        %v1261 = vsel %vm858, %v1252, %v1240
        %v1262 = vsel %vm858, %v1254, %v1242
        %v1263 = vmax.f32 %v1103, %v1259
        %v1264 = vmax.f32 %v1104, %v1257
        %v1265 = vmax.f32 %v1105, %v1255
        %v1266 = vmax.f32 %v1106, %v1261
        %v1267 = vmax.f32 %v1107, %v1260
        %v1268 = vmax.f32 %v1108, %v1258
        %v1269 = vmax.f32 %v1109, %v1256
        %v1270 = vmax.f32 %v1110, %v1262
        %1271 = vmatprep.subr.mxu0 %v1112
        %1272 = vmatpush1.msra.mxu0 %v1111
        %1273 = vmatprep.subr.mxu0 %v1114
        %1274 = vmatpush1.msra.mxu0 %v1113
        %1275 = vmatprep.subr.mxu0 %v1116
        %1276 = vmatpush1.msra.mxu0 %v1115
        %1277 = vmatprep.subr.mxu0 %v1118
        %1278 = vmatpush1.msra.mxu0 %v1117
        %1279 = vmatprep.subr.mxu0 %v1120
        %1280 = vmatpush1.msra.mxu0 %v1119
        %1281 = vmatprep.subr.mxu0 %v1122
        %1282 = vmatpush1.msra.mxu0 %v1121
        %1283 = vmatprep.subr.mxu0 %v1124
        %1284 = vmatpush1.msra.mxu0 %v1123
        %1285 = vmatprep.subr.mxu0 %v1126
        %1286 = vmatpush1.msra.mxu0 %v1125
        %1287 = vmatprep.subr.mxu0 %v1128
        %1288 = vmatpush1.msra.mxu0 %v1127
        %1289 = vmatprep.subr.mxu0 %v1130
        %1290 = vmatpush1.msra.mxu0 %v1129
        %1291 = vmatprep.subr.mxu0 %v1132
        %1292 = vmatpush1.msra.mxu0 %v1131
        %1293 = vmatprep.subr.mxu0 %v1134
        %1294 = vmatpush1.msra.mxu0 %v1133
        %1295 = vmatprep.subr.mxu0 %v1136
        %1296 = vmatpush1.msra.mxu0 %v1135
        %1297 = vmatprep.subr.mxu0 %v1138
        %1298 = vmatpush1.msra.mxu0 %v1137
        %1299 = vmatprep.subr.mxu0 %v1140
        %1300 = vmatpush1.msra.mxu0 %v1139
        %1301 = vmatprep.subr.mxu0 %v1142
        %1302 = vmatpush1.msra.mxu0 %v1141
        %1303 = vmatprep.subr.mxu0 %v1144
        %1304 = vmatpush1.msra.mxu0 %v1143
        %1305 = vmatprep.subr.mxu0 %v1146
        %1306 = vmatpush1.msra.mxu0 %v1145
        %1307 = vmatprep.subr.mxu0 %v1148
        %1308 = vmatpush1.msra.mxu0 %v1147
        %1309 = vmatprep.subr.mxu0 %v1150
        %1310 = vmatpush1.msra.mxu0 %v1149
        %1311 = vmatprep.subr.mxu0 %v1152
        %1312 = vmatpush1.msra.mxu0 %v1151
        %1313 = vmatprep.subr.mxu0 %v1154
        %1314 = vmatpush1.msra.mxu0 %v1153
        %1315 = vmatprep.subr.mxu0 %v1156
        %1316 = vmatpush1.msra.mxu0 %v1155
        %1317 = vmatprep.subr.mxu0 %v1158
        %1318 = vmatpush1.msra.mxu0 %v1157
        %1319 = vmatprep.subr.mxu0 %v1160
        %1320 = vmatpush1.msra.mxu0 %v1159
        %1321 = vmatprep.subr.mxu0 %v1162
        %1322 = vmatpush1.msra.mxu0 %v1161
        %1323 = vmatprep.subr.mxu0 %v1164
        %1324 = vmatpush1.msra.mxu0 %v1163
        %1325 = vmatprep.subr.mxu0 %v1166
        %1326 = vmatpush1.msra.mxu0 %v1165
        %1327 = vmatprep.subr.mxu0 %v1168
        %1328 = vmatpush1.msra.mxu0 %v1167
        %1329 = vmatprep.subr.mxu0 %v1170
        %1330 = vmatpush1.msra.mxu0 %v1169
        %1331 = vmatprep.subr.mxu0 %v1172
        %1332 = vmatpush1.msra.mxu0 %v1171
        %1333 = vmatprep.subr.mxu0 %v1174
        %1334 = vmatpush1.msra.mxu0 %v1173
        %1335 = vmatprep.mubr.f32.mxu0 %v1264
        %1336 = vmatmul.mubr.f32.gmra.mrb[0].mxu0 %v1263
        %v1337 = vpop.f32.mrb[0].mxu0
        %v1338 = vadd.f32 0.0, %v1337
        %v1339 = vpop.f32.mrb[0].mxu0
        %v1340 = vadd.f32 0.0, %v1339
        %1341 = vmatprep.mubr.f32.mxu0 %v1268
        %1342 = vmatmul.mubr.f32.gmra.mrb[0].mxu0 %v1267
        %v1343 = vpop.f32.mrb[0].mxu0
        %v1344 = vadd.f32 0.0, %v1343
        %v1345 = vpop.f32.mrb[0].mxu0
        %v1346 = vadd.f32 0.0, %v1345
        %1347 = vdwg.mxu0
        %1348 = vmatprep.subr.mxu0 %v1176
        %1349 = vmatpush1.msra.mxu0 %v1175
        %1350 = vmatprep.subr.mxu0 %v1178
        %1351 = vmatpush1.msra.mxu0 %v1177
        %1352 = vmatprep.subr.mxu0 %v1180
        %1353 = vmatpush1.msra.mxu0 %v1179
        %1354 = vmatprep.subr.mxu0 %v1182
        %1355 = vmatpush1.msra.mxu0 %v1181
        %1356 = vmatprep.subr.mxu0 %v1184
        %1357 = vmatpush1.msra.mxu0 %v1183
        %1358 = vmatprep.subr.mxu0 %v1186
        %1359 = vmatpush1.msra.mxu0 %v1185
        %1360 = vmatprep.subr.mxu0 %v1188
        %1361 = vmatpush1.msra.mxu0 %v1187
        %1362 = vmatprep.subr.mxu0 %v1190
        %1363 = vmatpush1.msra.mxu0 %v1189
        %1364 = vmatprep.subr.mxu0 %v1192
        %1365 = vmatpush1.msra.mxu0 %v1191
        %1366 = vmatprep.subr.mxu0 %v1194
        %1367 = vmatpush1.msra.mxu0 %v1193
        %1368 = vmatprep.subr.mxu0 %v1196
        %1369 = vmatpush1.msra.mxu0 %v1195
        %1370 = vmatprep.subr.mxu0 %v1198
        %1371 = vmatpush1.msra.mxu0 %v1197
        %1372 = vmatprep.subr.mxu0 %v1200
        %1373 = vmatpush1.msra.mxu0 %v1199
        %1374 = vmatprep.subr.mxu0 %v1202
        %1375 = vmatpush1.msra.mxu0 %v1201
        %1376 = vmatprep.subr.mxu0 %v1204
        %1377 = vmatpush1.msra.mxu0 %v1203
        %1378 = vmatprep.subr.mxu0 %v1206
        %1379 = vmatpush1.msra.mxu0 %v1205
        %1380 = vmatprep.subr.mxu0 %v1208
        %1381 = vmatpush1.msra.mxu0 %v1207
        %1382 = vmatprep.subr.mxu0 %v1210
        %1383 = vmatpush1.msra.mxu0 %v1209
        %1384 = vmatprep.subr.mxu0 %v1212
        %1385 = vmatpush1.msra.mxu0 %v1211
        %1386 = vmatprep.subr.mxu0 %v1214
        %1387 = vmatpush1.msra.mxu0 %v1213
        %1388 = vmatprep.subr.mxu0 %v1216
        %1389 = vmatpush1.msra.mxu0 %v1215
        %1390 = vmatprep.subr.mxu0 %v1218
        %1391 = vmatpush1.msra.mxu0 %v1217
        %1392 = vmatprep.subr.mxu0 %v1220
        %1393 = vmatpush1.msra.mxu0 %v1219
        %1394 = vmatprep.subr.mxu0 %v1222
        %1395 = vmatpush1.msra.mxu0 %v1221
        %1396 = vmatprep.subr.mxu0 %v1224
        %1397 = vmatpush1.msra.mxu0 %v1223
        %1398 = vmatprep.subr.mxu0 %v1226
        %1399 = vmatpush1.msra.mxu0 %v1225
        %1400 = vmatprep.subr.mxu0 %v1228
        %1401 = vmatpush1.msra.mxu0 %v1227
        %1402 = vmatprep.subr.mxu0 %v1230
        %1403 = vmatpush1.msra.mxu0 %v1229
        %1404 = vmatprep.subr.mxu0 %v1232
        %1405 = vmatpush1.msra.mxu0 %v1231
        %1406 = vmatprep.subr.mxu0 %v1234
        %1407 = vmatpush1.msra.mxu0 %v1233
        %1408 = vmatprep.subr.mxu0 %v1236
        %1409 = vmatpush1.msra.mxu0 %v1235
        %1410 = vmatprep.subr.mxu0 %v1238
        %1411 = vmatpush1.msra.mxu0 %v1237
        %1412 = vmatprep.mubr.f32.mxu0 %v1266
        %1413 = vmatmul.mubr.f32.gmra.mrb[0].mxu0 %v1265
        %v1414 = vpop.f32.mrb[0].mxu0
        %v1415 = vadd.f32 %v1338, %v1414
        %v1416 = vpop.f32.mrb[0].mxu0
        %v1417 = vadd.f32 %v1340, %v1416
        %1418 = vmatprep.mubr.f32.mxu0 %v1270
        %1419 = vmatmul.mubr.f32.gmra.mrb[0].mxu0 %v1269
        %v1420 = vpop.f32.mrb[0].mxu0
        %v1421 = vadd.f32 %v1344, %v1420
        %v1422 = vpop.f32.mrb[0].mxu0
        %v1423 = vadd.f32 %v1346, %v1422
        %1424 = vdwg.mxu0
        %v1425 = vld [vmem:[#allocation8] sm:$0x3]
        %v1426 = vld [vmem:[#allocation10] sm:$0x3]
        %1427 = vrot.lane.b32.xlu0 %v1415, 1
        %v1428 = vpop.permute.xlu0 %1427
        %1429 = vrot.lane.b32.xlu0 %v1421, 1
        %v1430 = vpop.permute.xlu0 %1429
        %1431 = vrot.lane.b32.xlu0 %v1417, 1
        %v1432 = vpop.permute.xlu0 %1431
        %1433 = vrot.lane.b32.xlu0 %v1423, 1
        %v1434 = vpop.permute.xlu0 %1433
        %v1435 = vsel %vm820, %v1428, %v1432
        %v1436 = vsel %vm820, %v1430, %v1434
        %v1437 = vsel %vm820, %v1432, %v1428
        %v1438 = vsel %vm820, %v1434, %v1430
        %v1440 = vlaneseq
        %v1441 = vshrl.u32 %v1440, 7
        %v1442 = vsub.s32 0, %v1441
        %v1443 = vrot.slane %v1425, %v1442
        %v1444 = vlaneseq
        %v1445 = vshrl.u32 %v1444, 7
        %v1446 = vsub.s32 1, %v1445
        %v1447 = vrot.slane %v1425, %v1446
        %v1450 = vmul.f32 %v1437, %v1443
        %v1451 = vmul.f32 %v1435, %v1447
        %v1452 = vmul.f32 %v1438, %v1443
        %v1453 = vmul.f32 %v1436, %v1447
        %1454 = vrot.lane.b32.xlu0 %v1415, 127
        %v1455 = vpop.permute.xlu0 %1454
        %1456 = vrot.lane.b32.xlu0 %v1421, 127
        %v1457 = vpop.permute.xlu0 %1456
        %1458 = vrot.lane.b32.xlu0 %v1417, 127
        %v1459 = vpop.permute.xlu0 %1458
        %1460 = vrot.lane.b32.xlu0 %v1423, 127
        %v1461 = vpop.permute.xlu0 %1460
        %v1462 = vsel %vm858, %v1455, %v1459
        %v1463 = vsel %vm858, %v1457, %v1461
        %v1464 = vsel %vm858, %v1459, %v1455
        %v1465 = vsel %vm858, %v1461, %v1457
        %v1467 = vlaneseq
        %v1468 = vshrl.u32 %v1467, 7
        %v1469 = vsub.s32 0, %v1468
        %v1470 = vrot.slane %v1426, %v1469
        %v1471 = vlaneseq
        %v1472 = vshrl.u32 %v1471, 7
        %v1473 = vsub.s32 1, %v1472
        %v1474 = vrot.slane %v1426, %v1473
        %v1477 = vmul.f32 %v1462, %v1470
        %v1478 = vmul.f32 %v1464, %v1474
        %v1479 = vmul.f32 %v1463, %v1470
        %v1480 = vmul.f32 %v1465, %v1474
        %v1481 = vld [vmem:[%s3] sm:$0xff]
        %v1482 = vld [vmem:[%s3 + $0x8] sm:$0xff]
        %v1483 = vld [vmem:[%s4] sm:$0xff]
        %v1484 = vld [vmem:[%s4 + $0x8] sm:$0xff]
        %1486 = vset.pattern.permute.xlu0 0
        %1487 = vperm.xlu0 %1486, %v1483
        %v1488 = vpop.permute.xlu0 %1487
        %1491 = vset.pattern.permute.xlu0 0
        %1492 = vperm.xlu0 %1491, %v1484
        %v1493 = vpop.permute.xlu0 %1492
        %vm1495 = vcmask 392192
        %v1497 = vsel %vm1495, %v1481, 0
        %v1500 = vsel %vm1495, %v1482, 0
        %1502 = vmatprep.subr.mxu0 %v1451
        %1503 = vmatpush1.msra.mxu0 %v1450
        %1504 = vmatprep.subr.mxu0 %v1453
        %1505 = vmatpush1.msra.mxu0 %v1452
        %1506 = vmatprep.subr.mxu0 %v1417
        %1507 = vmatpush1.msra.mxu0 %v1415
        %1508 = vmatprep.subr.mxu0 %v1423
        %1509 = vmatpush1.msra.mxu0 %v1421
        %1510 = vmatprep.subr.mxu0 %v1478
        %1511 = vmatpush1.msra.mxu0 %v1477
        %1512 = vmatprep.subr.mxu0 %v1480
        %1513 = vmatpush1.msra.mxu0 %v1479
        %1514 = vmatprep.subr.mxu0 0.0
        %1515 = vmatpush1.msra.mxu0 0.0
        %1516 = vmatprep.subr.mxu0 0.0
        %1517 = vmatpush1.msra.mxu0 0.0
        %1518 = vmatprep.subr.mxu0 0.0
        %1519 = vmatpush1.msra.mxu0 0.0
        %1520 = vmatprep.subr.mxu0 0.0
        %1521 = vmatpush1.msra.mxu0 0.0
        %1522 = vmatprep.subr.mxu0 0.0
        %1523 = vmatpush1.msra.mxu0 0.0
        %1524 = vmatprep.subr.mxu0 0.0
        %1525 = vmatpush1.msra.mxu0 0.0
        %1526 = vmatprep.subr.mxu0 0.0
        %1527 = vmatpush1.msra.mxu0 0.0
        %1528 = vmatprep.subr.mxu0 0.0
        %1529 = vmatpush1.msra.mxu0 0.0
        %1530 = vmatprep.subr.mxu0 0.0
        %1531 = vmatpush1.msra.mxu0 0.0
        %1532 = vmatprep.subr.mxu0 0.0
        %1533 = vmatpush1.msra.mxu0 0.0
        %1534 = vmatprep.subr.mxu0 0.0
        %1535 = vmatpush1.msra.mxu0 0.0
        %1536 = vmatprep.subr.mxu0 0.0
        %1537 = vmatpush1.msra.mxu0 0.0
        %1538 = vmatprep.subr.mxu0 0.0
        %1539 = vmatpush1.msra.mxu0 0.0
        %1540 = vmatprep.subr.mxu0 0.0
        %1541 = vmatpush1.msra.mxu0 0.0
        %1542 = vmatprep.subr.mxu0 0.0
        %1543 = vmatpush1.msra.mxu0 0.0
        %1544 = vmatprep.subr.mxu0 0.0
        %1545 = vmatpush1.msra.mxu0 0.0
        %1546 = vmatprep.subr.mxu0 0.0
        %1547 = vmatpush1.msra.mxu0 0.0
        %1548 = vmatprep.subr.mxu0 0.0
        %1549 = vmatpush1.msra.mxu0 0.0
        %1550 = vmatprep.subr.mxu0 0.0
        %1551 = vmatpush1.msra.mxu0 0.0
        %1552 = vmatprep.subr.mxu0 0.0
        %1553 = vmatpush1.msra.mxu0 0.0
        %1554 = vmatprep.subr.mxu0 0.0
        %1555 = vmatpush1.msra.mxu0 0.0
        %1556 = vmatprep.subr.mxu0 0.0
        %1557 = vmatpush1.msra.mxu0 0.0
        %1558 = vmatprep.subr.mxu0 0.0
        %1559 = vmatpush1.msra.mxu0 0.0
        %1560 = vmatprep.subr.mxu0 0.0
        %1561 = vmatpush1.msra.mxu0 0.0
        %1562 = vmatprep.subr.mxu0 0.0
        %1563 = vmatpush1.msra.mxu0 0.0
        %1564 = vmatprep.subr.mxu0 0.0
        %1565 = vmatpush1.msra.mxu0 0.0
        %1566 = vmatprep.mubr.f32.mxu0 0.0
        %1567 = vmatmul.mubr.f32.gmra.mrb[0].mxu0 %v1497
        %v1568 = vpop.f32.mrb[0].mxu0
        %v1569 = vadd.f32 %v1488, %v1568
        %v1570 = vpop.f32.mrb[0].mxu0
        %v1571 = vadd.f32 %v1488, %v1570
        %1572 = vmatprep.mubr.f32.mxu0 0.0
        %1573 = vmatmul.mubr.f32.gmra.mrb[0].mxu0 %v1500
        %v1574 = vpop.f32.mrb[0].mxu0
        %v1575 = vadd.f32 %v1493, %v1574
        %v1576 = vpop.f32.mrb[0].mxu0
        %v1577 = vadd.f32 %v1493, %v1576
        %1578 = vdwg.mxu0
        %vm1579 = vcmp.gt.f32.partialorder %v1569, 0.0
        %vm1580 = vcmp.gt.f32.partialorder %v1571, 0.0
        %vm1581 = vcmp.gt.f32.partialorder %v1575, 0.0
        %vm1582 = vcmp.gt.f32.partialorder %v1577, 0.0
        %v1583 = vmin.f32 %v1569, 0.0
        %v1584 = vmin.f32 %v1571, 0.0
        %v1585 = vmin.f32 %v1575, 0.0
        %v1586 = vmin.f32 %v1577, 0.0
        %v1587 = vmul.f32 %v1583, 1.442695
        %v1588 = vpow.pop %v1587
        %v1589 = vmul.f32 %v1584, 1.442695
        %v1590 = vpow.pop %v1589
        %v1591 = vmul.f32 %v1585, 1.442695
        %v1592 = vpow.pop %v1591
        %v1593 = vmul.f32 %v1586, 1.442695
        %v1594 = vpow.pop %v1593
        %v1595 = vsub.f32 %v1588, 1.0
        %v1596 = vsub.f32 %v1590, 1.0
        %v1597 = vsub.f32 %v1592, 1.0
        %v1598 = vsub.f32 %v1594, 1.0
        %v1599 = vsel %vm1579, %v1569, %v1595
        %v1600 = vsel %vm1580, %v1571, %v1596
        %v1601 = vsel %vm1581, %v1575, %v1597
        %v1602 = vsel %vm1582, %v1577, %v1598
        %v1603 = vadd.f32 %v1599, %v1415
        %v1604 = vadd.f32 %v1600, %v1417
        %v1605 = vadd.f32 %v1601, %v1421
        %v1606 = vadd.f32 %v1602, %v1423
        %v1607 = vld [vmem:[%s10] sm:$0xff]
        %v1608 = vld [vmem:[%s10 + $0x8] sm:$0xff]
        %v1609 = vld [vmem:[%s10 + $0x10] sm:$0xff]
        %v1610 = vld [vmem:[%s10 + $0x18] sm:$0xff]
        %v1611 = vld [vmem:[%s10 + $0x20] sm:$0xff]
        %v1612 = vld [vmem:[%s10 + $0x28] sm:$0xff]
        %v1613 = vld [vmem:[%s10 + $0x30] sm:$0xff]
        %v1614 = vld [vmem:[%s10 + $0x38] sm:$0xff]
        %v1615 = vld [vmem:[%s10 + $0x40] sm:$0xff]
        %v1616 = vld [vmem:[%s10 + $0x48] sm:$0xff]
        %v1617 = vld [vmem:[%s10 + $0x50] sm:$0xff]
        %v1618 = vld [vmem:[%s10 + $0x58] sm:$0xff]
        %v1619 = vld [vmem:[%s10 + $0x60] sm:$0xff]
        %v1620 = vld [vmem:[%s10 + $0x68] sm:$0xff]
        %v1621 = vld [vmem:[%s10 + $0x70] sm:$0xff]
        %v1622 = vld [vmem:[%s10 + $0x78] sm:$0xff]
        %v1623 = vld [vmem:[%s10 + $0x80] sm:$0xff]
        %v1624 = vld [vmem:[%s10 + $0x88] sm:$0xff]
        %v1625 = vld [vmem:[%s10 + $0x90] sm:$0xff]
        %v1626 = vld [vmem:[%s10 + $0x98] sm:$0xff]
        %v1627 = vld [vmem:[%s10 + $0xa0] sm:$0xff]
        %v1628 = vld [vmem:[%s10 + $0xa8] sm:$0xff]
        %v1629 = vld [vmem:[%s10 + $0xb0] sm:$0xff]
        %v1630 = vld [vmem:[%s10 + $0xb8] sm:$0xff]
        %v1631 = vld [vmem:[%s10 + $0xc0] sm:$0xff]
        %v1632 = vld [vmem:[%s10 + $0xc8] sm:$0xff]
        %v1633 = vld [vmem:[%s10 + $0xd0] sm:$0xff]
        %v1634 = vld [vmem:[%s10 + $0xd8] sm:$0xff]
        %v1635 = vld [vmem:[%s10 + $0xe0] sm:$0xff]
        %v1636 = vld [vmem:[%s10 + $0xe8] sm:$0xff]
        %v1637 = vld [vmem:[%s10 + $0xf0] sm:$0xff]
        %v1638 = vld [vmem:[%s10 + $0xf8] sm:$0xff]
        %1639 = vrot.lane.b32.xlu0 %v1603, 127
        %v1640 = vpop.permute.xlu0 %1639
        %1641 = vrot.lane.b32.xlu0 %v1605, 127
        %v1642 = vpop.permute.xlu0 %1641
        %1643 = vrot.lane.b32.xlu0 %v1604, 127
        %v1644 = vpop.permute.xlu0 %1643
        %1645 = vrot.lane.b32.xlu0 %v1606, 127
        %v1646 = vpop.permute.xlu0 %1645
        %v1647 = vsel %vm858, %v1640, %v1644
        %v1648 = vsel %vm858, %v1642, %v1646
        %v1649 = vsel %vm858, %v1644, %v1640
        %v1650 = vsel %vm858, %v1646, %v1642
        %v1651 = vmax.f32 %v1603, %v1647
        %v1652 = vmax.f32 %v1604, %v1649
        %v1653 = vmax.f32 %v1605, %v1648
        %v1654 = vmax.f32 %v1606, %v1650
        %1655 = vmatprep.subr.mxu0 0.0
        %1656 = vmatpush1.msra.mxu0 %v1607
        %1657 = vmatprep.subr.mxu0 0.0
        %1658 = vmatpush1.msra.mxu0 %v1608
        %1659 = vmatprep.subr.mxu0 0.0
        %1660 = vmatpush1.msra.mxu0 %v1609
        %1661 = vmatprep.subr.mxu0 0.0
        %1662 = vmatpush1.msra.mxu0 %v1610
        %1663 = vmatprep.subr.mxu0 0.0
        %1664 = vmatpush1.msra.mxu0 %v1611
        %1665 = vmatprep.subr.mxu0 0.0
        %1666 = vmatpush1.msra.mxu0 %v1612
        %1667 = vmatprep.subr.mxu0 0.0
        %1668 = vmatpush1.msra.mxu0 %v1613
        %1669 = vmatprep.subr.mxu0 0.0
        %1670 = vmatpush1.msra.mxu0 %v1614
        %1671 = vmatprep.subr.mxu0 0.0
        %1672 = vmatpush1.msra.mxu0 %v1615
        %1673 = vmatprep.subr.mxu0 0.0
        %1674 = vmatpush1.msra.mxu0 %v1616
        %1675 = vmatprep.subr.mxu0 0.0
        %1676 = vmatpush1.msra.mxu0 %v1617
        %1677 = vmatprep.subr.mxu0 0.0
        %1678 = vmatpush1.msra.mxu0 %v1618
        %1679 = vmatprep.subr.mxu0 0.0
        %1680 = vmatpush1.msra.mxu0 %v1619
        %1681 = vmatprep.subr.mxu0 0.0
        %1682 = vmatpush1.msra.mxu0 %v1620
        %1683 = vmatprep.subr.mxu0 0.0
        %1684 = vmatpush1.msra.mxu0 %v1621
        %1685 = vmatprep.subr.mxu0 0.0
        %1686 = vmatpush1.msra.mxu0 %v1622
        %1687 = vmatprep.subr.mxu0 0.0
        %1688 = vmatpush1.msra.mxu0 %v1623
        %1689 = vmatprep.subr.mxu0 0.0
        %1690 = vmatpush1.msra.mxu0 %v1624
        %1691 = vmatprep.subr.mxu0 0.0
        %1692 = vmatpush1.msra.mxu0 %v1625
        %1693 = vmatprep.subr.mxu0 0.0
        %1694 = vmatpush1.msra.mxu0 %v1626
        %1695 = vmatprep.subr.mxu0 0.0
        %1696 = vmatpush1.msra.mxu0 %v1627
        %1697 = vmatprep.subr.mxu0 0.0
        %1698 = vmatpush1.msra.mxu0 %v1628
        %1699 = vmatprep.subr.mxu0 0.0
        %1700 = vmatpush1.msra.mxu0 %v1629
        %1701 = vmatprep.subr.mxu0 0.0
        %1702 = vmatpush1.msra.mxu0 %v1630
        %1703 = vmatprep.subr.mxu0 0.0
        %1704 = vmatpush1.msra.mxu0 %v1631
        %1705 = vmatprep.subr.mxu0 0.0
        %1706 = vmatpush1.msra.mxu0 %v1632
        %1707 = vmatprep.subr.mxu0 0.0
        %1708 = vmatpush1.msra.mxu0 %v1633
        %1709 = vmatprep.subr.mxu0 0.0
        %1710 = vmatpush1.msra.mxu0 %v1634
        %1711 = vmatprep.subr.mxu0 0.0
        %1712 = vmatpush1.msra.mxu0 %v1635
        %1713 = vmatprep.subr.mxu0 0.0
        %1714 = vmatpush1.msra.mxu0 %v1636
        %1715 = vmatprep.subr.mxu0 0.0
        %1716 = vmatpush1.msra.mxu0 %v1637
        %1717 = vmatprep.subr.mxu0 0.0
        %1718 = vmatpush1.msra.mxu0 %v1638
        %1719 = vmatprep.mubr.f32.mxu0 %v1652
        %1720 = vmatmul.mubr.f32.gmra.mrb[0].mxu0 %v1651
        %v1721 = vpop.f32.mrb[0].mxu0
        %v1722 = vadd.f32 0.0, %v1721
        %v1723 = vpop.f32.mrb[0].mxu0
        %1724 = vmatprep.mubr.f32.mxu0 %v1654
        %1725 = vmatmul.mubr.f32.gmra.mrb[0].mxu0 %v1653
        %v1726 = vpop.f32.mrb[0].mxu0
        %v1727 = vadd.f32 0.0, %v1726
        %v1728 = vpop.f32.mrb[0].mxu0
        %1729 = vdwg.mxu0
        %v1730 = vld [vmem:[%s11] sm:$0xff]
        %v1731 = vld [vmem:[%s11 + $0x8] sm:$0xff]
        %v1732 = vld [vmem:[%s11 + $0x10] sm:$0xff]
        %v1733 = vld [vmem:[%s11 + $0x18] sm:$0xff]
        %v1734 = vld [vmem:[%s11 + $0x20] sm:$0xff]
        %v1735 = vld [vmem:[%s11 + $0x28] sm:$0xff]
        %v1736 = vld [vmem:[%s11 + $0x30] sm:$0xff]
        %v1737 = vld [vmem:[%s11 + $0x38] sm:$0xff]
        %v1738 = vld [vmem:[%s11 + $0x40] sm:$0xff]
        %v1739 = vld [vmem:[%s11 + $0x48] sm:$0xff]
        %v1740 = vld [vmem:[%s11 + $0x50] sm:$0xff]
        %v1741 = vld [vmem:[%s11 + $0x58] sm:$0xff]
        %v1742 = vld [vmem:[%s11 + $0x60] sm:$0xff]
        %v1743 = vld [vmem:[%s11 + $0x68] sm:$0xff]
        %v1744 = vld [vmem:[%s11 + $0x70] sm:$0xff]
        %v1745 = vld [vmem:[%s11 + $0x78] sm:$0xff]
        %v1746 = vld [vmem:[%s12] sm:$0xff]
        %v1747 = vld [vmem:[#allocation13] sm:$0x3]
        %v1748 = vld [vmem:[%s16] sm:$0xff]
        %v1749 = vld [vmem:[%s16 + $0x8] sm:$0xff]
        %1750 = vmatprep.subr.mxu0 0.0
        %1751 = vmatpush1.msra.mxu0 %v1730
        %1752 = vmatprep.subr.mxu0 0.0
        %1753 = vmatpush1.msra.mxu0 %v1731
        %1754 = vmatprep.subr.mxu0 0.0
        %1755 = vmatpush1.msra.mxu0 %v1732
        %1756 = vmatprep.subr.mxu0 0.0
        %1757 = vmatpush1.msra.mxu0 %v1733
        %1758 = vmatprep.subr.mxu0 0.0
        %1759 = vmatpush1.msra.mxu0 %v1734
        %1760 = vmatprep.subr.mxu0 0.0
        %1761 = vmatpush1.msra.mxu0 %v1735
        %1762 = vmatprep.subr.mxu0 0.0
        %1763 = vmatpush1.msra.mxu0 %v1736
        %1764 = vmatprep.subr.mxu0 0.0
        %1765 = vmatpush1.msra.mxu0 %v1737
        %1766 = vmatprep.subr.mxu0 0.0
        %1767 = vmatpush1.msra.mxu0 %v1738
        %1768 = vmatprep.subr.mxu0 0.0
        %1769 = vmatpush1.msra.mxu0 %v1739
        %1770 = vmatprep.subr.mxu0 0.0
        %1771 = vmatpush1.msra.mxu0 %v1740
        %1772 = vmatprep.subr.mxu0 0.0
        %1773 = vmatpush1.msra.mxu0 %v1741
        %1774 = vmatprep.subr.mxu0 0.0
        %1775 = vmatpush1.msra.mxu0 %v1742
        %1776 = vmatprep.subr.mxu0 0.0
        %1777 = vmatpush1.msra.mxu0 %v1743
        %1778 = vmatprep.subr.mxu0 0.0
        %1779 = vmatpush1.msra.mxu0 %v1744
        %1780 = vmatprep.subr.mxu0 0.0
        %1781 = vmatpush1.msra.mxu0 %v1745
        %1782 = vmatprep.subr.mxu0 0.0
        %1783 = vmatpush1.msra.mxu0 0.0
        %1784 = vmatprep.subr.mxu0 0.0
        %1785 = vmatpush1.msra.mxu0 0.0
        %1786 = vmatprep.subr.mxu0 0.0
        %1787 = vmatpush1.msra.mxu0 0.0
        %1788 = vmatprep.subr.mxu0 0.0
        %1789 = vmatpush1.msra.mxu0 0.0
        %1790 = vmatprep.subr.mxu0 0.0
        %1791 = vmatpush1.msra.mxu0 0.0
        %1792 = vmatprep.subr.mxu0 0.0
        %1793 = vmatpush1.msra.mxu0 0.0
        %1794 = vmatprep.subr.mxu0 0.0
        %1795 = vmatpush1.msra.mxu0 0.0
        %1796 = vmatprep.subr.mxu0 0.0
        %1797 = vmatpush1.msra.mxu0 0.0
        %1798 = vmatprep.subr.mxu0 0.0
        %1799 = vmatpush1.msra.mxu0 0.0
        %1800 = vmatprep.subr.mxu0 0.0
        %1801 = vmatpush1.msra.mxu0 0.0
        %1802 = vmatprep.subr.mxu0 0.0
        %1803 = vmatpush1.msra.mxu0 0.0
        %1804 = vmatprep.subr.mxu0 0.0
        %1805 = vmatpush1.msra.mxu0 0.0
        %1806 = vmatprep.subr.mxu0 0.0
        %1807 = vmatpush1.msra.mxu0 0.0
        %1808 = vmatprep.subr.mxu0 0.0
        %1809 = vmatpush1.msra.mxu0 0.0
        %1810 = vmatprep.subr.mxu0 0.0
        %1811 = vmatpush1.msra.mxu0 0.0
        %1812 = vmatprep.subr.mxu0 0.0
        %1813 = vmatpush1.msra.mxu0 0.0
        %1814 = vmatprep.mubr.f32.mxu0 0.0
        %1815 = vmatmul.mubr.f32.gmra.mrb[0].mxu0 %v1722
        %v1816 = vpop.f32.mrb[0].mxu0
        %v1817 = vadd.f32 0.0, %v1816
        %v1818 = vpop.f32.mrb[0].mxu0
        %1819 = vmatprep.mubr.f32.mxu0 0.0
        %1820 = vmatmul.mubr.f32.gmra.mrb[0].mxu0 %v1727
        %v1821 = vpop.f32.mrb[0].mxu0
        %v1822 = vadd.f32 0.0, %v1821
        %v1823 = vpop.f32.mrb[0].mxu0
        %1824 = vdwg.mxu0
        %vm1825 = vcmask 130048
        %v1827 = vsel %vm1825, %v1747, 0
        %1829 = vmatprep.subr.mxu0 0.0
        %1830 = vmatpush1.msra.mxu0 %v1817
        %1831 = vmatprep.subr.mxu0 0.0
        %1832 = vmatpush1.msra.mxu0 %v1822
        %1833 = vmatprep.subr.mxu0 0.0
        %1834 = vmatpush1.msra.mxu0 0.0
        %1835 = vmatprep.subr.mxu0 0.0
        %1836 = vmatpush1.msra.mxu0 0.0
        %1837 = vmatprep.subr.mxu0 0.0
        %1838 = vmatpush1.msra.mxu0 0.0
        %1839 = vmatprep.subr.mxu0 0.0
        %1840 = vmatpush1.msra.mxu0 0.0
        %1841 = vmatprep.subr.mxu0 0.0
        %1842 = vmatpush1.msra.mxu0 0.0
        %1843 = vmatprep.subr.mxu0 0.0
        %1844 = vmatpush1.msra.mxu0 0.0
        %1845 = vmatprep.subr.mxu0 0.0
        %1846 = vmatpush1.msra.mxu0 0.0
        %1847 = vmatprep.subr.mxu0 0.0
        %1848 = vmatpush1.msra.mxu0 0.0
        %1849 = vmatprep.subr.mxu0 0.0
        %1850 = vmatpush1.msra.mxu0 0.0
        %1851 = vmatprep.subr.mxu0 0.0
        %1852 = vmatpush1.msra.mxu0 0.0
        %1853 = vmatprep.subr.mxu0 0.0
        %1854 = vmatpush1.msra.mxu0 0.0
        %1855 = vmatprep.subr.mxu0 0.0
        %1856 = vmatpush1.msra.mxu0 0.0
        %1857 = vmatprep.subr.mxu0 0.0
        %1858 = vmatpush1.msra.mxu0 0.0
        %1859 = vmatprep.subr.mxu0 0.0
        %1860 = vmatpush1.msra.mxu0 0.0
        %1861 = vmatprep.subr.mxu0 0.0
        %1862 = vmatpush1.msra.mxu0 0.0
        %1863 = vmatprep.subr.mxu0 0.0
        %1864 = vmatpush1.msra.mxu0 0.0
        %1865 = vmatprep.subr.mxu0 0.0
        %1866 = vmatpush1.msra.mxu0 0.0
        %1867 = vmatprep.subr.mxu0 0.0
        %1868 = vmatpush1.msra.mxu0 0.0
        %1869 = vmatprep.subr.mxu0 0.0
        %1870 = vmatpush1.msra.mxu0 0.0
        %1871 = vmatprep.subr.mxu0 0.0
        %1872 = vmatpush1.msra.mxu0 0.0
        %1873 = vmatprep.subr.mxu0 0.0
        %1874 = vmatpush1.msra.mxu0 0.0
        %1875 = vmatprep.subr.mxu0 0.0
        %1876 = vmatpush1.msra.mxu0 0.0
        %1877 = vmatprep.subr.mxu0 0.0
        %1878 = vmatpush1.msra.mxu0 0.0
        %1879 = vmatprep.subr.mxu0 0.0
        %1880 = vmatpush1.msra.mxu0 0.0
        %1881 = vmatprep.subr.mxu0 0.0
        %1882 = vmatpush1.msra.mxu0 0.0
        %1883 = vmatprep.subr.mxu0 0.0
        %1884 = vmatpush1.msra.mxu0 0.0
        %1885 = vmatprep.subr.mxu0 0.0
        %1886 = vmatpush1.msra.mxu0 0.0
        %1887 = vmatprep.subr.mxu0 0.0
        %1888 = vmatpush1.msra.mxu0 0.0
        %1889 = vmatprep.subr.mxu0 0.0
        %1890 = vmatpush1.msra.mxu0 0.0
        %1891 = vmatprep.subr.mxu0 0.0
        %1892 = vmatpush1.msra.mxu0 0.0
        %1893 = vmatprep.mubr.f32.mxu0 0.0
        %1894 = vmatmul.mubr.f32.gmra.mrb[0].mxu0 %v1827
        %v1895 = vpop.f32.mrb[0].mxu0
        %v1896 = vadd.f32 0.0, %v1895
        %v1897 = vpop.f32.mrb[0].mxu0
        %1898 = vdwg.mxu0
        %vm1899 = vcmask 15360
        %v1901 = vsel %vm1899, %v1748, 0
        %v1904 = vsel %vm1899, %v1749, 0
        %vm1906 = vcmask 1041408
        %v1908 = vsel %vm1906, %v1896, 0
        %1910 = vmatprep.subr.mxu0 0.0
        %1911 = vmatpush1.msra.mxu0 %v1908
        %1912 = vmatprep.subr.mxu0 0.0
        %1913 = vmatpush1.msra.mxu0 0.0
        %1914 = vmatprep.subr.mxu0 0.0
        %1915 = vmatpush1.msra.mxu0 0.0
        %1916 = vmatprep.subr.mxu0 0.0
        %1917 = vmatpush1.msra.mxu0 0.0
        %1918 = vmatprep.subr.mxu0 0.0
        %1919 = vmatpush1.msra.mxu0 0.0
        %1920 = vmatprep.subr.mxu0 0.0
        %1921 = vmatpush1.msra.mxu0 0.0
        %1922 = vmatprep.subr.mxu0 0.0
        %1923 = vmatpush1.msra.mxu0 0.0
        %1924 = vmatprep.subr.mxu0 0.0
        %1925 = vmatpush1.msra.mxu0 0.0
        %1926 = vmatprep.subr.mxu0 0.0
        %1927 = vmatpush1.msra.mxu0 0.0
        %1928 = vmatprep.subr.mxu0 0.0
        %1929 = vmatpush1.msra.mxu0 0.0
        %1930 = vmatprep.subr.mxu0 0.0
        %1931 = vmatpush1.msra.mxu0 0.0
        %1932 = vmatprep.subr.mxu0 0.0
        %1933 = vmatpush1.msra.mxu0 0.0
        %1934 = vmatprep.subr.mxu0 0.0
        %1935 = vmatpush1.msra.mxu0 0.0
        %1936 = vmatprep.subr.mxu0 0.0
        %1937 = vmatpush1.msra.mxu0 0.0
        %1938 = vmatprep.subr.mxu0 0.0
        %1939 = vmatpush1.msra.mxu0 0.0
        %1940 = vmatprep.subr.mxu0 0.0
        %1941 = vmatpush1.msra.mxu0 0.0
        %1942 = vmatprep.subr.mxu0 0.0
        %1943 = vmatpush1.msra.mxu0 0.0
        %1944 = vmatprep.subr.mxu0 0.0
        %1945 = vmatpush1.msra.mxu0 0.0
        %1946 = vmatprep.subr.mxu0 0.0
        %1947 = vmatpush1.msra.mxu0 0.0
        %1948 = vmatprep.subr.mxu0 0.0
        %1949 = vmatpush1.msra.mxu0 0.0
        %1950 = vmatprep.subr.mxu0 0.0
        %1951 = vmatpush1.msra.mxu0 0.0
        %1952 = vmatprep.subr.mxu0 0.0
        %1953 = vmatpush1.msra.mxu0 0.0
        %1954 = vmatprep.subr.mxu0 0.0
        %1955 = vmatpush1.msra.mxu0 0.0
        %1956 = vmatprep.subr.mxu0 0.0
        %1957 = vmatpush1.msra.mxu0 0.0
        %1958 = vmatprep.subr.mxu0 0.0
        %1959 = vmatpush1.msra.mxu0 0.0
        %1960 = vmatprep.subr.mxu0 0.0
        %1961 = vmatpush1.msra.mxu0 0.0
        %1962 = vmatprep.subr.mxu0 0.0
        %1963 = vmatpush1.msra.mxu0 0.0
        %1964 = vmatprep.subr.mxu0 0.0
        %1965 = vmatpush1.msra.mxu0 0.0
        %1966 = vmatprep.subr.mxu0 0.0
        %1967 = vmatpush1.msra.mxu0 0.0
        %1968 = vmatprep.subr.mxu0 0.0
        %1969 = vmatpush1.msra.mxu0 0.0
        %1970 = vmatprep.subr.mxu0 0.0
        %1971 = vmatpush1.msra.mxu0 0.0
        %1972 = vmatprep.subr.mxu0 0.0
        %1973 = vmatpush1.msra.mxu0 0.0
        %1974 = vmatprep.mubr.f32.mxu0 0.0
        %1975 = vmatmul.mubr.f32.gmra.mrb[0].mxu0 %v1901
        %v1976 = vpop.f32.mrb[0].mxu0
        %v1977 = vadd.f32 0.0, %v1976
        %v1978 = vpop.f32.mrb[0].mxu0
        %1979 = vmatprep.mubr.f32.mxu0 0.0
        %1980 = vmatmul.mubr.f32.gmra.mrb[0].mxu0 %v1904
        %v1981 = vpop.f32.mrb[0].mxu0
        %v1982 = vadd.f32 0.0, %v1981
        %v1983 = vpop.f32.mrb[0].mxu0
        %1984 = vdwg.mxu0
        %vm1985 = vcmask 64512
        %v1987 = vsel %vm1985, %v1977, 0
        %v1990 = vsel %vm1985, %v1982, 0
        %1992 = vmatprep.subr.mxu0 0.0
        %1993 = vmatpush1.msra.mxu0 %v1746
        %1994 = vmatprep.subr.mxu0 0.0
        %1995 = vmatpush1.msra.mxu0 0.0
        %1996 = vmatprep.subr.mxu0 0.0
        %1997 = vmatpush1.msra.mxu0 0.0
        %1998 = vmatprep.subr.mxu0 0.0
        %1999 = vmatpush1.msra.mxu0 0.0
        %2000 = vmatprep.subr.mxu0 0.0
        %2001 = vmatpush1.msra.mxu0 0.0
        %2002 = vmatprep.subr.mxu0 0.0
        %2003 = vmatpush1.msra.mxu0 0.0
        %2004 = vmatprep.subr.mxu0 0.0
        %2005 = vmatpush1.msra.mxu0 0.0
        %2006 = vmatprep.subr.mxu0 0.0
        %2007 = vmatpush1.msra.mxu0 0.0
        %2008 = vmatprep.subr.mxu0 0.0
        %2009 = vmatpush1.msra.mxu0 0.0
        %2010 = vmatprep.subr.mxu0 0.0
        %2011 = vmatpush1.msra.mxu0 0.0
        %2012 = vmatprep.subr.mxu0 0.0
        %2013 = vmatpush1.msra.mxu0 0.0
        %2014 = vmatprep.subr.mxu0 0.0
        %2015 = vmatpush1.msra.mxu0 0.0
        %2016 = vmatprep.subr.mxu0 0.0
        %2017 = vmatpush1.msra.mxu0 0.0
        %2018 = vmatprep.subr.mxu0 0.0
        %2019 = vmatpush1.msra.mxu0 0.0
        %2020 = vmatprep.subr.mxu0 0.0
        %2021 = vmatpush1.msra.mxu0 0.0
        %2022 = vmatprep.subr.mxu0 0.0
        %2023 = vmatpush1.msra.mxu0 0.0
        %2024 = vmatprep.subr.mxu0 0.0
        %2025 = vmatpush1.msra.mxu0 0.0
        %2026 = vmatprep.subr.mxu0 0.0
        %2027 = vmatpush1.msra.mxu0 0.0
        %2028 = vmatprep.subr.mxu0 0.0
        %2029 = vmatpush1.msra.mxu0 0.0
        %2030 = vmatprep.subr.mxu0 0.0
        %2031 = vmatpush1.msra.mxu0 0.0
        %2032 = vmatprep.subr.mxu0 0.0
        %2033 = vmatpush1.msra.mxu0 0.0
        %2034 = vmatprep.subr.mxu0 0.0
        %2035 = vmatpush1.msra.mxu0 0.0
        %2036 = vmatprep.subr.mxu0 0.0
        %2037 = vmatpush1.msra.mxu0 0.0
        %2038 = vmatprep.subr.mxu0 0.0
        %2039 = vmatpush1.msra.mxu0 0.0
        %2040 = vmatprep.subr.mxu0 0.0
        %2041 = vmatpush1.msra.mxu0 0.0
        %2042 = vmatprep.subr.mxu0 0.0
        %2043 = vmatpush1.msra.mxu0 0.0
        %2044 = vmatprep.subr.mxu0 0.0
        %2045 = vmatpush1.msra.mxu0 0.0
        %2046 = vmatprep.subr.mxu0 0.0
        %2047 = vmatpush1.msra.mxu0 0.0
        %2048 = vmatprep.subr.mxu0 0.0
        %2049 = vmatpush1.msra.mxu0 0.0
        %2050 = vmatprep.subr.mxu0 0.0
        %2051 = vmatpush1.msra.mxu0 0.0
        %2052 = vmatprep.subr.mxu0 0.0
        %2053 = vmatpush1.msra.mxu0 0.0
        %2054 = vmatprep.subr.mxu0 0.0
        %2055 = vmatpush1.msra.mxu0 0.0
        %2056 = vmatprep.mubr.f32.mxu0 0.0
        %2057 = vmatmul.mubr.f32.gmra.mrb[0].mxu0 %v1987
        %v2058 = vpop.f32.mrb[0].mxu0
        %v2059 = vadd.f32 0.0, %v2058
        %v2060 = vpop.f32.mrb[0].mxu0
        %2061 = vmatprep.mubr.f32.mxu0 0.0
        %2062 = vmatmul.mubr.f32.gmra.mrb[0].mxu0 %v1990
        %v2063 = vpop.f32.mrb[0].mxu0
        %v2064 = vadd.f32 0.0, %v2063
        %v2065 = vpop.f32.mrb[0].mxu0
        %2066 = vdwg.mxu0
        %v2067 = vsub.f32 %v1722, %v2059
        %v2068 = vsub.f32 %v1727, %v2064
        %v2069 = vmul.f32 %v2067, %v2067
        %v2070 = vmul.f32 %v2068, %v2068
        %2071 = vmatprep.subr.mxu0 0.0
        %2072 = vmatpush1.msra.mxu0 %v1730
        %2073 = vmatprep.subr.mxu0 0.0
        %2074 = vmatpush1.msra.mxu0 %v1731
        %2075 = vmatprep.subr.mxu0 0.0
        %2076 = vmatpush1.msra.mxu0 %v1732
        %2077 = vmatprep.subr.mxu0 0.0
        %2078 = vmatpush1.msra.mxu0 %v1733
        %2079 = vmatprep.subr.mxu0 0.0
        %2080 = vmatpush1.msra.mxu0 %v1734
        %2081 = vmatprep.subr.mxu0 0.0
        %2082 = vmatpush1.msra.mxu0 %v1735
        %2083 = vmatprep.subr.mxu0 0.0
        %2084 = vmatpush1.msra.mxu0 %v1736
        %2085 = vmatprep.subr.mxu0 0.0
        %2086 = vmatpush1.msra.mxu0 %v1737
        %2087 = vmatprep.subr.mxu0 0.0
        %2088 = vmatpush1.msra.mxu0 %v1738
        %2089 = vmatprep.subr.mxu0 0.0
        %2090 = vmatpush1.msra.mxu0 %v1739
        %2091 = vmatprep.subr.mxu0 0.0
        %2092 = vmatpush1.msra.mxu0 %v1740
        %2093 = vmatprep.subr.mxu0 0.0
        %2094 = vmatpush1.msra.mxu0 %v1741
        %2095 = vmatprep.subr.mxu0 0.0
        %2096 = vmatpush1.msra.mxu0 %v1742
        %2097 = vmatprep.subr.mxu0 0.0
        %2098 = vmatpush1.msra.mxu0 %v1743
        %2099 = vmatprep.subr.mxu0 0.0
        %2100 = vmatpush1.msra.mxu0 %v1744
        %2101 = vmatprep.subr.mxu0 0.0
        %2102 = vmatpush1.msra.mxu0 %v1745
        %2103 = vmatprep.subr.mxu0 0.0
        %2104 = vmatpush1.msra.mxu0 0.0
        %2105 = vmatprep.subr.mxu0 0.0
        %2106 = vmatpush1.msra.mxu0 0.0
        %2107 = vmatprep.subr.mxu0 0.0
        %2108 = vmatpush1.msra.mxu0 0.0
        %2109 = vmatprep.subr.mxu0 0.0
        %2110 = vmatpush1.msra.mxu0 0.0
        %2111 = vmatprep.subr.mxu0 0.0
        %2112 = vmatpush1.msra.mxu0 0.0
        %2113 = vmatprep.subr.mxu0 0.0
        %2114 = vmatpush1.msra.mxu0 0.0
        %2115 = vmatprep.subr.mxu0 0.0
        %2116 = vmatpush1.msra.mxu0 0.0
        %2117 = vmatprep.subr.mxu0 0.0
        %2118 = vmatpush1.msra.mxu0 0.0
        %2119 = vmatprep.subr.mxu0 0.0
        %2120 = vmatpush1.msra.mxu0 0.0
        %2121 = vmatprep.subr.mxu0 0.0
        %2122 = vmatpush1.msra.mxu0 0.0
        %2123 = vmatprep.subr.mxu0 0.0
        %2124 = vmatpush1.msra.mxu0 0.0
        %2125 = vmatprep.subr.mxu0 0.0
        %2126 = vmatpush1.msra.mxu0 0.0
        %2127 = vmatprep.subr.mxu0 0.0
        %2128 = vmatpush1.msra.mxu0 0.0
        %2129 = vmatprep.subr.mxu0 0.0
        %2130 = vmatpush1.msra.mxu0 0.0
        %2131 = vmatprep.subr.mxu0 0.0
        %2132 = vmatpush1.msra.mxu0 0.0
        %2133 = vmatprep.subr.mxu0 0.0
        %2134 = vmatpush1.msra.mxu0 0.0
        %2135 = vmatprep.mubr.f32.mxu0 0.0
        %2136 = vmatmul.mubr.f32.gmra.mrb[0].mxu0 %v2069
        %v2137 = vpop.f32.mrb[0].mxu0
        %v2138 = vadd.f32 0.0, %v2137
        %v2139 = vpop.f32.mrb[0].mxu0
        %2140 = vmatprep.mubr.f32.mxu0 0.0
        %2141 = vmatmul.mubr.f32.gmra.mrb[0].mxu0 %v2070
        %v2142 = vpop.f32.mrb[0].mxu0
        %v2143 = vadd.f32 0.0, %v2142
        %v2144 = vpop.f32.mrb[0].mxu0
        %2145 = vdwg.mxu0
        %2146 = vmatprep.subr.mxu0 0.0
        %2147 = vmatpush1.msra.mxu0 %v2138
        %2148 = vmatprep.subr.mxu0 0.0
        %2149 = vmatpush1.msra.mxu0 %v2143
        %2150 = vmatprep.subr.mxu0 0.0
        %2151 = vmatpush1.msra.mxu0 0.0
        %2152 = vmatprep.subr.mxu0 0.0
        %2153 = vmatpush1.msra.mxu0 0.0
        %2154 = vmatprep.subr.mxu0 0.0
        %2155 = vmatpush1.msra.mxu0 0.0
        %2156 = vmatprep.subr.mxu0 0.0
        %2157 = vmatpush1.msra.mxu0 0.0
        %2158 = vmatprep.subr.mxu0 0.0
        %2159 = vmatpush1.msra.mxu0 0.0
        %2160 = vmatprep.subr.mxu0 0.0
        %2161 = vmatpush1.msra.mxu0 0.0
        %2162 = vmatprep.subr.mxu0 0.0
        %2163 = vmatpush1.msra.mxu0 0.0
        %2164 = vmatprep.subr.mxu0 0.0
        %2165 = vmatpush1.msra.mxu0 0.0
        %2166 = vmatprep.subr.mxu0 0.0
        %2167 = vmatpush1.msra.mxu0 0.0
        %2168 = vmatprep.subr.mxu0 0.0
        %2169 = vmatpush1.msra.mxu0 0.0
        %2170 = vmatprep.subr.mxu0 0.0
        %2171 = vmatpush1.msra.mxu0 0.0
        %2172 = vmatprep.subr.mxu0 0.0
        %2173 = vmatpush1.msra.mxu0 0.0
        %2174 = vmatprep.subr.mxu0 0.0
        %2175 = vmatpush1.msra.mxu0 0.0
        %2176 = vmatprep.subr.mxu0 0.0
        %2177 = vmatpush1.msra.mxu0 0.0
        %2178 = vmatprep.subr.mxu0 0.0
        %2179 = vmatpush1.msra.mxu0 0.0
        %2180 = vmatprep.subr.mxu0 0.0
        %2181 = vmatpush1.msra.mxu0 0.0
        %2182 = vmatprep.subr.mxu0 0.0
        %2183 = vmatpush1.msra.mxu0 0.0
        %2184 = vmatprep.subr.mxu0 0.0
        %2185 = vmatpush1.msra.mxu0 0.0
        %2186 = vmatprep.subr.mxu0 0.0
        %2187 = vmatpush1.msra.mxu0 0.0
        %2188 = vmatprep.subr.mxu0 0.0
        %2189 = vmatpush1.msra.mxu0 0.0
        %2190 = vmatprep.subr.mxu0 0.0
        %2191 = vmatpush1.msra.mxu0 0.0
        %2192 = vmatprep.subr.mxu0 0.0
        %2193 = vmatpush1.msra.mxu0 0.0
        %2194 = vmatprep.subr.mxu0 0.0
        %2195 = vmatpush1.msra.mxu0 0.0
        %2196 = vmatprep.subr.mxu0 0.0
        %2197 = vmatpush1.msra.mxu0 0.0
        %2198 = vmatprep.subr.mxu0 0.0
        %2199 = vmatpush1.msra.mxu0 0.0
        %2200 = vmatprep.subr.mxu0 0.0
        %2201 = vmatpush1.msra.mxu0 0.0
        %2202 = vmatprep.subr.mxu0 0.0
        %2203 = vmatpush1.msra.mxu0 0.0
        %2204 = vmatprep.subr.mxu0 0.0
        %2205 = vmatpush1.msra.mxu0 0.0
        %2206 = vmatprep.subr.mxu0 0.0
        %2207 = vmatpush1.msra.mxu0 0.0
        %2208 = vmatprep.subr.mxu0 0.0
        %2209 = vmatpush1.msra.mxu0 0.0
        %2210 = vmatprep.mubr.f32.mxu0 0.0
        %2211 = vmatmul.mubr.f32.gmra.mrb[0].mxu0 %v1827
        %v2212 = vpop.f32.mrb[0].mxu0
        %v2213 = vadd.f32 1e-05, %v2212
        %v2214 = vpop.f32.mrb[0].mxu0
        %2215 = vdwg.mxu0
        %v2216 = vrsqrt.pop %v2213
        %v2218 = vsel %vm1906, %v2216, 0
        %2220 = vmatprep.subr.mxu0 0.0
        %2221 = vmatpush1.msra.mxu0 %v2218
        %2222 = vmatprep.subr.mxu0 0.0
        %2223 = vmatpush1.msra.mxu0 0.0
        %2224 = vmatprep.subr.mxu0 0.0
        %2225 = vmatpush1.msra.mxu0 0.0
        %2226 = vmatprep.subr.mxu0 0.0
        %2227 = vmatpush1.msra.mxu0 0.0
        %2228 = vmatprep.subr.mxu0 0.0
        %2229 = vmatpush1.msra.mxu0 0.0
        %2230 = vmatprep.subr.mxu0 0.0
        %2231 = vmatpush1.msra.mxu0 0.0
        %2232 = vmatprep.subr.mxu0 0.0
        %2233 = vmatpush1.msra.mxu0 0.0
        %2234 = vmatprep.subr.mxu0 0.0
        %2235 = vmatpush1.msra.mxu0 0.0
        %2236 = vmatprep.subr.mxu0 0.0
        %2237 = vmatpush1.msra.mxu0 0.0
        %2238 = vmatprep.subr.mxu0 0.0
        %2239 = vmatpush1.msra.mxu0 0.0
        %2240 = vmatprep.subr.mxu0 0.0
        %2241 = vmatpush1.msra.mxu0 0.0
        %2242 = vmatprep.subr.mxu0 0.0
        %2243 = vmatpush1.msra.mxu0 0.0
        %2244 = vmatprep.subr.mxu0 0.0
        %2245 = vmatpush1.msra.mxu0 0.0
        %2246 = vmatprep.subr.mxu0 0.0
        %2247 = vmatpush1.msra.mxu0 0.0
        %2248 = vmatprep.subr.mxu0 0.0
        %2249 = vmatpush1.msra.mxu0 0.0
        %2250 = vmatprep.subr.mxu0 0.0
        %2251 = vmatpush1.msra.mxu0 0.0
        %2252 = vmatprep.subr.mxu0 0.0
        %2253 = vmatpush1.msra.mxu0 0.0
        %2254 = vmatprep.subr.mxu0 0.0
        %2255 = vmatpush1.msra.mxu0 0.0
        %2256 = vmatprep.subr.mxu0 0.0
        %2257 = vmatpush1.msra.mxu0 0.0
        %2258 = vmatprep.subr.mxu0 0.0
        %2259 = vmatpush1.msra.mxu0 0.0
        %2260 = vmatprep.subr.mxu0 0.0
        %2261 = vmatpush1.msra.mxu0 0.0
        %2262 = vmatprep.subr.mxu0 0.0
        %2263 = vmatpush1.msra.mxu0 0.0
        %2264 = vmatprep.subr.mxu0 0.0
        %2265 = vmatpush1.msra.mxu0 0.0
        %2266 = vmatprep.subr.mxu0 0.0
        %2267 = vmatpush1.msra.mxu0 0.0
        %2268 = vmatprep.subr.mxu0 0.0
        %2269 = vmatpush1.msra.mxu0 0.0
        %2270 = vmatprep.subr.mxu0 0.0
        %2271 = vmatpush1.msra.mxu0 0.0
        %2272 = vmatprep.subr.mxu0 0.0
        %2273 = vmatpush1.msra.mxu0 0.0
        %2274 = vmatprep.subr.mxu0 0.0
        %2275 = vmatpush1.msra.mxu0 0.0
        %2276 = vmatprep.subr.mxu0 0.0
        %2277 = vmatpush1.msra.mxu0 0.0
        %2278 = vmatprep.subr.mxu0 0.0
        %2279 = vmatpush1.msra.mxu0 0.0
        %2280 = vmatprep.subr.mxu0 0.0
        %2281 = vmatpush1.msra.mxu0 0.0
        %2282 = vmatprep.subr.mxu0 0.0
        %2283 = vmatpush1.msra.mxu0 0.0
        %2284 = vmatprep.mubr.f32.mxu0 0.0
        %2285 = vmatmul.mubr.f32.gmra.mrb[0].mxu0 %v1901
        %v2286 = vpop.f32.mrb[0].mxu0
        %v2287 = vadd.f32 0.0, %v2286
        %v2288 = vpop.f32.mrb[0].mxu0
        %2289 = vmatprep.mubr.f32.mxu0 0.0
        %2290 = vmatmul.mubr.f32.gmra.mrb[0].mxu0 %v1904
        %v2291 = vpop.f32.mrb[0].mxu0
        %v2292 = vadd.f32 0.0, %v2291
        %v2293 = vpop.f32.mrb[0].mxu0
        %2294 = vdwg.mxu0
        %v2295 = vld [vmem:[%s17] sm:$0xff]
        %v2296 = vld [vmem:[%s17 + $0x8] sm:$0xff]
        %2298 = vset.pattern.permute.xlu0 0
        %2299 = vperm.xlu0 %2298, %v2295
        %v2300 = vpop.permute.xlu0 %2299
        %2303 = vset.pattern.permute.xlu0 0
        %2304 = vperm.xlu0 %2303, %v2296
        %v2305 = vpop.permute.xlu0 %2304
        %v2307 = vmul.f32 %v2287, %v2300
        %v2308 = vmul.f32 %v2292, %v2305
        %v2310 = vsel %vm1985, %v2307, 0
        %v2313 = vsel %vm1985, %v2308, 0
        %2315 = vmatprep.subr.mxu0 0.0
        %2316 = vmatpush1.msra.mxu0 %v1746
        %2317 = vmatprep.subr.mxu0 0.0
        %2318 = vmatpush1.msra.mxu0 0.0
        %2319 = vmatprep.subr.mxu0 0.0
        %2320 = vmatpush1.msra.mxu0 0.0
        %2321 = vmatprep.subr.mxu0 0.0
        %2322 = vmatpush1.msra.mxu0 0.0
        %2323 = vmatprep.subr.mxu0 0.0
        %2324 = vmatpush1.msra.mxu0 0.0
        %2325 = vmatprep.subr.mxu0 0.0
        %2326 = vmatpush1.msra.mxu0 0.0
        %2327 = vmatprep.subr.mxu0 0.0
        %2328 = vmatpush1.msra.mxu0 0.0
        %2329 = vmatprep.subr.mxu0 0.0
        %2330 = vmatpush1.msra.mxu0 0.0
        %2331 = vmatprep.subr.mxu0 0.0
        %2332 = vmatpush1.msra.mxu0 0.0
        %2333 = vmatprep.subr.mxu0 0.0
        %2334 = vmatpush1.msra.mxu0 0.0
        %2335 = vmatprep.subr.mxu0 0.0
        %2336 = vmatpush1.msra.mxu0 0.0
        %2337 = vmatprep.subr.mxu0 0.0
        %2338 = vmatpush1.msra.mxu0 0.0
        %2339 = vmatprep.subr.mxu0 0.0
        %2340 = vmatpush1.msra.mxu0 0.0
        %2341 = vmatprep.subr.mxu0 0.0
        %2342 = vmatpush1.msra.mxu0 0.0
        %2343 = vmatprep.subr.mxu0 0.0
        %2344 = vmatpush1.msra.mxu0 0.0
        %2345 = vmatprep.subr.mxu0 0.0
        %2346 = vmatpush1.msra.mxu0 0.0
        %2347 = vmatprep.subr.mxu0 0.0
        %2348 = vmatpush1.msra.mxu0 0.0
        %2349 = vmatprep.subr.mxu0 0.0
        %2350 = vmatpush1.msra.mxu0 0.0
        %2351 = vmatprep.subr.mxu0 0.0
        %2352 = vmatpush1.msra.mxu0 0.0
        %2353 = vmatprep.subr.mxu0 0.0
        %2354 = vmatpush1.msra.mxu0 0.0
        %2355 = vmatprep.subr.mxu0 0.0
        %2356 = vmatpush1.msra.mxu0 0.0
        %2357 = vmatprep.subr.mxu0 0.0
        %2358 = vmatpush1.msra.mxu0 0.0
        %2359 = vmatprep.subr.mxu0 0.0
        %2360 = vmatpush1.msra.mxu0 0.0
        %2361 = vmatprep.subr.mxu0 0.0
        %2362 = vmatpush1.msra.mxu0 0.0
        %2363 = vmatprep.subr.mxu0 0.0
        %2364 = vmatpush1.msra.mxu0 0.0
        %2365 = vmatprep.subr.mxu0 0.0
        %2366 = vmatpush1.msra.mxu0 0.0
        %2367 = vmatprep.subr.mxu0 0.0
        %2368 = vmatpush1.msra.mxu0 0.0
        %2369 = vmatprep.subr.mxu0 0.0
        %2370 = vmatpush1.msra.mxu0 0.0
        %2371 = vmatprep.subr.mxu0 0.0
        %2372 = vmatpush1.msra.mxu0 0.0
        %2373 = vmatprep.subr.mxu0 0.0
        %2374 = vmatpush1.msra.mxu0 0.0
        %2375 = vmatprep.subr.mxu0 0.0
        %2376 = vmatpush1.msra.mxu0 0.0
        %2377 = vmatprep.subr.mxu0 0.0
        %2378 = vmatpush1.msra.mxu0 0.0
        %2379 = vmatprep.mubr.f32.mxu0 0.0
        %2380 = vmatmul.mubr.f32.gmra.mrb[0].mxu0 %v2310
        %v2381 = vpop.f32.mrb[0].mxu0
        %v2382 = vadd.f32 0.0, %v2381
        %v2383 = vpop.f32.mrb[0].mxu0
        %2384 = vmatprep.mubr.f32.mxu0 0.0
        %2385 = vmatmul.mubr.f32.gmra.mrb[0].mxu0 %v2313
        %v2386 = vpop.f32.mrb[0].mxu0
        %v2387 = vadd.f32 0.0, %v2386
        %v2388 = vpop.f32.mrb[0].mxu0
        %2389 = vdwg.mxu0
        %v2390 = vmul.f32 %v2067, %v2382
        %v2391 = vmul.f32 %v2068, %v2387
        %v2392 = vld [vmem:[%s18] sm:$0xff]
        %v2393 = vld [vmem:[%s18 + $0x8] sm:$0xff]
        %2395 = vset.pattern.permute.xlu0 0
        %2396 = vperm.xlu0 %2395, %v2392
        %v2397 = vpop.permute.xlu0 %2396
        %2400 = vset.pattern.permute.xlu0 0
        %2401 = vperm.xlu0 %2400, %v2393
        %v2402 = vpop.permute.xlu0 %2401
        %v2404 = vadd.f32 %v2390, %v2397
        %v2405 = vadd.f32 %v2391, %v2402
        %v2406 = vld [vmem:[%s13] sm:$0xff]
        %v2407 = vld [vmem:[%s14] sm:$0xff]
        %v2408 = vlaneseq
        %v2409 = vshrl.u32 %v2408, 7
        %v2410 = vsub.s32 0, %v2409
        %v2411 = vrot.slane %v2406, %v2410
        %v2412 = vadd.f32 %v2404, %v2411
        %v2413 = vadd.f32 %v2405, %v2411
        %2414 = vmax.xlane.f32.xlu0 %v2412
        %v2415 = vpop.xlane.xlu0 %2414
        %2416 = vmax.xlane.f32.xlu0 %v2413
        %v2417 = vpop.xlane.xlu0 %2416
        %v2418 = vlaneseq
        %v2419 = vshrl.u32 %v2418, 7
        %v2420 = vsub.s32 0, %v2419
        %v2421 = vrot.slane %v2407, %v2420
        %v2422 = vmul.f32 %v2415, %v2421
        %v2423 = vmul.f32 %v2417, %v2421
        %v2424 = vadd.f32 %v2422, 0.0
        %v2425 = vadd.f32 %v2423, 0.0
        %v2426 = vlaneseq
        %v2427 = vshrl.u32 %v2426, 7
        %v2428 = vsub.s32 1, %v2427
        %v2429 = vrot.slane %v2406, %v2428
        %v2430 = vadd.f32 %v2404, %v2429
        %v2431 = vadd.f32 %v2405, %v2429
        %2432 = vmax.xlane.f32.xlu0 %v2430
        %v2433 = vpop.xlane.xlu0 %2432
        %2434 = vmax.xlane.f32.xlu0 %v2431
        %v2435 = vpop.xlane.xlu0 %2434
        %v2436 = vlaneseq
        %v2437 = vshrl.u32 %v2436, 7
        %v2438 = vsub.s32 1, %v2437
        %v2439 = vrot.slane %v2407, %v2438
        %v2440 = vmul.f32 %v2433, %v2439
        %v2441 = vmul.f32 %v2435, %v2439
        %v2442 = vadd.f32 %v2424, %v2440
        %v2443 = vadd.f32 %v2425, %v2441
        %v2444 = vlaneseq
        %v2445 = vshrl.u32 %v2444, 7
        %v2446 = vsub.s32 2, %v2445
        %v2447 = vrot.slane %v2406, %v2446
        %v2448 = vadd.f32 %v2404, %v2447
        %v2449 = vadd.f32 %v2405, %v2447
        %2450 = vmax.xlane.f32.xlu0 %v2448
        %v2451 = vpop.xlane.xlu0 %2450
        %2452 = vmax.xlane.f32.xlu0 %v2449
        %v2453 = vpop.xlane.xlu0 %2452
        %v2454 = vlaneseq
        %v2455 = vshrl.u32 %v2454, 7
        %v2456 = vsub.s32 2, %v2455
        %v2457 = vrot.slane %v2407, %v2456
        %v2458 = vmul.f32 %v2451, %v2457
        %v2459 = vmul.f32 %v2453, %v2457
        %v2460 = vadd.f32 %v2442, %v2458
        %v2461 = vadd.f32 %v2443, %v2459
        %v2462 = vlaneseq
        %v2463 = vshrl.u32 %v2462, 7
        %v2464 = vsub.s32 3, %v2463
        %v2465 = vrot.slane %v2406, %v2464
        %v2466 = vadd.f32 %v2404, %v2465
        %v2467 = vadd.f32 %v2405, %v2465
        %2468 = vmax.xlane.f32.xlu0 %v2466
        %v2469 = vpop.xlane.xlu0 %2468
        %2470 = vmax.xlane.f32.xlu0 %v2467
        %v2471 = vpop.xlane.xlu0 %2470
        %v2472 = vlaneseq
        %v2473 = vshrl.u32 %v2472, 7
        %v2474 = vsub.s32 3, %v2473
        %v2475 = vrot.slane %v2407, %v2474
        %v2476 = vmul.f32 %v2469, %v2475
        %v2477 = vmul.f32 %v2471, %v2475
        %v2478 = vadd.f32 %v2460, %v2476
        %v2479 = vadd.f32 %v2461, %v2477
        %v2480 = vlaneseq
        %v2481 = vshrl.u32 %v2480, 7
        %v2482 = vsub.s32 4, %v2481
        %v2483 = vrot.slane %v2406, %v2482
        %v2484 = vadd.f32 %v2404, %v2483
        %v2485 = vadd.f32 %v2405, %v2483
        %2486 = vmax.xlane.f32.xlu0 %v2484
        %v2487 = vpop.xlane.xlu0 %2486
        %2488 = vmax.xlane.f32.xlu0 %v2485
        %v2489 = vpop.xlane.xlu0 %2488
        %v2490 = vlaneseq
        %v2491 = vshrl.u32 %v2490, 7
        %v2492 = vsub.s32 4, %v2491
        %v2493 = vrot.slane %v2407, %v2492
        %v2494 = vmul.f32 %v2487, %v2493
        %v2495 = vmul.f32 %v2489, %v2493
        %v2496 = vadd.f32 %v2478, %v2494
        %v2497 = vadd.f32 %v2479, %v2495
        %v2498 = vlaneseq
        %v2499 = vshrl.u32 %v2498, 7
        %v2500 = vsub.s32 5, %v2499
        %v2501 = vrot.slane %v2406, %v2500
        %v2502 = vadd.f32 %v2404, %v2501
        %v2503 = vadd.f32 %v2405, %v2501
        %2504 = vmax.xlane.f32.xlu0 %v2502
        %v2505 = vpop.xlane.xlu0 %2504
        %2506 = vmax.xlane.f32.xlu0 %v2503
        %v2507 = vpop.xlane.xlu0 %2506
        %v2508 = vlaneseq
        %v2509 = vshrl.u32 %v2508, 7
        %v2510 = vsub.s32 5, %v2509
        %v2511 = vrot.slane %v2407, %v2510
        %v2512 = vmul.f32 %v2505, %v2511
        %v2513 = vmul.f32 %v2507, %v2511
        %v2514 = vadd.f32 %v2496, %v2512
        %v2515 = vadd.f32 %v2497, %v2513
        %v2516 = vlaneseq
        %v2517 = vshrl.u32 %v2516, 7
        %v2518 = vsub.s32 6, %v2517
        %v2519 = vrot.slane %v2406, %v2518
        %v2520 = vadd.f32 %v2404, %v2519
        %v2521 = vadd.f32 %v2405, %v2519
        %2522 = vmax.xlane.f32.xlu0 %v2520
        %v2523 = vpop.xlane.xlu0 %2522
        %2524 = vmax.xlane.f32.xlu0 %v2521
        %v2525 = vpop.xlane.xlu0 %2524
        %v2526 = vlaneseq
        %v2527 = vshrl.u32 %v2526, 7
        %v2528 = vsub.s32 6, %v2527
        %v2529 = vrot.slane %v2407, %v2528
        %v2530 = vmul.f32 %v2523, %v2529
        %v2531 = vmul.f32 %v2525, %v2529
        %v2532 = vadd.f32 %v2514, %v2530
        %v2533 = vadd.f32 %v2515, %v2531
        %v2534 = vlaneseq
        %v2535 = vshrl.u32 %v2534, 7
        %v2536 = vsub.s32 7, %v2535
        %v2537 = vrot.slane %v2406, %v2536
        %v2538 = vadd.f32 %v2404, %v2537
        %v2539 = vadd.f32 %v2405, %v2537
        %2540 = vmax.xlane.f32.xlu0 %v2538
        %v2541 = vpop.xlane.xlu0 %2540
        %2542 = vmax.xlane.f32.xlu0 %v2539
        %v2543 = vpop.xlane.xlu0 %2542
        %v2544 = vlaneseq
        %v2545 = vshrl.u32 %v2544, 7
        %v2546 = vsub.s32 7, %v2545
        %v2547 = vrot.slane %v2407, %v2546
        %v2548 = vmul.f32 %v2541, %v2547
        %v2549 = vmul.f32 %v2543, %v2547
        %v2550 = vadd.f32 %v2532, %v2548
        %v2551 = vadd.f32 %v2533, %v2549
        %v2552 = vld [vmem:[%s19] sm:$0xf]
        %v2553 = vld [vmem:[%s20] sm:$0xf]
        %2555 = vset.pattern.permute.xlu0 0
        %2556 = vperm.xlu0 %2555, %v2553
        %v2557 = vpop.permute.xlu0 %2556
        %v2560 = vsel %vm1825, %v2552, 0
        %2562 = vmatprep.subr.mxu0 0.0
        %2563 = vmatpush1.msra.mxu0 %v2550
        %2564 = vmatprep.subr.mxu0 0.0
        %2565 = vmatpush1.msra.mxu0 %v2551
        %2566 = vmatprep.subr.mxu0 0.0
        %2567 = vmatpush1.msra.mxu0 0.0
        %2568 = vmatprep.subr.mxu0 0.0
        %2569 = vmatpush1.msra.mxu0 0.0
        %2570 = vmatprep.subr.mxu0 0.0
        %2571 = vmatpush1.msra.mxu0 0.0
        %2572 = vmatprep.subr.mxu0 0.0
        %2573 = vmatpush1.msra.mxu0 0.0
        %2574 = vmatprep.subr.mxu0 0.0
        %2575 = vmatpush1.msra.mxu0 0.0
        %2576 = vmatprep.subr.mxu0 0.0
        %2577 = vmatpush1.msra.mxu0 0.0
        %2578 = vmatprep.subr.mxu0 0.0
        %2579 = vmatpush1.msra.mxu0 0.0
        %2580 = vmatprep.subr.mxu0 0.0
        %2581 = vmatpush1.msra.mxu0 0.0
        %2582 = vmatprep.subr.mxu0 0.0
        %2583 = vmatpush1.msra.mxu0 0.0
        %2584 = vmatprep.subr.mxu0 0.0
        %2585 = vmatpush1.msra.mxu0 0.0
        %2586 = vmatprep.subr.mxu0 0.0
        %2587 = vmatpush1.msra.mxu0 0.0
        %2588 = vmatprep.subr.mxu0 0.0
        %2589 = vmatpush1.msra.mxu0 0.0
        %2590 = vmatprep.subr.mxu0 0.0
        %2591 = vmatpush1.msra.mxu0 0.0
        %2592 = vmatprep.subr.mxu0 0.0
        %2593 = vmatpush1.msra.mxu0 0.0
        %2594 = vmatprep.subr.mxu0 0.0
        %2595 = vmatpush1.msra.mxu0 0.0
        %2596 = vmatprep.subr.mxu0 0.0
        %2597 = vmatpush1.msra.mxu0 0.0
        %2598 = vmatprep.subr.mxu0 0.0
        %2599 = vmatpush1.msra.mxu0 0.0
        %2600 = vmatprep.subr.mxu0 0.0
        %2601 = vmatpush1.msra.mxu0 0.0
        %2602 = vmatprep.subr.mxu0 0.0
        %2603 = vmatpush1.msra.mxu0 0.0
        %2604 = vmatprep.subr.mxu0 0.0
        %2605 = vmatpush1.msra.mxu0 0.0
        %2606 = vmatprep.subr.mxu0 0.0
        %2607 = vmatpush1.msra.mxu0 0.0
        %2608 = vmatprep.subr.mxu0 0.0
        %2609 = vmatpush1.msra.mxu0 0.0
        %2610 = vmatprep.subr.mxu0 0.0
        %2611 = vmatpush1.msra.mxu0 0.0
        %2612 = vmatprep.subr.mxu0 0.0
        %2613 = vmatpush1.msra.mxu0 0.0
        %2614 = vmatprep.subr.mxu0 0.0
        %2615 = vmatpush1.msra.mxu0 0.0
        %2616 = vmatprep.subr.mxu0 0.0
        %2617 = vmatpush1.msra.mxu0 0.0
        %2618 = vmatprep.subr.mxu0 0.0
        %2619 = vmatpush1.msra.mxu0 0.0
        %2620 = vmatprep.subr.mxu0 0.0
        %2621 = vmatpush1.msra.mxu0 0.0
        %2622 = vmatprep.subr.mxu0 0.0
        %2623 = vmatpush1.msra.mxu0 0.0
        %2624 = vmatprep.subr.mxu0 0.0
        %2625 = vmatpush1.msra.mxu0 0.0
        %2626 = vmatprep.mubr.f32.mxu0 0.0
        %2627 = vmatmul.mubr.f32.gmra.mrb[0].mxu0 %v2560
        %v2628 = vpop.f32.mrb[0].mxu0
        %v2629 = vadd.f32 %v2557, %v2628
        %v2630 = vpop.f32.mrb[0].mxu0
        %2631 = vdwg.mxu0
        %vm2632 = vcmp.gt.f32.partialorder %v2629, 0.0
        %v2633 = vmin.f32 %v2629, 0.0
        %v2634 = vmul.f32 %v2633, 1.442695
        %v2635 = vpow.pop %v2634
        %v2636 = vsub.f32 %v2635, 1.0
        %v2637 = vsel %vm2632, %v2629, %v2636
        %v2638 = vld [vmem:[%s21] sm:$0xff]
        %v2639 = vld [vmem:[%s21 + $0x8] sm:$0xff]
        %v2640 = vld [vmem:[%s22] sm:$0xff]
        %v2641 = vld [vmem:[%s22 + $0x8] sm:$0xff]
        %2643 = vset.pattern.permute.xlu0 0
        %2644 = vperm.xlu0 %2643, %v2640
        %v2645 = vpop.permute.xlu0 %2644
        %2648 = vset.pattern.permute.xlu0 0
        %2649 = vperm.xlu0 %2648, %v2641
        %v2650 = vpop.permute.xlu0 %2649
        %vm2652 = vcmask 31744
        %v2654 = vsel %vm2652, %v2638, 0
        %v2657 = vsel %vm2652, %v2639, 0
        %vm2659 = vcmask 1043456
        %v2661 = vsel %vm2659, %v2637, 0
        %2663 = vmatprep.subr.mxu0 0.0
        %2664 = vmatpush1.msra.mxu0 %v2661
        %2665 = vmatprep.subr.mxu0 0.0
        %2666 = vmatpush1.msra.mxu0 0.0
        %2667 = vmatprep.subr.mxu0 0.0
        %2668 = vmatpush1.msra.mxu0 0.0
        %2669 = vmatprep.subr.mxu0 0.0
        %2670 = vmatpush1.msra.mxu0 0.0
        %2671 = vmatprep.subr.mxu0 0.0
        %2672 = vmatpush1.msra.mxu0 0.0
        %2673 = vmatprep.subr.mxu0 0.0
        %2674 = vmatpush1.msra.mxu0 0.0
        %2675 = vmatprep.subr.mxu0 0.0
        %2676 = vmatpush1.msra.mxu0 0.0
        %2677 = vmatprep.subr.mxu0 0.0
        %2678 = vmatpush1.msra.mxu0 0.0
        %2679 = vmatprep.subr.mxu0 0.0
        %2680 = vmatpush1.msra.mxu0 0.0
        %2681 = vmatprep.subr.mxu0 0.0
        %2682 = vmatpush1.msra.mxu0 0.0
        %2683 = vmatprep.subr.mxu0 0.0
        %2684 = vmatpush1.msra.mxu0 0.0
        %2685 = vmatprep.subr.mxu0 0.0
        %2686 = vmatpush1.msra.mxu0 0.0
        %2687 = vmatprep.subr.mxu0 0.0
        %2688 = vmatpush1.msra.mxu0 0.0
        %2689 = vmatprep.subr.mxu0 0.0
        %2690 = vmatpush1.msra.mxu0 0.0
        %2691 = vmatprep.subr.mxu0 0.0
        %2692 = vmatpush1.msra.mxu0 0.0
        %2693 = vmatprep.subr.mxu0 0.0
        %2694 = vmatpush1.msra.mxu0 0.0
        %2695 = vmatprep.subr.mxu0 0.0
        %2696 = vmatpush1.msra.mxu0 0.0
        %2697 = vmatprep.subr.mxu0 0.0
        %2698 = vmatpush1.msra.mxu0 0.0
        %2699 = vmatprep.subr.mxu0 0.0
        %2700 = vmatpush1.msra.mxu0 0.0
        %2701 = vmatprep.subr.mxu0 0.0
        %2702 = vmatpush1.msra.mxu0 0.0
        %2703 = vmatprep.subr.mxu0 0.0
        %2704 = vmatpush1.msra.mxu0 0.0
        %2705 = vmatprep.subr.mxu0 0.0
        %2706 = vmatpush1.msra.mxu0 0.0
        %2707 = vmatprep.subr.mxu0 0.0
        %2708 = vmatpush1.msra.mxu0 0.0
        %2709 = vmatprep.subr.mxu0 0.0
        %2710 = vmatpush1.msra.mxu0 0.0
        %2711 = vmatprep.subr.mxu0 0.0
        %2712 = vmatpush1.msra.mxu0 0.0
        %2713 = vmatprep.subr.mxu0 0.0
        %2714 = vmatpush1.msra.mxu0 0.0
        %2715 = vmatprep.subr.mxu0 0.0
        %2716 = vmatpush1.msra.mxu0 0.0
        %2717 = vmatprep.subr.mxu0 0.0
        %2718 = vmatpush1.msra.mxu0 0.0
        %2719 = vmatprep.subr.mxu0 0.0
        %2720 = vmatpush1.msra.mxu0 0.0
        %2721 = vmatprep.subr.mxu0 0.0
        %2722 = vmatpush1.msra.mxu0 0.0
        %2723 = vmatprep.subr.mxu0 0.0
        %2724 = vmatpush1.msra.mxu0 0.0
        %2725 = vmatprep.subr.mxu0 0.0
        %2726 = vmatpush1.msra.mxu0 0.0
        %2727 = vmatprep.mubr.f32.mxu0 0.0
        %2728 = vmatmul.mubr.f32.gmra.mrb[0].mxu0 %v2654
        %v2729 = vpop.f32.mrb[0].mxu0
        %v2730 = vadd.f32 %v2645, %v2729
        %v2731 = vpop.f32.mrb[0].mxu0
        %2732 = vmatprep.mubr.f32.mxu0 0.0
        %2733 = vmatmul.mubr.f32.gmra.mrb[0].mxu0 %v2657
        %v2734 = vpop.f32.mrb[0].mxu0
        %v2735 = vadd.f32 %v2650, %v2734
        %v2736 = vpop.f32.mrb[0].mxu0
        %2737 = vdwg.mxu0
        %v2738 = vmul.f32 %v2730, 0.5
        %v2739 = vmul.f32 %v2735, 0.5
        %v2740 = vtanh.pop %v2738
        %v2741 = vtanh.pop %v2739
        %v2742 = vadd.f32 %v2740, 1.0
        %v2743 = vadd.f32 %v2741, 1.0
        %v2744 = vmul.f32 %v2742, 0.5
        %v2745 = vmul.f32 %v2743, 0.5
        %v2747 = vsel %vm1985, %v2744, 0
        %v2750 = vsel %vm1985, %v2745, 0
        %2752 = vmatprep.subr.mxu0 0.0
        %2753 = vmatpush1.msra.mxu0 %v1746
        %2754 = vmatprep.subr.mxu0 0.0
        %2755 = vmatpush1.msra.mxu0 0.0
        %2756 = vmatprep.subr.mxu0 0.0
        %2757 = vmatpush1.msra.mxu0 0.0
        %2758 = vmatprep.subr.mxu0 0.0
        %2759 = vmatpush1.msra.mxu0 0.0
        %2760 = vmatprep.subr.mxu0 0.0
        %2761 = vmatpush1.msra.mxu0 0.0
        %2762 = vmatprep.subr.mxu0 0.0
        %2763 = vmatpush1.msra.mxu0 0.0
        %2764 = vmatprep.subr.mxu0 0.0
        %2765 = vmatpush1.msra.mxu0 0.0
        %2766 = vmatprep.subr.mxu0 0.0
        %2767 = vmatpush1.msra.mxu0 0.0
        %2768 = vmatprep.subr.mxu0 0.0
        %2769 = vmatpush1.msra.mxu0 0.0
        %2770 = vmatprep.subr.mxu0 0.0
        %2771 = vmatpush1.msra.mxu0 0.0
        %2772 = vmatprep.subr.mxu0 0.0
        %2773 = vmatpush1.msra.mxu0 0.0
        %2774 = vmatprep.subr.mxu0 0.0
        %2775 = vmatpush1.msra.mxu0 0.0
        %2776 = vmatprep.subr.mxu0 0.0
        %2777 = vmatpush1.msra.mxu0 0.0
        %2778 = vmatprep.subr.mxu0 0.0
        %2779 = vmatpush1.msra.mxu0 0.0
        %2780 = vmatprep.subr.mxu0 0.0
        %2781 = vmatpush1.msra.mxu0 0.0
        %2782 = vmatprep.subr.mxu0 0.0
        %2783 = vmatpush1.msra.mxu0 0.0
        %2784 = vmatprep.subr.mxu0 0.0
        %2785 = vmatpush1.msra.mxu0 0.0
        %2786 = vmatprep.subr.mxu0 0.0
        %2787 = vmatpush1.msra.mxu0 0.0
        %2788 = vmatprep.subr.mxu0 0.0
        %2789 = vmatpush1.msra.mxu0 0.0
        %2790 = vmatprep.subr.mxu0 0.0
        %2791 = vmatpush1.msra.mxu0 0.0
        %2792 = vmatprep.subr.mxu0 0.0
        %2793 = vmatpush1.msra.mxu0 0.0
        %2794 = vmatprep.subr.mxu0 0.0
        %2795 = vmatpush1.msra.mxu0 0.0
        %2796 = vmatprep.subr.mxu0 0.0
        %2797 = vmatpush1.msra.mxu0 0.0
        %2798 = vmatprep.subr.mxu0 0.0
        %2799 = vmatpush1.msra.mxu0 0.0
        %2800 = vmatprep.subr.mxu0 0.0
        %2801 = vmatpush1.msra.mxu0 0.0
        %2802 = vmatprep.subr.mxu0 0.0
        %2803 = vmatpush1.msra.mxu0 0.0
        %2804 = vmatprep.subr.mxu0 0.0
        %2805 = vmatpush1.msra.mxu0 0.0
        %2806 = vmatprep.subr.mxu0 0.0
        %2807 = vmatpush1.msra.mxu0 0.0
        %2808 = vmatprep.subr.mxu0 0.0
        %2809 = vmatpush1.msra.mxu0 0.0
        %2810 = vmatprep.subr.mxu0 0.0
        %2811 = vmatpush1.msra.mxu0 0.0
        %2812 = vmatprep.subr.mxu0 0.0
        %2813 = vmatpush1.msra.mxu0 0.0
        %2814 = vmatprep.subr.mxu0 0.0
        %2815 = vmatpush1.msra.mxu0 0.0
        %2816 = vmatprep.mubr.f32.mxu0 0.0
        %2817 = vmatmul.mubr.f32.gmra.mrb[0].mxu0 %v2747
        %v2818 = vpop.f32.mrb[0].mxu0
        %v2819 = vadd.f32 1.0, %v2818
        %v2820 = vpop.f32.mrb[0].mxu0
        %2821 = vmatprep.mubr.f32.mxu0 0.0
        %2822 = vmatmul.mubr.f32.gmra.mrb[0].mxu0 %v2750
        %v2823 = vpop.f32.mrb[0].mxu0
        %v2824 = vadd.f32 1.0, %v2823
        %v2825 = vpop.f32.mrb[0].mxu0
        %2826 = vdwg.mxu0
        %v2827 = vmul.f32 %v2404, %v2819
        %v2828 = vmul.f32 %v2405, %v2824
        %2829 = vst [vmem:[%s803] sm:$0xff] %v2827
        %2830 = vst [vmem:[%s803 + $0x8] sm:$0xff] %v2828
        %s2831 = sand.u32 %s539, 1
        %s2832 = scalar_lea.sflag [#allocation4], %s2831
        %s2833 = sand.u32 %s539, 1
        %s2834 = smul.addr %s2833, 16
        %s2835 = scalar_lea.vmem [#allocation14], %s2834
        // Predicated region
        $region141: #{tpu_custom_call.1} parent=111 // pred_check
          %p2836 = pneg %p549
        $region142: #{tpu_custom_call.1} parent=111 // pred_check_branch
          %2838 = sbr.rel (%p2836) target = $region144
        $region143: #{tpu_custom_call.1} parent=111 // pred_region
          %s2840 = ssub.s32 256, 256
          %2841 = vsyncadd %s2832, %s2840
          %s2842 = smul.addr %s43, 2
          %s2843 = smul.addr %s2842, 128
          %s2844 = scalar_lea.hbm %s23, %s2843
          %s2845 = sshll.u32 %s2835, 4
          %s2846 = int_to_ptr.vmem [resolvable:$true] %s2845
          %2851 = dma.vmem_to_hbm [thread:$0]  %s2846, 256, %s2844, %s2832, 128, 128, 8
        $region144: #{tpu_custom_call.1} parent=111 // pred_fallthru
          _
      $region112: #{tpu_custom_call.1} parent=5 // pred_fallthru
        _
      %p2852 = scmp.le.s32.totalorder 2, %s38
      // Predicated region
      $region145: #{tpu_custom_call.1} parent=5 // pred_check
        %p2853 = pneg %p2852
      $region146: #{tpu_custom_call.1} parent=5 // pred_check_branch
        %2855 = sbr.rel (%p2853) target = $region148
      $region147: #{tpu_custom_call.1} parent=5 // pred_region
        %s2856 = ssub.s32 %s38, 2
        // Predicated region
        $region149: #{tpu_custom_call.1} parent=147 // pred_check
          %p2857 = pneg %p555
        $region150: #{tpu_custom_call.1} parent=147 // pred_check_branch
          %2859 = sbr.rel (%p2857) target = $region152
        $region151: #{tpu_custom_call.1} parent=147 // pred_region
          %s2860 = sand.u32 %s540, 1
          %s2861 = scalar_lea.sflag [#allocation4], %s2860
          %s2862 = sand.u32 %s540, 1
          %s2863 = smul.addr %s2862, 16
          %s2864 = scalar_lea.vmem [#allocation14], %s2863
          %2865 = dma.done %s2861, 256
        $region152: #{tpu_custom_call.1} parent=147 // pred_fallthru
          _
      $region148: #{tpu_custom_call.1} parent=5 // pred_fallthru
        _
    $region6: #{tpu_custom_call.1} parent=1 // loop_footer
      %s42 = sadd.s32 1, %s38
    $region7: #{tpu_custom_call.1} parent=1 // loop_footer_branch
      %37 = sbr.rel target = $region3
    $region8: #{tpu_custom_call.1} parent=1 // loop_exit
      _
    %2866 = vsyncpa [#allocation3], 1
    %s2867 = scalar_lea.sflag [#allocation3], 1
    %2868 = vsyncpa %s2867, 1
    %2869 = vsyncpa [#allocation6], 1
    %2870 = vsyncpa [#allocation9], 1
    %2871 = vsyncpa [#allocation12], 1
    %2872 = vsyncpa [#allocation4], 1
    %s2873 = scalar_lea.sflag [#allocation4], 1
    %2874 = vsyncpa %s2873, 1

</llo_original>
